<compile_context>
chip_gen: v7x
topology: tpu7x:2x2x1
jax: 0.10.0
libtpu: 0.0.40
codegen_flags: <defaults>
</compile_context>

<pallas_src>
import jax
import jax.numpy as jnp
from jax import lax
from jax.experimental import pallas as pl
from jax.experimental.pallas import tpu as pltpu


def _silu(x):
    return x * jax.nn.sigmoid(x)


def _round_up(x, m):
    return ((x + m - 1) // m) * m


# --------------------------------------------------------------------------- #
# Fused Pallas kernel: grid = (layer, edge_tile)
# --------------------------------------------------------------------------- #
def _egnn_fused_kernel(
    # node-level inputs (full, VMEM resident)
    h_in_ref, coord_ref, inv_deg_ref,
    # per-edge-tile inputs
    row_s_ref, col_s_ref, row_l_ref, cd_ref, rad_ref,
    # weights
    emb_w_ref, emb_b_ref, whh_ref, bvec_ref, w6_ref,
    # outputs
    h_out_ref, coord_out_ref,
    # scratch
    h_vmem, hsp_vmem, hdp_vmem, agg_vmem, cagg_vmem,
):
    li = pl.program_id(0)            # layer index (outer, sequential carry of h)
    et = pl.program_id(1)            # edge-tile index (inner, sequential reduction)
    n_layers = pl.num_programs(0)
    n_etiles = pl.num_programs(1)

    te = row_s_ref.shape[0]
    n_pad = h_vmem.shape[0]
    f32, bf16 = jnp.float32, jnp.bfloat16

    def dot(a, b):
        return jnp.dot(a, b, preferred_element_type=f32)

    # current layer's weights (bf16 H x H stack selected by the BlockSpec index_map)
    w1s = whh_ref[0, 0]
    w1d = whh_ref[0, 1]
    w2 = whh_ref[0, 2]
    w3h = whh_ref[0, 3]
    w3a = whh_ref[0, 4]
    w4 = whh_ref[0, 5]
    w5 = whh_ref[0, 6]
    bv = bvec_ref[0]                              # [6, H] f32
    b1, w1r, b2 = bv[0:1], bv[1:2], bv[2:3]
    b3, b4, b5 = bv[3:4], bv[4:5], bv[5:6]
    w6 = w6_ref[0]                                # [H, 1] bf16

    # ---- embedding_in, once at the very first grid step; h stays VMEM-resident ----
    @pl.when(jnp.logical_and(li == 0, et == 0))
    def _():
        h_vmem[...] = (dot(h_in_ref[...].astype(bf16), emb_w_ref[...])
                       + emb_b_ref[...])

    # ---- per-layer init: project h once per layer; zero the segment accumulators ----
    @pl.when(et == 0)
    def _():
        h_bf = h_vmem[...].astype(bf16)
        hsp_vmem[...] = dot(h_bf, w1s).astype(bf16)   # h @ W1[:H]    (source half)
        hdp_vmem[...] = dot(h_bf, w1d).astype(bf16)   # h @ W1[H:2H]  (target half)
        agg_vmem[...] = jnp.zeros_like(agg_vmem)
        cagg_vmem[...] = jnp.zeros_like(cagg_vmem)

    # ---- per-edge-tile work ----
    # one-hot selection blocks built in-kernel from int32 indices (never hit HBM);
    # padded edges carry index == n_pad and therefore gather / scatter nothing.
    iota_en = lax.broadcasted_iota(jnp.int32, (te, n_pad), 1)
    iota_ne = lax.broadcasted_iota(jnp.int32, (n_pad, te), 0)
    oh_row = jnp.where(row_s_ref[...] == iota_en, 1.0, 0.0).astype(bf16)   # [TE, N]
    oh_col = jnp.where(col_s_ref[...] == iota_en, 1.0, 0.0).astype(bf16)   # [TE, N]
    oh_rowt = jnp.where(row_l_ref[...] == iota_ne, 1.0, 0.0).astype(bf16)  # [N, TE]

    coord_diff = cd_ref[...]        # [TE, 3] f32 (layer-invariant, precomputed)
    radial = rad_ref[...]           # [TE, 1] f32

    # edge MLP: first Linear folded into gathers of the per-node projections
    e_pre = (dot(oh_row, hsp_vmem[...]) + dot(oh_col, hdp_vmem[...])
             + radial * w1r + b1)
    e_act = _silu(e_pre)
    edge_feat = _silu(dot(e_act.astype(bf16), w2) + b2)     # [TE, H] f32
    edge_bf = edge_feat.astype(bf16)

    # segment-sum of edge features onto the source node (scatter as an MXU matmul)
    agg_vmem[...] += dot(oh_rowt, edge_bf)

    # coordinate messages only exist on the last layer (update_coords=True there only)
    @pl.when(li == n_layers - 1)
    def _():
        c = _silu(dot(edge_bf, w5) + b5)
        phi = dot(c.astype(bf16), w6)                       # [TE, 1]
        trans = coord_diff * phi                            # [TE, 3]
        cagg_vmem[...] += dot(oh_rowt, trans.astype(bf16))

    # ---- per-layer finalize: node MLP + residual; emit outputs on the last layer ----
    @pl.when(et == n_etiles - 1)
    def _():
        h_cur = h_vmem[...]
        n1 = _silu(dot(h_cur.astype(bf16), w3h)
                   + dot(agg_vmem[...].astype(bf16), w3a) + b3)
        h_next = h_cur + dot(n1.astype(bf16), w4) + b4      # residual
        h_vmem[...] = h_next

        @pl.when(li == n_layers - 1)
        def _():
            h_out_ref[...] = h_next
            coord_out_ref[...] = (coord_ref[...]
                                  + cagg_vmem[...] * inv_deg_ref[...])


# --------------------------------------------------------------------------- #
# Wrapper
# --------------------------------------------------------------------------- #
def egnn_last_forward(params, h, x, edges, *, edge_tile=256):
    """EGNN_last.forward(h, x, edges, edge_attr=None, edge_mask=None)."""
    row, col = edges
    n, in_nf = h.shape
    e_num = int(row.shape[0])
    hidden = params["emb_w"].shape[1]
    n_layers = len(params["layers"])
    f32, bf16 = jnp.float32, jnp.bfloat16

    assert edge_tile % 128 == 0, "edge_tile must be a multiple of 128"
    n_pad = _round_up(n, 8)
    te = edge_tile if e_num >= edge_tile else _round_up(max(e_num, 8), 8)
    e_pad = _round_up(e_num, te)
    n_etiles = e_pad // te

    row = row.astype(jnp.int32)
    col = col.astype(jnp.int32)

    # node-level inputs (padded to a sublane multiple)
    h_in = jnp.zeros((n_pad, in_nf), f32).at[:n].set(h.astype(f32))
    coord = jnp.zeros((n_pad, 3), f32).at[:n].set(x.astype(f32))

    # layer-invariant edge geometry: coord only changes inside the LAST layer, and
    # after coord2radial, so coord_diff / radial are identical for every layer.
    cd = x[row] - x[col]
    radial = jnp.sum(cd * cd, axis=1, keepdims=True)
    cd_pad = jnp.zeros((e_pad, 3), f32).at[:e_num].set(cd.astype(f32))
    rad_pad = jnp.zeros((e_pad, 1), f32).at[:e_num].set(radial.astype(f32))

    # int32 edge endpoints; padded edges point at node n_pad (out of range -> no-op)
    pad_idx = jnp.full((e_pad,), n_pad, jnp.int32)
    row_p = pad_idx.at[:e_num].set(row)
    col_p = pad_idx.at[:e_num].set(col)
    row_s = row_p[:, None]          # [E_pad, 1]  gather layout
    col_s = col_p[:, None]          # [E_pad, 1]
    row_l = row_p[None, :]          # [1, E_pad]  scatter layout

    # node degree over `row` (constant across layers) -> 1 / clamp(count, 1)
    deg = jax.ops.segment_sum(jnp.ones((e_num,), f32), row, num_segments=n_pad)
    inv_deg = (1.0 / jnp.maximum(deg, 1.0))[:, None]

    # stack per-layer weights once so a BlockSpec index_map streams only layer li
    layers = params["layers"]
    whh = jnp.stack(
        [jnp.stack([lp["w1_src"], lp["w1_dst"], lp["w2"], lp["w3_h"],
                    lp["w3_a"], lp["w4"], lp["w5"]], axis=0) for lp in layers],
        axis=0).astype(bf16)                                              # [L,7,H,H]
    bvec = jnp.stack(
        [jnp.concatenate([lp["b1"], lp["w1_r"], lp["b2"], lp["b3"],
                          lp["b4"], lp["b5"]], axis=0) for lp in layers],
        axis=0).astype(f32)                                               # [L,6,H]
    w6 = jnp.stack([lp["w6"] for lp in layers], axis=0).astype(bf16)      # [L,H,1]
    emb_w = params["emb_w"].astype(bf16)
    emb_b = params["emb_b"].astype(f32)

    node2 = lambda li, et: (0, 0)
    edge_r = lambda li, et: (et, 0)

    grid_spec = pltpu.PrefetchScalarGridSpec(
        num_scalar_prefetch=0,
        grid=(n_layers, n_etiles),
        in_specs=[
            pl.BlockSpec((n_pad, in_nf), node2),                         # h_in
            pl.BlockSpec((n_pad, 3), node2),                             # coord
            pl.BlockSpec((n_pad, 1), node2),                             # 1/deg
            pl.BlockSpec((te, 1), edge_r),                               # row (gather)
            pl.BlockSpec((te, 1), edge_r),                               # col (gather)
            pl.BlockSpec((1, te), lambda li, et: (0, et)),               # row (scatter)
            pl.BlockSpec((te, 3), edge_r),                               # coord_diff
            pl.BlockSpec((te, 1), edge_r),                               # radial
            pl.BlockSpec((in_nf, hidden), node2),                        # emb_w
            pl.BlockSpec((1, hidden), node2),                            # emb_b
            pl.BlockSpec((1, 7, hidden, hidden), lambda li, et: (li, 0, 0, 0)),
            pl.BlockSpec((1, 6, hidden), lambda li, et: (li, 0, 0)),
            pl.BlockSpec((1, hidden, 1), lambda li, et: (li, 0, 0)),
        ],
        out_specs=(
            pl.BlockSpec((n_pad, hidden), node2),
            pl.BlockSpec((n_pad, 3), node2),
        ),
        scratch_shapes=[
            pltpu.VMEM((n_pad, hidden), f32),     # resident h
            pltpu.VMEM((n_pad, hidden), bf16),    # h @ w1_src projection
            pltpu.VMEM((n_pad, hidden), bf16),    # h @ w1_dst projection
            pltpu.VMEM((n_pad, hidden), f32),     # edge-feature segment sum
            pltpu.VMEM((n_pad, 3), f32),          # coordinate message segment sum
        ],
    )

    h_out, x_out = pl.pallas_call(
        _egnn_fused_kernel,
        out_shape=(jax.ShapeDtypeStruct((n_pad, hidden), f32),
                   jax.ShapeDtypeStruct((n_pad, 3), f32)),
        grid_spec=grid_spec,
        compiler_params=pltpu.CompilerParams(
            # both axes are sequential: h carries across layers, the segment
            # accumulators carry across edge tiles (no megacore-parallel axis here)
            dimension_semantics=("arbitrary", "arbitrary"),
            vmem_limit_bytes=48 * 1024 * 1024,
        ),
    )(h_in, coord, inv_deg, row_s, col_s, row_l, cd_pad, rad_pad,
      emb_w, emb_b, whh, bvec, w6)

    return h_out[:n], x_out[:n]


# --------------------------------------------------------------------------- #
# Parameter init (deterministic, mirrors the nn.Linear shapes in __init__)
# --------------------------------------------------------------------------- #
def _linear_init(key, fan_in, fan_out):
    k1, k2 = jax.random.split(key)
    bound = 1.0 / jnp.sqrt(jnp.float32(fan_in))
    w = jax.random.uniform(k1, (fan_in, fan_out), jnp.float32, -bound, bound)
    b = jax.random.uniform(k2, (1, fan_out), jnp.float32, -bound, bound)
    return w, b


def init_params(key, in_node_nf, hidden_nf, n_layers):
    keys = jax.random.split(key, 1 + n_layers)
    emb_w, emb_b = _linear_init(keys[0], in_node_nf, hidden_nf)
    layers = []
    for i in range(n_layers):
        lk = jax.random.split(keys[1 + i], 6)
        H = hidden_nf
        # edge_mlp: Linear(2H + 1 -> H), Linear(H -> H)
        w1, b1 = _linear_init(lk[0], 2 * H + 1, H)
        w2, b2 = _linear_init(lk[1], H, H)
        # node_mlp: Linear(2H -> H), Linear(H -> H)
        w3, b3 = _linear_init(lk[2], 2 * H, H)
        w4, b4 = _linear_init(lk[3], H, H)
        # coord_mlp: Linear(H -> H), SiLU, Linear(H -> 1, bias=False, xavier gain=1e-3)
        w5, b5 = _linear_init(lk[4], H, H)
        xav = 0.001 * jnp.sqrt(6.0 / (H + 1.0))
        w6 = jax.random.uniform(lk[5], (H, 1), jnp.float32, -xav, xav)
        layers.append(dict(
            w1_src=w1[:H], w1_dst=w1[H:2 * H], w1_r=w1[2 * H:2 * H + 1], b1=b1,
            w2=w2, b2=b2,
            w3_h=w3[:H], w3_a=w3[H:], b3=b3,
            w4=w4, b4=b4,
            w5=w5, b5=b5, w6=w6,
        ))
    return dict(emb_w=emb_w, emb_b=emb_b, layers=layers)


# --------------------------------------------------------------------------- #
# Pure-JAX reference (mirrors the PyTorch forward) for a sanity check
# --------------------------------------------------------------------------- #
def egnn_last_reference(params, h, x, edges):
    row, col = edges
    n = h.shape[0]
    h = h @ params["emb_w"] + params["emb_b"]
    n_layers = len(params["layers"])
    for i, lp in enumerate(params["layers"]):
        update = i == n_layers - 1
        coord_diff = x[row] - x[col]
        radial = jnp.sum(coord_diff ** 2, axis=1, keepdims=True)
        e = _silu(h[row] @ lp["w1_src"] + h[col] @ lp["w1_dst"]
                  + radial * lp["w1_r"] + lp["b1"])
        edge_feat = _silu(e @ lp["w2"] + lp["b2"])
        if update:
            c = _silu(edge_feat @ lp["w5"] + lp["b5"])
            trans = coord_diff * (c @ lp["w6"])
            agg_sum = jax.ops.segment_sum(trans, row, num_segments=n)
            count = jax.ops.segment_sum(
                jnp.ones((row.shape[0], 1), jnp.float32), row, num_segments=n)
            x = x + agg_sum / jnp.maximum(count, 1.0)
        agg = jax.ops.segment_sum(edge_feat, row, num_segments=n)
        n1 = _silu(h @ lp["w3_h"] + agg @ lp["w3_a"] + lp["b3"])
        h = h + (n1 @ lp["w4"] + lp["b4"])
    return h, x


# --------------------------------------------------------------------------- #
if __name__ == "__main__":
    # Small graph, hidden_nf=32, n_layers=4 (EGNN_last defaults). edge_tile=128 so
    # the edge-tile grid axis (and its accumulator path) is actually exercised.
    N, E = 24, 300
    IN_NODE_NF, HIDDEN_NF, N_LAYERS = 4, 32, 4

    key = jax.random.PRNGKey(0)
    k_h, k_x, k_row, k_col, k_p = jax.random.split(key, 5)

    h_in = jax.random.normal(k_h, (N, IN_NODE_NF), jnp.float32)
    x_in = jax.random.normal(k_x, (N, 3), jnp.float32)
    row = jax.random.randint(k_row, (E,), 0, N, jnp.int32)
    col = jax.random.randint(k_col, (E,), 0, N, jnp.int32)

    params = init_params(k_p, IN_NODE_NF, HIDDEN_NF, N_LAYERS)

    # TODO(synk): edge_attr (in_edge_nf>0), edge_mask, attention/normalize/tanh and
    # use_layer_norm branches are not exercised (off in the default EGNN_last config).
    h_out, x_out = egnn_last_forward(params, h_in, x_in, (row, col), edge_tile=128)
    h_out = jax.block_until_ready(h_out)
    x_out = jax.block_until_ready(x_out)

    h_ref, x_ref = egnn_last_reference(params, h_in, x_in, (row, col))
    assert h_out.shape == (N, HIDDEN_NF) and x_out.shape == (N, 3)
    assert jnp.allclose(h_out, h_ref, rtol=5e-2, atol=5e-2)
    assert jnp.allclose(x_out, x_ref, rtol=5e-2, atol=5e-2)

    print("KERNEL_OK")
</pallas_src>

<mosaic_0001>
module attributes {stable_mosaic.version = 11 : i64} {
  func.func @_egnn_fused_kernel(%arg0: i32, %arg1: i32, %arg2: memref<24x4xf32, #tpu.memory_space<vmem>>, %arg3: memref<24x3xf32, #tpu.memory_space<vmem>>, %arg4: memref<24x1xf32, #tpu.memory_space<vmem>>, %arg5: memref<128x1xi32, #tpu.memory_space<vmem>>, %arg6: memref<128x1xi32, #tpu.memory_space<vmem>>, %arg7: memref<1x128xi32, #tpu.memory_space<vmem>>, %arg8: memref<128x3xf32, #tpu.memory_space<vmem>>, %arg9: memref<128x1xf32, #tpu.memory_space<vmem>>, %arg10: memref<4x32xbf16, #tpu.memory_space<vmem>>, %arg11: memref<1x32xf32, #tpu.memory_space<vmem>>, %arg12: memref<1x7x32x32xbf16, #tpu.memory_space<vmem>>, %arg13: memref<1x6x32xf32, #tpu.memory_space<vmem>>, %arg14: memref<1x32x1xbf16, #tpu.memory_space<vmem>>, %arg15: memref<24x32xf32, #tpu.memory_space<vmem>>, %arg16: memref<24x3xf32, #tpu.memory_space<vmem>>, %arg17: memref<24x32xf32, #tpu.memory_space<vmem>>, %arg18: memref<24x32xbf16, #tpu.memory_space<vmem>>, %arg19: memref<24x32xbf16, #tpu.memory_space<vmem>>, %arg20: memref<24x32xf32, #tpu.memory_space<vmem>>, %arg21: memref<24x3xf32, #tpu.memory_space<vmem>>) attributes {dimension_semantics = [#tpu.dimension_semantics<arbitrary>, #tpu.dimension_semantics<arbitrary>], iteration_bounds = array<i64: 4, 3>, scalar_prefetch = 0 : i64, scratch_operands = 5 : i64, tpu.core_type = #tpu.core_type<tc>, window_params = [{pipeline_mode = #tpu.pipeline_mode<synchronous>, transform_indices = @transform_0, window_bounds = array<i64: 24, 4>}, {pipeline_mode = #tpu.pipeline_mode<synchronous>, transform_indices = @transform_1, window_bounds = array<i64: 24, 3>}, {pipeline_mode = #tpu.pipeline_mode<synchronous>, transform_indices = @transform_2, window_bounds = array<i64: 24, 1>}, {transform_indices = @transform_3, window_bounds = array<i64: 128, 1>}, {transform_indices = @transform_4, window_bounds = array<i64: 128, 1>}, {transform_indices = @transform_5, window_bounds = array<i64: 1, 128>}, {transform_indices = @transform_6, window_bounds = array<i64: 128, 3>}, {transform_indices = @transform_7, window_bounds = array<i64: 128, 1>}, {pipeline_mode = #tpu.pipeline_mode<synchronous>, transform_indices = @transform_8, window_bounds = array<i64: 4, 32>}, {pipeline_mode = #tpu.pipeline_mode<synchronous>, transform_indices = @transform_9, window_bounds = array<i64: 1, 32>}, {transform_indices = @transform_10, window_bounds = array<i64: 1, 7, 32, 32>}, {transform_indices = @transform_11, window_bounds = array<i64: 1, 6, 32>}, {transform_indices = @transform_12, window_bounds = array<i64: 1, 32, 1>}, {pipeline_mode = #tpu.pipeline_mode<synchronous>, transform_indices = @transform_13, window_bounds = array<i64: 24, 32>}, {pipeline_mode = #tpu.pipeline_mode<synchronous>, transform_indices = @transform_14, window_bounds = array<i64: 24, 3>}]} {
    %c0 = arith.constant 0 : index
    %c0_0 = arith.constant 0 : index
    %c0_1 = arith.constant 0 : index
    %c0_2 = arith.constant 0 : index
    %0 = vector.load %arg12[%c0, %c0_0, %c0_1, %c0_2] : memref<1x7x32x32xbf16, #tpu.memory_space<vmem>>, vector<1x1x32x32xbf16>
    %1 = vector.shape_cast %0 : vector<1x1x32x32xbf16> to vector<32x32xbf16>
    %c0_3 = arith.constant 0 : index
    %c1 = arith.constant 1 : index
    %c0_4 = arith.constant 0 : index
    %c0_5 = arith.constant 0 : index
    %2 = vector.load %arg12[%c0_3, %c1, %c0_4, %c0_5] : memref<1x7x32x32xbf16, #tpu.memory_space<vmem>>, vector<1x1x32x32xbf16>
    %3 = vector.shape_cast %2 : vector<1x1x32x32xbf16> to vector<32x32xbf16>
    %c0_6 = arith.constant 0 : index
    %c2 = arith.constant 2 : index
    %c0_7 = arith.constant 0 : index
    %c0_8 = arith.constant 0 : index
    %4 = vector.load %arg12[%c0_6, %c2, %c0_7, %c0_8] : memref<1x7x32x32xbf16, #tpu.memory_space<vmem>>, vector<1x1x32x32xbf16>
    %5 = vector.shape_cast %4 : vector<1x1x32x32xbf16> to vector<32x32xbf16>
    %c0_9 = arith.constant 0 : index
    %c3 = arith.constant 3 : index
    %c0_10 = arith.constant 0 : index
    %c0_11 = arith.constant 0 : index
    %6 = vector.load %arg12[%c0_9, %c3, %c0_10, %c0_11] : memref<1x7x32x32xbf16, #tpu.memory_space<vmem>>, vector<1x1x32x32xbf16>
    %7 = vector.shape_cast %6 : vector<1x1x32x32xbf16> to vector<32x32xbf16>
    %c0_12 = arith.constant 0 : index
    %c4 = arith.constant 4 : index
    %c0_13 = arith.constant 0 : index
    %c0_14 = arith.constant 0 : index
    %8 = vector.load %arg12[%c0_12, %c4, %c0_13, %c0_14] : memref<1x7x32x32xbf16, #tpu.memory_space<vmem>>, vector<1x1x32x32xbf16>
    %9 = vector.shape_cast %8 : vector<1x1x32x32xbf16> to vector<32x32xbf16>
    %c0_15 = arith.constant 0 : index
    %c5 = arith.constant 5 : index
    %c0_16 = arith.constant 0 : index
    %c0_17 = arith.constant 0 : index
    %10 = vector.load %arg12[%c0_15, %c5, %c0_16, %c0_17] : memref<1x7x32x32xbf16, #tpu.memory_space<vmem>>, vector<1x1x32x32xbf16>
    %11 = vector.shape_cast %10 : vector<1x1x32x32xbf16> to vector<32x32xbf16>
    %c0_18 = arith.constant 0 : index
    %c6 = arith.constant 6 : index
    %c0_19 = arith.constant 0 : index
    %c0_20 = arith.constant 0 : index
    %12 = vector.load %arg12[%c0_18, %c6, %c0_19, %c0_20] : memref<1x7x32x32xbf16, #tpu.memory_space<vmem>>, vector<1x1x32x32xbf16>
    %13 = vector.shape_cast %12 : vector<1x1x32x32xbf16> to vector<32x32xbf16>
    %c0_21 = arith.constant 0 : index
    %c0_22 = arith.constant 0 : index
    %c0_23 = arith.constant 0 : index
    %14 = vector.load %arg13[%c0_21, %c0_22, %c0_23] : memref<1x6x32xf32, #tpu.memory_space<vmem>>, vector<1x6x32xf32>
    %15 = vector.shape_cast %14 : vector<1x6x32xf32> to vector<6x32xf32>
    %16 = vector.extract_strided_slice %15 {offsets = [0, 0], sizes = [1, 32], strides = [1, 1]} : vector<6x32xf32> to vector<1x32xf32>
    %17 = vector.extract_strided_slice %15 {offsets = [1, 0], sizes = [1, 32], strides = [1, 1]} : vector<6x32xf32> to vector<1x32xf32>
    %18 = vector.extract_strided_slice %15 {offsets = [2, 0], sizes = [1, 32], strides = [1, 1]} : vector<6x32xf32> to vector<1x32xf32>
    %19 = vector.extract_strided_slice %15 {offsets = [3, 0], sizes = [1, 32], strides = [1, 1]} : vector<6x32xf32> to vector<1x32xf32>
    %20 = vector.extract_strided_slice %15 {offsets = [4, 0], sizes = [1, 32], strides = [1, 1]} : vector<6x32xf32> to vector<1x32xf32>
    %21 = vector.extract_strided_slice %15 {offsets = [5, 0], sizes = [1, 32], strides = [1, 1]} : vector<6x32xf32> to vector<1x32xf32>
    %c0_24 = arith.constant 0 : index
    %c0_25 = arith.constant 0 : index
    %c0_26 = arith.constant 0 : index
    %22 = vector.load %arg14[%c0_24, %c0_25, %c0_26] : memref<1x32x1xbf16, #tpu.memory_space<vmem>>, vector<1x32x1xbf16>
    %23 = vector.shape_cast %22 : vector<1x32x1xbf16> to vector<32x1xbf16>
    %c0_i32 = arith.constant 0 : i32
    %24 = arith.cmpi eq, %arg0, %c0_i32 : i32
    %c0_i32_27 = arith.constant 0 : i32
    %25 = arith.cmpi eq, %arg1, %c0_i32_27 : i32
    %26 = arith.andi %24, %25 : i1
    %27 = arith.extui %26 : i1 to i32
    %c0_i32_28 = arith.constant 0 : i32
    %28 = arith.cmpi ne, %27, %c0_i32_28 : i32
    scf.if %28 {
      %c0_62 = arith.constant 0 : index
      %c0_63 = arith.constant 0 : index
      %95 = vector.load %arg2[%c0_62, %c0_63] : memref<24x4xf32, #tpu.memory_space<vmem>>, vector<24x4xf32>
      %96 = arith.truncf %95 : vector<24x4xf32> to vector<24x4xbf16>
      %c0_64 = arith.constant 0 : index
      %c0_65 = arith.constant 0 : index
      %97 = vector.load %arg10[%c0_64, %c0_65] : memref<4x32xbf16, #tpu.memory_space<vmem>>, vector<4x32xbf16>
      %cst_66 = arith.constant dense<0.000000e+00> : vector<24x32xf32>
      %98 = tpu.matmul %96, %97, %cst_66 {dimension_numbers = #tpu.dot_dimension_numbers<[1], [0], [0], [1], [0, 0, 1, 1], [], []>} : vector<24x4xbf16>, vector<4x32xbf16>, vector<24x32xf32> -> vector<24x32xf32>
      %c0_67 = arith.constant 0 : index
      %c0_68 = arith.constant 0 : index
      %99 = vector.load %arg11[%c0_67, %c0_68] : memref<1x32xf32, #tpu.memory_space<vmem>>, vector<1x32xf32>
      %100 = vector.broadcast %99 : vector<1x32xf32> to vector<24x32xf32>
      %101 = arith.addf %98, %100 : vector<24x32xf32>
      %c0_69 = arith.constant 0 : index
      %c0_70 = arith.constant 0 : index
      %102 = vector.load %arg17[%c0_69, %c0_70] : memref<24x32xf32, #tpu.memory_space<vmem>>, vector<24x32xf32>
      tpu.vector_store %arg17[%c0_69, %c0_70], %101 {strides = array<i32>} : memref<24x32xf32, #tpu.memory_space<vmem>>, vector<24x32xf32>,
    } else {
    }
    %c0_i32_29 = arith.constant 0 : i32
    %29 = arith.cmpi eq, %arg1, %c0_i32_29 : i32
    %30 = arith.extui %29 : i1 to i32
    %c0_i32_30 = arith.constant 0 : i32
    %31 = arith.cmpi ne, %30, %c0_i32_30 : i32
    scf.if %31 {
      %c0_62 = arith.constant 0 : index
      %c0_63 = arith.constant 0 : index
      %95 = vector.load %arg17[%c0_62, %c0_63] : memref<24x32xf32, #tpu.memory_space<vmem>>, vector<24x32xf32>
      %96 = arith.truncf %95 : vector<24x32xf32> to vector<24x32xbf16>
      %cst_64 = arith.constant dense<0.000000e+00> : vector<24x32xf32>
      %97 = tpu.matmul %96, %1, %cst_64 {dimension_numbers = #tpu.dot_dimension_numbers<[1], [0], [0], [1], [0, 0, 1, 1], [], []>} : vector<24x32xbf16>, vector<32x32xbf16>, vector<24x32xf32> -> vector<24x32xf32>
      %98 = arith.truncf %97 : vector<24x32xf32> to vector<24x32xbf16>
      %c0_65 = arith.constant 0 : index
      %c0_66 = arith.constant 0 : index
      %99 = vector.load %arg18[%c0_65, %c0_66] : memref<24x32xbf16, #tpu.memory_space<vmem>>, vector<24x32xbf16>
      tpu.vector_store %arg18[%c0_65, %c0_66], %98 {strides = array<i32>} : memref<24x32xbf16, #tpu.memory_space<vmem>>, vector<24x32xbf16>,
      %cst_67 = arith.constant dense<0.000000e+00> : vector<24x32xf32>
      %100 = tpu.matmul %96, %3, %cst_67 {dimension_numbers = #tpu.dot_dimension_numbers<[1], [0], [0], [1], [0, 0, 1, 1], [], []>} : vector<24x32xbf16>, vector<32x32xbf16>, vector<24x32xf32> -> vector<24x32xf32>
      %101 = arith.truncf %100 : vector<24x32xf32> to vector<24x32xbf16>
      %c0_68 = arith.constant 0 : index
      %c0_69 = arith.constant 0 : index
      %102 = vector.load %arg19[%c0_68, %c0_69] : memref<24x32xbf16, #tpu.memory_space<vmem>>, vector<24x32xbf16>
      tpu.vector_store %arg19[%c0_68, %c0_69], %101 {strides = array<i32>} : memref<24x32xbf16, #tpu.memory_space<vmem>>, vector<24x32xbf16>,
      %cst_70 = arith.constant 0.000000e+00 : f32
      %103 = vector.broadcast %cst_70 : f32 to vector<24x32xf32>
      %c0_71 = arith.constant 0 : index
      %c0_72 = arith.constant 0 : index
      %104 = vector.load %arg20[%c0_71, %c0_72] : memref<24x32xf32, #tpu.memory_space<vmem>>, vector<24x32xf32>
      tpu.vector_store %arg20[%c0_71, %c0_72], %103 {strides = array<i32>} : memref<24x32xf32, #tpu.memory_space<vmem>>, vector<24x32xf32>,
      %cst_73 = arith.constant 0.000000e+00 : f32
      %105 = vector.broadcast %cst_73 : f32 to vector<24x3xf32>
      %c0_74 = arith.constant 0 : index
      %c0_75 = arith.constant 0 : index
      %106 = vector.load %arg21[%c0_74, %c0_75] : memref<24x3xf32, #tpu.memory_space<vmem>>, vector<24x3xf32>
      tpu.vector_store %arg21[%c0_74, %c0_75], %105 {strides = array<i32>} : memref<24x3xf32, #tpu.memory_space<vmem>>, vector<24x3xf32>,
    } else {
    }
    %32 = tpu.iota {dimensions = array<i32: 1>} : vector<128x24xi32>
    %33 = tpu.iota {dimensions = array<i32: 0>} : vector<24x128xi32>
    %c0_31 = arith.constant 0 : index
    %c0_32 = arith.constant 0 : index
    %34 = vector.load %arg5[%c0_31, %c0_32] : memref<128x1xi32, #tpu.memory_space<vmem>>, vector<128x1xi32>
    %35 = vector.broadcast %34 : vector<128x1xi32> to vector<128x24xi32>
    %36 = arith.cmpi eq, %35, %32 : vector<128x24xi32>
    %cst = arith.constant 1.000000e+00 : f32
    %cst_33 = arith.constant 0.000000e+00 : f32
    %37 = vector.broadcast %cst : f32 to vector<128x24xf32>
    %38 = vector.broadcast %cst_33 : f32 to vector<128x24xf32>
    %39 = arith.select %36, %37, %38 : vector<128x24xi1>, vector<128x24xf32>
    %40 = arith.truncf %39 : vector<128x24xf32> to vector<128x24xbf16>
    %c0_34 = arith.constant 0 : index
    %c0_35 = arith.constant 0 : index
    %41 = vector.load %arg6[%c0_34, %c0_35] : memref<128x1xi32, #tpu.memory_space<vmem>>, vector<128x1xi32>
    %42 = vector.broadcast %41 : vector<128x1xi32> to vector<128x24xi32>
    %43 = arith.cmpi eq, %42, %32 : vector<128x24xi32>
    %cst_36 = arith.constant 1.000000e+00 : f32
    %cst_37 = arith.constant 0.000000e+00 : f32
    %44 = vector.broadcast %cst_36 : f32 to vector<128x24xf32>
    %45 = vector.broadcast %cst_37 : f32 to vector<128x24xf32>
    %46 = arith.select %43, %44, %45 : vector<128x24xi1>, vector<128x24xf32>
    %47 = arith.truncf %46 : vector<128x24xf32> to vector<128x24xbf16>
    %c0_38 = arith.constant 0 : index
    %c0_39 = arith.constant 0 : index
    %48 = vector.load %arg7[%c0_38, %c0_39] : memref<1x128xi32, #tpu.memory_space<vmem>>, vector<1x128xi32>
    %49 = vector.broadcast %48 : vector<1x128xi32> to vector<24x128xi32>
    %50 = arith.cmpi eq, %49, %33 : vector<24x128xi32>
    %cst_40 = arith.constant 1.000000e+00 : f32
    %cst_41 = arith.constant 0.000000e+00 : f32
    %51 = vector.broadcast %cst_40 : f32 to vector<24x128xf32>
    %52 = vector.broadcast %cst_41 : f32 to vector<24x128xf32>
    %53 = arith.select %50, %51, %52 : vector<24x128xi1>, vector<24x128xf32>
    %54 = arith.truncf %53 : vector<24x128xf32> to vector<24x128xbf16>
    %c0_42 = arith.constant 0 : index
    %c0_43 = arith.constant 0 : index
    %55 = vector.load %arg8[%c0_42, %c0_43] : memref<128x3xf32, #tpu.memory_space<vmem>>, vector<128x3xf32>
    %c0_44 = arith.constant 0 : index
    %c0_45 = arith.constant 0 : index
    %56 = vector.load %arg9[%c0_44, %c0_45] : memref<128x1xf32, #tpu.memory_space<vmem>>, vector<128x1xf32>
    %c0_46 = arith.constant 0 : index
    %c0_47 = arith.constant 0 : index
    %57 = vector.load %arg18[%c0_46, %c0_47] : memref<24x32xbf16, #tpu.memory_space<vmem>>, vector<24x32xbf16>
    %cst_48 = arith.constant dense<0.000000e+00> : vector<128x32xf32>
    %58 = tpu.matmul %40, %57, %cst_48 {dimension_numbers = #tpu.dot_dimension_numbers<[1], [0], [0], [1], [0, 0, 1, 1], [], []>} : vector<128x24xbf16>, vector<24x32xbf16>, vector<128x32xf32> -> vector<128x32xf32>
    %c0_49 = arith.constant 0 : index
    %c0_50 = arith.constant 0 : index
    %59 = vector.load %arg19[%c0_49, %c0_50] : memref<24x32xbf16, #tpu.memory_space<vmem>>, vector<24x32xbf16>
    %cst_51 = arith.constant dense<0.000000e+00> : vector<128x32xf32>
    %60 = tpu.matmul %47, %59, %cst_51 {dimension_numbers = #tpu.dot_dimension_numbers<[1], [0], [0], [1], [0, 0, 1, 1], [], []>} : vector<128x24xbf16>, vector<24x32xbf16>, vector<128x32xf32> -> vector<128x32xf32>
    %61 = arith.addf %58, %60 : vector<128x32xf32>
    %62 = vector.broadcast %56 : vector<128x1xf32> to vector<128x32xf32>
    %63 = vector.broadcast %17 : vector<1x32xf32> to vector<128x32xf32>
    %64 = arith.mulf %62, %63 : vector<128x32xf32>
    %65 = arith.addf %61, %64 : vector<128x32xf32>
    %66 = vector.broadcast %16 : vector<1x32xf32> to vector<128x32xf32>
    %67 = arith.addf %65, %66 : vector<128x32xf32>
    %68 = arith.negf %67 : vector<128x32xf32>
    %69 = math.exp %68 : vector<128x32xf32>
    %cst_52 = arith.constant 1.000000e+00 : f32
    %70 = vector.broadcast %cst_52 : f32 to vector<128x32xf32>
    %71 = arith.addf %70, %69 : vector<128x32xf32>
    %72 = arith.divf %70, %71 : vector<128x32xf32>
    %73 = arith.mulf %67, %72 : vector<128x32xf32>
    %74 = arith.truncf %73 : vector<128x32xf32> to vector<128x32xbf16>
    %cst_53 = arith.constant dense<0.000000e+00> : vector<128x32xf32>
    %75 = tpu.matmul %74, %5, %cst_53 {dimension_numbers = #tpu.dot_dimension_numbers<[1], [0], [0], [1], [0, 0, 1, 1], [], []>} : vector<128x32xbf16>, vector<32x32xbf16>, vector<128x32xf32> -> vector<128x32xf32>
    %76 = vector.broadcast %18 : vector<1x32xf32> to vector<128x32xf32>
    %77 = arith.addf %75, %76 : vector<128x32xf32>
    %78 = arith.negf %77 : vector<128x32xf32>
    %79 = math.exp %78 : vector<128x32xf32>
    %cst_54 = arith.constant 1.000000e+00 : f32
    %80 = vector.broadcast %cst_54 : f32 to vector<128x32xf32>
    %81 = arith.addf %80, %79 : vector<128x32xf32>
    %82 = arith.divf %80, %81 : vector<128x32xf32>
    %83 = arith.mulf %77, %82 : vector<128x32xf32>
    %84 = arith.truncf %83 : vector<128x32xf32> to vector<128x32xbf16>
    %c0_55 = arith.constant 0 : index
    %c0_56 = arith.constant 0 : index
    %85 = vector.load %arg20[%c0_55, %c0_56] : memref<24x32xf32, #tpu.memory_space<vmem>>, vector<24x32xf32>
    %cst_57 = arith.constant dense<0.000000e+00> : vector<24x32xf32>
    %86 = tpu.matmul %54, %84, %cst_57 {dimension_numbers = #tpu.dot_dimension_numbers<[1], [0], [0], [1], [0, 0, 1, 1], [], []>} : vector<24x128xbf16>, vector<128x32xbf16>, vector<24x32xf32> -> vector<24x32xf32>
    %87 = arith.addf %85, %86 : vector<24x32xf32>
    %c0_58 = arith.constant 0 : index
    %c0_59 = arith.constant 0 : index
    %88 = vector.load %arg20[%c0_58, %c0_59] : memref<24x32xf32, #tpu.memory_space<vmem>>, vector<24x32xf32>
    tpu.vector_store %arg20[%c0_58, %c0_59], %87 {strides = array<i32>} : memref<24x32xf32, #tpu.memory_space<vmem>>, vector<24x32xf32>,
    %c3_i32 = arith.constant 3 : i32
    %89 = arith.cmpi eq, %arg0, %c3_i32 : i32
    %90 = arith.extui %89 : i1 to i32
    %c0_i32_60 = arith.constant 0 : i32
    %91 = arith.cmpi ne, %90, %c0_i32_60 : i32
    scf.if %91 {
      %cst_62 = arith.constant dense<0.000000e+00> : vector<128x32xf32>
      %95 = tpu.matmul %84, %13, %cst_62 {dimension_numbers = #tpu.dot_dimension_numbers<[1], [0], [0], [1], [0, 0, 1, 1], [], []>} : vector<128x32xbf16>, vector<32x32xbf16>, vector<128x32xf32> -> vector<128x32xf32>
      %96 = vector.broadcast %21 : vector<1x32xf32> to vector<128x32xf32>
      %97 = arith.addf %95, %96 : vector<128x32xf32>
      %98 = arith.negf %97 : vector<128x32xf32>
      %99 = math.exp %98 : vector<128x32xf32>
      %cst_63 = arith.constant 1.000000e+00 : f32
      %100 = vector.broadcast %cst_63 : f32 to vector<128x32xf32>
      %101 = arith.addf %100, %99 : vector<128x32xf32>
      %102 = arith.divf %100, %101 : vector<128x32xf32>
      %103 = arith.mulf %97, %102 : vector<128x32xf32>
      %104 = arith.truncf %103 : vector<128x32xf32> to vector<128x32xbf16>
      %cst_64 = arith.constant dense<0.000000e+00> : vector<128x1xf32>
      %105 = tpu.matmul %104, %23, %cst_64 {dimension_numbers = #tpu.dot_dimension_numbers<[1], [0], [0], [1], [0, 0, 1, 1], [], []>} : vector<128x32xbf16>, vector<32x1xbf16>, vector<128x1xf32> -> vector<128x1xf32>
      %106 = vector.broadcast %105 : vector<128x1xf32> to vector<128x3xf32>
      %107 = arith.mulf %55, %106 : vector<128x3xf32>
      %c0_65 = arith.constant 0 : index
      %c0_66 = arith.constant 0 : index
      %108 = vector.load %arg21[%c0_65, %c0_66] : memref<24x3xf32, #tpu.memory_space<vmem>>, vector<24x3xf32>
      %109 = arith.truncf %107 : vector<128x3xf32> to vector<128x3xbf16>
      %cst_67 = arith.constant dense<0.000000e+00> : vector<24x3xf32>
      %110 = tpu.matmul %54, %109, %cst_67 {dimension_numbers = #tpu.dot_dimension_numbers<[1], [0], [0], [1], [0, 0, 1, 1], [], []>} : vector<24x128xbf16>, vector<128x3xbf16>, vector<24x3xf32> -> vector<24x3xf32>
      %111 = arith.addf %108, %110 : vector<24x3xf32>
      %c0_68 = arith.constant 0 : index
      %c0_69 = arith.constant 0 : index
      %112 = vector.load %arg21[%c0_68, %c0_69] : memref<24x3xf32, #tpu.memory_space<vmem>>, vector<24x3xf32>
      tpu.vector_store %arg21[%c0_68, %c0_69], %111 {strides = array<i32>} : memref<24x3xf32, #tpu.memory_space<vmem>>, vector<24x3xf32>,
    } else {
    }
    %c2_i32 = arith.constant 2 : i32
    %92 = arith.cmpi eq, %arg1, %c2_i32 : i32
    %93 = arith.extui %92 : i1 to i32
    %c0_i32_61 = arith.constant 0 : i32
    %94 = arith.cmpi ne, %93, %c0_i32_61 : i32
    scf.if %94 {
      %c0_62 = arith.constant 0 : index
      %c0_63 = arith.constant 0 : index
      %95 = vector.load %arg17[%c0_62, %c0_63] : memref<24x32xf32, #tpu.memory_space<vmem>>, vector<24x32xf32>
      %96 = arith.truncf %95 : vector<24x32xf32> to vector<24x32xbf16>
      %cst_64 = arith.constant dense<0.000000e+00> : vector<24x32xf32>
      %97 = tpu.matmul %96, %7, %cst_64 {dimension_numbers = #tpu.dot_dimension_numbers<[1], [0], [0], [1], [0, 0, 1, 1], [], []>} : vector<24x32xbf16>, vector<32x32xbf16>, vector<24x32xf32> -> vector<24x32xf32>
      %c0_65 = arith.constant 0 : index
      %c0_66 = arith.constant 0 : index
      %98 = vector.load %arg20[%c0_65, %c0_66] : memref<24x32xf32, #tpu.memory_space<vmem>>, vector<24x32xf32>
      %99 = arith.truncf %98 : vector<24x32xf32> to vector<24x32xbf16>
      %cst_67 = arith.constant dense<0.000000e+00> : vector<24x32xf32>
      %100 = tpu.matmul %99, %9, %cst_67 {dimension_numbers = #tpu.dot_dimension_numbers<[1], [0], [0], [1], [0, 0, 1, 1], [], []>} : vector<24x32xbf16>, vector<32x32xbf16>, vector<24x32xf32> -> vector<24x32xf32>
      %101 = arith.addf %97, %100 : vector<24x32xf32>
      %102 = vector.broadcast %19 : vector<1x32xf32> to vector<24x32xf32>
      %103 = arith.addf %101, %102 : vector<24x32xf32>
      %104 = arith.negf %103 : vector<24x32xf32>
      %105 = math.exp %104 : vector<24x32xf32>
      %cst_68 = arith.constant 1.000000e+00 : f32
      %106 = vector.broadcast %cst_68 : f32 to vector<24x32xf32>
      %107 = arith.addf %106, %105 : vector<24x32xf32>
      %108 = arith.divf %106, %107 : vector<24x32xf32>
      %109 = arith.mulf %103, %108 : vector<24x32xf32>
      %110 = arith.truncf %109 : vector<24x32xf32> to vector<24x32xbf16>
      %cst_69 = arith.constant dense<0.000000e+00> : vector<24x32xf32>
      %111 = tpu.matmul %110, %11, %cst_69 {dimension_numbers = #tpu.dot_dimension_numbers<[1], [0], [0], [1], [0, 0, 1, 1], [], []>} : vector<24x32xbf16>, vector<32x32xbf16>, vector<24x32xf32> -> vector<24x32xf32>
      %112 = arith.addf %95, %111 : vector<24x32xf32>
      %113 = vector.broadcast %20 : vector<1x32xf32> to vector<24x32xf32>
      %114 = arith.addf %112, %113 : vector<24x32xf32>
      %c0_70 = arith.constant 0 : index
      %c0_71 = arith.constant 0 : index
      %115 = vector.load %arg17[%c0_70, %c0_71] : memref<24x32xf32, #tpu.memory_space<vmem>>, vector<24x32xf32>
      tpu.vector_store %arg17[%c0_70, %c0_71], %114 {strides = array<i32>} : memref<24x32xf32, #tpu.memory_space<vmem>>, vector<24x32xf32>,
      %c3_i32_72 = arith.constant 3 : i32
      %116 = arith.cmpi eq, %arg0, %c3_i32_72 : i32
      %117 = arith.extui %116 : i1 to i32
      %c0_i32_73 = arith.constant 0 : i32
      %118 = arith.cmpi ne, %117, %c0_i32_73 : i32
      scf.if %118 {
        %c0_74 = arith.constant 0 : index
        %c0_75 = arith.constant 0 : index
        %119 = vector.load %arg15[%c0_74, %c0_75] : memref<24x32xf32, #tpu.memory_space<vmem>>, vector<24x32xf32>
        tpu.vector_store %arg15[%c0_74, %c0_75], %114 {strides = array<i32>} : memref<24x32xf32, #tpu.memory_space<vmem>>, vector<24x32xf32>,
        %c0_76 = arith.constant 0 : index
        %c0_77 = arith.constant 0 : index
        %120 = vector.load %arg3[%c0_76, %c0_77] : memref<24x3xf32, #tpu.memory_space<vmem>>, vector<24x3xf32>
        %c0_78 = arith.constant 0 : index
        %c0_79 = arith.constant 0 : index
        %121 = vector.load %arg21[%c0_78, %c0_79] : memref<24x3xf32, #tpu.memory_space<vmem>>, vector<24x3xf32>
        %c0_80 = arith.constant 0 : index
        %c0_81 = arith.constant 0 : index
        %122 = vector.load %arg4[%c0_80, %c0_81] : memref<24x1xf32, #tpu.memory_space<vmem>>, vector<24x1xf32>
        %123 = vector.broadcast %122 : vector<24x1xf32> to vector<24x3xf32>
        %124 = arith.mulf %121, %123 : vector<24x3xf32>
        %125 = arith.addf %120, %124 : vector<24x3xf32>
        %c0_82 = arith.constant 0 : index
        %c0_83 = arith.constant 0 : index
        %126 = vector.load %arg16[%c0_82, %c0_83] : memref<24x3xf32, #tpu.memory_space<vmem>>, vector<24x3xf32>
        tpu.vector_store %arg16[%c0_82, %c0_83], %125 {strides = array<i32>} : memref<24x3xf32, #tpu.memory_space<vmem>>, vector<24x3xf32>,
      } else {
      }
    } else {
    }
    return
  }
  func.func @transform_0(%arg0: i32, %arg1: i32) -> (i32, i32) {
    %c0_i32 = arith.constant 0 : i32
    %c0_i32_0 = arith.constant 0 : i32
    %c0_i32_1 = arith.constant 0 : i32
    return %c0_i32, %c0_i32_0 : i32, i32
  }
  func.func @transform_1(%arg0: i32, %arg1: i32) -> (i32, i32) {
    %c0_i32 = arith.constant 0 : i32
    %c0_i32_0 = arith.constant 0 : i32
    %c0_i32_1 = arith.constant 0 : i32
    return %c0_i32, %c0_i32_0 : i32, i32
  }
  func.func @transform_2(%arg0: i32, %arg1: i32) -> (i32, i32) {
    %c0_i32 = arith.constant 0 : i32
    %c0_i32_0 = arith.constant 0 : i32
    %c0_i32_1 = arith.constant 0 : i32
    return %c0_i32, %c0_i32_0 : i32, i32
  }
  func.func @transform_3(%arg0: i32, %arg1: i32) -> (i32, i32) {
    %c0_i32 = arith.constant 0 : i32
    %c0_i32_0 = arith.constant 0 : i32
    return %arg1, %c0_i32 : i32, i32
  }
  func.func @transform_4(%arg0: i32, %arg1: i32) -> (i32, i32) {
    %c0_i32 = arith.constant 0 : i32
    %c0_i32_0 = arith.constant 0 : i32
    return %arg1, %c0_i32 : i32, i32
  }
  func.func @transform_5(%arg0: i32, %arg1: i32) -> (i32, i32) {
    %c0_i32 = arith.constant 0 : i32
    %c0_i32_0 = arith.constant 0 : i32
    return %c0_i32, %arg1 : i32, i32
  }
  func.func @transform_6(%arg0: i32, %arg1: i32) -> (i32, i32) {
    %c0_i32 = arith.constant 0 : i32
    %c0_i32_0 = arith.constant 0 : i32
    return %arg1, %c0_i32 : i32, i32
  }
  func.func @transform_7(%arg0: i32, %arg1: i32) -> (i32, i32) {
    %c0_i32 = arith.constant 0 : i32
    %c0_i32_0 = arith.constant 0 : i32
    return %arg1, %c0_i32 : i32, i32
  }
  func.func @transform_8(%arg0: i32, %arg1: i32) -> (i32, i32) {
    %c0_i32 = arith.constant 0 : i32
    %c0_i32_0 = arith.constant 0 : i32
    %c0_i32_1 = arith.constant 0 : i32
    return %c0_i32, %c0_i32_0 : i32, i32
  }
  func.func @transform_9(%arg0: i32, %arg1: i32) -> (i32, i32) {
    %c0_i32 = arith.constant 0 : i32
    %c0_i32_0 = arith.constant 0 : i32
    %c0_i32_1 = arith.constant 0 : i32
    return %c0_i32, %c0_i32_0 : i32, i32
  }
  func.func @transform_10(%arg0: i32, %arg1: i32) -> (i32, i32, i32, i32) {
    %c0_i32 = arith.constant 0 : i32
    %c0_i32_0 = arith.constant 0 : i32
    %c0_i32_1 = arith.constant 0 : i32
    %c0_i32_2 = arith.constant 0 : i32
    return %arg0, %c0_i32, %c0_i32_0, %c0_i32_1 : i32, i32, i32, i32
  }
  func.func @transform_11(%arg0: i32, %arg1: i32) -> (i32, i32, i32) {
    %c0_i32 = arith.constant 0 : i32
    %c0_i32_0 = arith.constant 0 : i32
    %c0_i32_1 = arith.constant 0 : i32
    return %arg0, %c0_i32, %c0_i32_0 : i32, i32, i32
  }
  func.func @transform_12(%arg0: i32, %arg1: i32) -> (i32, i32, i32) {
    %c0_i32 = arith.constant 0 : i32
    %c0_i32_0 = arith.constant 0 : i32
    %c0_i32_1 = arith.constant 0 : i32
    return %arg0, %c0_i32, %c0_i32_0 : i32, i32, i32
  }
  func.func @transform_13(%arg0: i32, %arg1: i32) -> (i32, i32) {
    %c0_i32 = arith.constant 0 : i32
    %c0_i32_0 = arith.constant 0 : i32
    %c0_i32_1 = arith.constant 0 : i32
    return %c0_i32, %c0_i32_0 : i32, i32
  }
  func.func @transform_14(%arg0: i32, %arg1: i32) -> (i32, i32) {
    %c0_i32 = arith.constant 0 : i32
    %c0_i32_0 = arith.constant 0 : i32
    %c0_i32_1 = arith.constant 0 : i32
    return %c0_i32, %c0_i32_0 : i32, i32
  }
}

</mosaic_0001>

<llo_original>
// kernel: tpu_custom_call.1
$region0: #{tpu_custom_call.1}
  #allocation0 [shape = 'u32[]', space=smem, size = 0x4, offset = 0x4, fixed_abs, tag = 'smem constant byte address 0x4 - core index']
  #allocation1 [shape = 'u32[144,128]{1,0:T(1,128)}', space=vmem, size = 0x12000, scoped, tag = 'internal scratch']
  #allocation2 [shape = 'f32[24,32]{1,0:T(8,128)}', space=vmem, size = 0x3000, scoped, tag = 'scratch operand']
  #allocation3 [shape = 'bf16[24,32]{1,0:T(8,128)(2,1)}', space=vmem, size = 0x1800, scoped, tag = 'scratch operand']
  #allocation4 [shape = 'bf16[24,32]{1,0:T(8,128)(2,1)}', space=vmem, size = 0x1800, scoped, tag = 'scratch operand']
  #allocation5 [shape = 'f32[24,32]{1,0:T(8,128)}', space=vmem, size = 0x3000, scoped, tag = 'scratch operand']
  #allocation6 [shape = 'f32[24,3]{1,0:T(8,128)}', space=vmem, size = 0x3000, scoped, tag = 'scratch operand']
  %s0 = inlined_call_operand.vmem [shape: f32[24,4], index: 0, kind: input, shape index: {}]
  %s1 = inlined_call_operand.vmem [shape: f32[24,3], index: 1, kind: input, shape index: {}]
  %s2 = inlined_call_operand.vmem [shape: f32[24,1], index: 2, kind: input, shape index: {}]
  %s3 = inlined_call_operand.vmem [shape: s32[384,1], index: 3, kind: input, shape index: {}]
  %s4 = inlined_call_operand.vmem [shape: s32[384,1], index: 4, kind: input, shape index: {}]
  %s5 = inlined_call_operand.vmem [shape: s32[1,384], index: 5, kind: input, shape index: {}]
  %s6 = inlined_call_operand.vmem [shape: f32[384,3], index: 6, kind: input, shape index: {}]
  %s7 = inlined_call_operand.vmem [shape: f32[384,1], index: 7, kind: input, shape index: {}]
  %s8 = inlined_call_operand.vmem [shape: bf16[4,32], index: 8, kind: input, shape index: {}]
  %s9 = inlined_call_operand.vmem [shape: f32[1,32], index: 9, kind: input, shape index: {}]
  %s10 = inlined_call_operand.vmem [shape: bf16[4,7,32,32], index: 10, kind: input, shape index: {}]
  %s11 = inlined_call_operand.vmem [shape: f32[4,6,32], index: 11, kind: input, shape index: {}]
  %s12 = inlined_call_operand.vmem [shape: bf16[4,32,1], index: 12, kind: input, shape index: {}]
  %s13 = inlined_call_operand.hbm [shape: f32[24,32], index: 13, kind: output, shape index: {0}]
  %s14 = inlined_call_operand.vmem [shape: f32[24,3], index: 14, kind: output, shape index: {1}]
  %15 = xla_tuple %s13, %s14
  %s16 = sld [smem:[#allocation0]]
  $region113: #{tpu_custom_call.1} parent=0
    _
  %s18 = ssub.s32 1, %s16
  %s19 = scalar_select 0, %s18, %s16
  $region1: #{tpu_custom_call.1} parent=0
    #allocation7 [shape = 'u8[12288]{0}', space=vmem, size = 0x3000, scoped, tag = 'output window, operand 0, single buffered']
    #allocation8 [shape = 's32[2]{0}', space=sflag, size = 0x8, scoped, tag = 'scoped memory for tpu_custom_call.1']
    %20 = vsyncpa [#allocation8], 0
    loop: start=0, step=1, limit=14
    $region2: #{tpu_custom_call.1} parent=1 // loop_pre_header
      _
    $region3: #{tpu_custom_call.1} parent=1 // loop_header
      %s22 = sphi 0, %s26
      %p23 = scmp.ge.s32.totalorder %s22, 14
      %s29 = sphi 0, %s41
      %s30 = sphi 0, %s37
      %s31 = sphi 0, %s29
      %s32 = sphi 0, %s30
      %s33 = sphi 0, %s31
      %s34 = sphi 0, %s32
      %s42 = sphi 0, %s42
      %s44 = sphi 0, %s42
      %s45 = sphi 0, %s44
      %s59 = sphi 0, %s45
      %s63 = sphi 0, %s63
      %s65 = sphi 0, %s63
      %s66 = sphi 0, %s65
      %s80 = sphi 0, %s66
      %s84 = sphi 0, %s84
      %s86 = sphi 0, %s84
      %s87 = sphi 0, %s86
      %s101 = sphi 0, %s87
      %s107 = sphi 0, %s109
      %s110 = sphi 0, %s107
      %s111 = sphi 0, %s110
      %s127 = sphi 0, %s111
      %s133 = sphi 0, %s135
      %s136 = sphi 0, %s133
      %s137 = sphi 0, %s136
      %s153 = sphi 0, %s137
      %s159 = sphi 0, %s161
      %s162 = sphi 0, %s159
      %s163 = sphi 0, %s162
      %s179 = sphi 0, %s163
      %s185 = sphi 0, %s187
      %s188 = sphi 0, %s185
      %s189 = sphi 0, %s188
      %s205 = sphi 0, %s189
      %s211 = sphi 0, %s213
      %s214 = sphi 0, %s211
      %s215 = sphi 0, %s214
      %s231 = sphi 0, %s215
      %s235 = sphi 0, %s235
      %s237 = sphi 0, %s235
      %s238 = sphi 0, %s237
      %s252 = sphi 0, %s238
      %s256 = sphi 0, %s256
      %s258 = sphi 0, %s256
      %s259 = sphi 0, %s258
      %s273 = sphi 0, %s259
      %s279 = sphi 0, %s281
      %s282 = sphi 0, %s279
      %s283 = sphi 0, %s282
      %s299 = sphi 0, %s283
      %s305 = sphi 0, %s307
      %s308 = sphi 0, %s305
      %s309 = sphi 0, %s308
      %s325 = sphi 0, %s309
      %s331 = sphi 0, %s333
      %s334 = sphi 0, %s331
      %s335 = sphi 0, %s334
      %s351 = sphi 0, %s335
      %s355 = sphi 0, %s355
      %s357 = sphi 0, %s355
      %s358 = sphi 0, %s357
      %s372 = sphi 0, %s358
      %s376 = sphi 0, %s376
      %s378 = sphi 0, %s376
      %s379 = sphi 0, %s378
      %s393 = sphi 0, %s379
    $region4: #{tpu_custom_call.1} parent=1 // loop_header_branch
      %25 = sbr.rel (%p23) target = $region8
    $region5: #{tpu_custom_call.1} parent=1 // loop_body
      %s27 = ssub.s32 %s22, 1
      %s28 = ssub.s32 %s22, 2
      %s35 = sadd.s32 1, %s30
      %p36 = scmp.ge.s32.totalorder %s35, 3
      %s37 = scalar_select %p36, 0, %s35
      %s38 = sadd.s32 1, %s29
      %s39 = scalar_select %p36, %s38, %s29
      %p40 = scmp.ge.s32.totalorder %s39, 4
      %s41 = scalar_select %p40, 0, %s39
      %s43 = sadd.s32 %s42, 1
      %p46 = scmp.eq.s32.totalorder %s22, 11
      %p47 = scmp.ne.s32.totalorder %s42, %s44
      %p48 = scmp.eq.s32.totalorder %s22, 0
      %p49 = por %p47, %p48
      %p50 = scmp.ne.s32.totalorder %s42, %s44
      %p51 = scmp.eq.s32.totalorder %s27, 11
      %p52 = por %p50, %p51
      %p53 = scmp.ne.s32.totalorder %s44, %s45
      %p54 = scmp.eq.s32.totalorder %s27, 0
      %p55 = por %p53, %p54
      %p56 = scmp.ne.s32.totalorder %s44, %s45
      %p57 = scmp.eq.s32.totalorder %s28, 11
      %p58 = por %p56, %p57
      %p60 = scmp.ne.s32.totalorder %s45, %s59
      %p61 = scmp.eq.s32.totalorder %s28, 0
      %p62 = por %p60, %p61
      %s64 = sadd.s32 %s63, 1
      %p67 = scmp.eq.s32.totalorder %s22, 11
      %p68 = scmp.ne.s32.totalorder %s63, %s65
      %p69 = scmp.eq.s32.totalorder %s22, 0
      %p70 = por %p68, %p69
      %p71 = scmp.ne.s32.totalorder %s63, %s65
      %p72 = scmp.eq.s32.totalorder %s27, 11
      %p73 = por %p71, %p72
      %p74 = scmp.ne.s32.totalorder %s65, %s66
      %p75 = scmp.eq.s32.totalorder %s27, 0
      %p76 = por %p74, %p75
      %p77 = scmp.ne.s32.totalorder %s65, %s66
      %p78 = scmp.eq.s32.totalorder %s28, 11
      %p79 = por %p77, %p78
      %p81 = scmp.ne.s32.totalorder %s66, %s80
      %p82 = scmp.eq.s32.totalorder %s28, 0
      %p83 = por %p81, %p82
      %s85 = sadd.s32 %s84, 1
      %p88 = scmp.eq.s32.totalorder %s22, 11
      %p89 = scmp.ne.s32.totalorder %s84, %s86
      %p90 = scmp.eq.s32.totalorder %s22, 0
      %p91 = por %p89, %p90
      %p92 = scmp.ne.s32.totalorder %s84, %s86
      %p93 = scmp.eq.s32.totalorder %s27, 11
      %p94 = por %p92, %p93
      %p95 = scmp.ne.s32.totalorder %s86, %s87
      %p96 = scmp.eq.s32.totalorder %s27, 0
      %p97 = por %p95, %p96
      %p98 = scmp.ne.s32.totalorder %s86, %s87
      %p99 = scmp.eq.s32.totalorder %s28, 11
      %p100 = por %p98, %p99
      %p102 = scmp.ne.s32.totalorder %s87, %s101
      %p103 = scmp.eq.s32.totalorder %s28, 0
      %p104 = por %p102, %p103
      %s105 = ssub.s32 %s30, %s37
      %p106 = scmp.eq.s32.totalorder %s105, 0
      %s108 = sadd.s32 %s107, 1
      %s109 = scalar_select %p106, %s107, %s108
      %p112 = pneg %p106
      %p113 = scmp.eq.s32.totalorder %s22, 11
      %p114 = por %p112, %p113
      %p115 = scmp.ne.s32.totalorder %s107, %s110
      %p116 = scmp.eq.s32.totalorder %s22, 0
      %p117 = por %p115, %p116
      %p118 = scmp.ne.s32.totalorder %s107, %s110
      %p119 = scmp.eq.s32.totalorder %s27, 11
      %p120 = por %p118, %p119
      %p121 = scmp.ne.s32.totalorder %s110, %s111
      %p122 = scmp.eq.s32.totalorder %s27, 0
      %p123 = por %p121, %p122
      %p124 = scmp.ne.s32.totalorder %s110, %s111
      %p125 = scmp.eq.s32.totalorder %s28, 11
      %p126 = por %p124, %p125
      %p128 = scmp.ne.s32.totalorder %s111, %s127
      %p129 = scmp.eq.s32.totalorder %s28, 0
      %p130 = por %p128, %p129
      %s131 = ssub.s32 %s30, %s37
      %p132 = scmp.eq.s32.totalorder %s131, 0
      %s134 = sadd.s32 %s133, 1
      %s135 = scalar_select %p132, %s133, %s134
      %p138 = pneg %p132
      %p139 = scmp.eq.s32.totalorder %s22, 11
      %p140 = por %p138, %p139
      %p141 = scmp.ne.s32.totalorder %s133, %s136
      %p142 = scmp.eq.s32.totalorder %s22, 0
      %p143 = por %p141, %p142
      %p144 = scmp.ne.s32.totalorder %s133, %s136
      %p145 = scmp.eq.s32.totalorder %s27, 11
      %p146 = por %p144, %p145
      %p147 = scmp.ne.s32.totalorder %s136, %s137
      %p148 = scmp.eq.s32.totalorder %s27, 0
      %p149 = por %p147, %p148
      %p150 = scmp.ne.s32.totalorder %s136, %s137
      %p151 = scmp.eq.s32.totalorder %s28, 11
      %p152 = por %p150, %p151
      %p154 = scmp.ne.s32.totalorder %s137, %s153
      %p155 = scmp.eq.s32.totalorder %s28, 0
      %p156 = por %p154, %p155
      %s157 = ssub.s32 %s30, %s37
      %p158 = scmp.eq.s32.totalorder %s157, 0
      %s160 = sadd.s32 %s159, 1
      %s161 = scalar_select %p158, %s159, %s160
      %p164 = pneg %p158
      %p165 = scmp.eq.s32.totalorder %s22, 11
      %p166 = por %p164, %p165
      %p167 = scmp.ne.s32.totalorder %s159, %s162
      %p168 = scmp.eq.s32.totalorder %s22, 0
      %p169 = por %p167, %p168
      %p170 = scmp.ne.s32.totalorder %s159, %s162
      %p171 = scmp.eq.s32.totalorder %s27, 11
      %p172 = por %p170, %p171
      %p173 = scmp.ne.s32.totalorder %s162, %s163
      %p174 = scmp.eq.s32.totalorder %s27, 0
      %p175 = por %p173, %p174
      %p176 = scmp.ne.s32.totalorder %s162, %s163
      %p177 = scmp.eq.s32.totalorder %s28, 11
      %p178 = por %p176, %p177
      %p180 = scmp.ne.s32.totalorder %s163, %s179
      %p181 = scmp.eq.s32.totalorder %s28, 0
      %p182 = por %p180, %p181
      %s183 = ssub.s32 %s30, %s37
      %p184 = scmp.eq.s32.totalorder %s183, 0
      %s186 = sadd.s32 %s185, 1
      %s187 = scalar_select %p184, %s185, %s186
      %p190 = pneg %p184
      %p191 = scmp.eq.s32.totalorder %s22, 11
      %p192 = por %p190, %p191
      %p193 = scmp.ne.s32.totalorder %s185, %s188
      %p194 = scmp.eq.s32.totalorder %s22, 0
      %p195 = por %p193, %p194
      %p196 = scmp.ne.s32.totalorder %s185, %s188
      %p197 = scmp.eq.s32.totalorder %s27, 11
      %p198 = por %p196, %p197
      %p199 = scmp.ne.s32.totalorder %s188, %s189
      %p200 = scmp.eq.s32.totalorder %s27, 0
      %p201 = por %p199, %p200
      %p202 = scmp.ne.s32.totalorder %s188, %s189
      %p203 = scmp.eq.s32.totalorder %s28, 11
      %p204 = por %p202, %p203
      %p206 = scmp.ne.s32.totalorder %s189, %s205
      %p207 = scmp.eq.s32.totalorder %s28, 0
      %p208 = por %p206, %p207
      %s209 = ssub.s32 %s30, %s37
      %p210 = scmp.eq.s32.totalorder %s209, 0
      %s212 = sadd.s32 %s211, 1
      %s213 = scalar_select %p210, %s211, %s212
      %p216 = pneg %p210
      %p217 = scmp.eq.s32.totalorder %s22, 11
      %p218 = por %p216, %p217
      %p219 = scmp.ne.s32.totalorder %s211, %s214
      %p220 = scmp.eq.s32.totalorder %s22, 0
      %p221 = por %p219, %p220
      %p222 = scmp.ne.s32.totalorder %s211, %s214
      %p223 = scmp.eq.s32.totalorder %s27, 11
      %p224 = por %p222, %p223
      %p225 = scmp.ne.s32.totalorder %s214, %s215
      %p226 = scmp.eq.s32.totalorder %s27, 0
      %p227 = por %p225, %p226
      %p228 = scmp.ne.s32.totalorder %s214, %s215
      %p229 = scmp.eq.s32.totalorder %s28, 11
      %p230 = por %p228, %p229
      %p232 = scmp.ne.s32.totalorder %s215, %s231
      %p233 = scmp.eq.s32.totalorder %s28, 0
      %p234 = por %p232, %p233
      %s236 = sadd.s32 %s235, 1
      %p239 = scmp.eq.s32.totalorder %s22, 11
      %p240 = scmp.ne.s32.totalorder %s235, %s237
      %p241 = scmp.eq.s32.totalorder %s22, 0
      %p242 = por %p240, %p241
      %p243 = scmp.ne.s32.totalorder %s235, %s237
      %p244 = scmp.eq.s32.totalorder %s27, 11
      %p245 = por %p243, %p244
      %p246 = scmp.ne.s32.totalorder %s237, %s238
      %p247 = scmp.eq.s32.totalorder %s27, 0
      %p248 = por %p246, %p247
      %p249 = scmp.ne.s32.totalorder %s237, %s238
      %p250 = scmp.eq.s32.totalorder %s28, 11
      %p251 = por %p249, %p250
      %p253 = scmp.ne.s32.totalorder %s238, %s252
      %p254 = scmp.eq.s32.totalorder %s28, 0
      %p255 = por %p253, %p254
      %s257 = sadd.s32 %s256, 1
      %p260 = scmp.eq.s32.totalorder %s22, 11
      %p261 = scmp.ne.s32.totalorder %s256, %s258
      %p262 = scmp.eq.s32.totalorder %s22, 0
      %p263 = por %p261, %p262
      %p264 = scmp.ne.s32.totalorder %s256, %s258
      %p265 = scmp.eq.s32.totalorder %s27, 11
      %p266 = por %p264, %p265
      %p267 = scmp.ne.s32.totalorder %s258, %s259
      %p268 = scmp.eq.s32.totalorder %s27, 0
      %p269 = por %p267, %p268
      %p270 = scmp.ne.s32.totalorder %s258, %s259
      %p271 = scmp.eq.s32.totalorder %s28, 11
      %p272 = por %p270, %p271
      %p274 = scmp.ne.s32.totalorder %s259, %s273
      %p275 = scmp.eq.s32.totalorder %s28, 0
      %p276 = por %p274, %p275
      %s277 = ssub.s32 %s29, %s41
      %p278 = scmp.eq.s32.totalorder %s277, 0
      %s280 = sadd.s32 %s279, 1
      %s281 = scalar_select %p278, %s279, %s280
      %p284 = pneg %p278
      %p285 = scmp.eq.s32.totalorder %s22, 11
      %p286 = por %p284, %p285
      %p287 = scmp.ne.s32.totalorder %s279, %s282
      %p288 = scmp.eq.s32.totalorder %s22, 0
      %p289 = por %p287, %p288
      %p290 = scmp.ne.s32.totalorder %s279, %s282
      %p291 = scmp.eq.s32.totalorder %s27, 11
      %p292 = por %p290, %p291
      %p293 = scmp.ne.s32.totalorder %s282, %s283
      %p294 = scmp.eq.s32.totalorder %s27, 0
      %p295 = por %p293, %p294
      %p296 = scmp.ne.s32.totalorder %s282, %s283
      %p297 = scmp.eq.s32.totalorder %s28, 11
      %p298 = por %p296, %p297
      %p300 = scmp.ne.s32.totalorder %s283, %s299
      %p301 = scmp.eq.s32.totalorder %s28, 0
      %p302 = por %p300, %p301
      %s303 = ssub.s32 %s29, %s41
      %p304 = scmp.eq.s32.totalorder %s303, 0
      %s306 = sadd.s32 %s305, 1
      %s307 = scalar_select %p304, %s305, %s306
      %p310 = pneg %p304
      %p311 = scmp.eq.s32.totalorder %s22, 11
      %p312 = por %p310, %p311
      %p313 = scmp.ne.s32.totalorder %s305, %s308
      %p314 = scmp.eq.s32.totalorder %s22, 0
      %p315 = por %p313, %p314
      %p316 = scmp.ne.s32.totalorder %s305, %s308
      %p317 = scmp.eq.s32.totalorder %s27, 11
      %p318 = por %p316, %p317
      %p319 = scmp.ne.s32.totalorder %s308, %s309
      %p320 = scmp.eq.s32.totalorder %s27, 0
      %p321 = por %p319, %p320
      %p322 = scmp.ne.s32.totalorder %s308, %s309
      %p323 = scmp.eq.s32.totalorder %s28, 11
      %p324 = por %p322, %p323
      %p326 = scmp.ne.s32.totalorder %s309, %s325
      %p327 = scmp.eq.s32.totalorder %s28, 0
      %p328 = por %p326, %p327
      %s329 = ssub.s32 %s29, %s41
      %p330 = scmp.eq.s32.totalorder %s329, 0
      %s332 = sadd.s32 %s331, 1
      %s333 = scalar_select %p330, %s331, %s332
      %p336 = pneg %p330
      %p337 = scmp.eq.s32.totalorder %s22, 11
      %p338 = por %p336, %p337
      %p339 = scmp.ne.s32.totalorder %s331, %s334
      %p340 = scmp.eq.s32.totalorder %s22, 0
      %p341 = por %p339, %p340
      %p342 = scmp.ne.s32.totalorder %s331, %s334
      %p343 = scmp.eq.s32.totalorder %s27, 11
      %p344 = por %p342, %p343
      %p345 = scmp.ne.s32.totalorder %s334, %s335
      %p346 = scmp.eq.s32.totalorder %s27, 0
      %p347 = por %p345, %p346
      %p348 = scmp.ne.s32.totalorder %s334, %s335
      %p349 = scmp.eq.s32.totalorder %s28, 11
      %p350 = por %p348, %p349
      %p352 = scmp.ne.s32.totalorder %s335, %s351
      %p353 = scmp.eq.s32.totalorder %s28, 0
      %p354 = por %p352, %p353
      %s356 = sadd.s32 %s355, 1
      %p359 = scmp.eq.s32.totalorder %s22, 11
      %p360 = scmp.ne.s32.totalorder %s355, %s357
      %p361 = scmp.eq.s32.totalorder %s22, 0
      %p362 = por %p360, %p361
      %p363 = scmp.ne.s32.totalorder %s355, %s357
      %p364 = scmp.eq.s32.totalorder %s27, 11
      %p365 = por %p363, %p364
      %p366 = scmp.ne.s32.totalorder %s357, %s358
      %p367 = scmp.eq.s32.totalorder %s27, 0
      %p368 = por %p366, %p367
      %p369 = scmp.ne.s32.totalorder %s357, %s358
      %p370 = scmp.eq.s32.totalorder %s28, 11
      %p371 = por %p369, %p370
      %p373 = scmp.ne.s32.totalorder %s358, %s372
      %p374 = scmp.eq.s32.totalorder %s28, 0
      %p375 = por %p373, %p374
      %s377 = sadd.s32 %s376, 1
      %p380 = scmp.eq.s32.totalorder %s22, 11
      %p381 = scmp.ne.s32.totalorder %s376, %s378
      %p382 = scmp.eq.s32.totalorder %s22, 0
      %p383 = por %p381, %p382
      %p384 = scmp.ne.s32.totalorder %s376, %s378
      %p385 = scmp.eq.s32.totalorder %s27, 11
      %p386 = por %p384, %p385
      %p387 = scmp.ne.s32.totalorder %s378, %s379
      %p388 = scmp.eq.s32.totalorder %s27, 0
      %p389 = por %p387, %p388
      %p390 = scmp.ne.s32.totalorder %s378, %s379
      %p391 = scmp.eq.s32.totalorder %s28, 11
      %p392 = por %p390, %p391
      %p394 = scmp.ne.s32.totalorder %s379, %s393
      %p395 = scmp.eq.s32.totalorder %s28, 0
      %p396 = por %p394, %p395
      %p397 = scmp.le.s32.totalorder 1, %s22
      %p398 = scmp.lt.s32.totalorder %s22, 13
      %p399 = pnand %p397, %p398
      %p400 = pneg %p399
      // Predicated region
      $region9: #{tpu_custom_call.1} parent=5 // pred_check
        _
      $region10: #{tpu_custom_call.1} parent=5 // pred_check_branch
        %402 = sbr.rel (%p399) target = $region12
      $region11: #{tpu_custom_call.1} parent=5 // pred_region
        %s403 = ssub.s32 %s22, 1
        // Predicated region
        $region13: #{tpu_custom_call.1} parent=11 // pred_check
          %p404 = pneg %p55
        $region14: #{tpu_custom_call.1} parent=11 // pred_check_branch
          %406 = sbr.rel (%p404) target = $region16
        $region15: #{tpu_custom_call.1} parent=11 // pred_region
          _
        $region16: #{tpu_custom_call.1} parent=11 // pred_fallthru
          _
        // Predicated region
        $region17: #{tpu_custom_call.1} parent=11 // pred_check
          %p407 = pneg %p76
        $region18: #{tpu_custom_call.1} parent=11 // pred_check_branch
          %409 = sbr.rel (%p407) target = $region20
        $region19: #{tpu_custom_call.1} parent=11 // pred_region
          _
        $region20: #{tpu_custom_call.1} parent=11 // pred_fallthru
          _
        // Predicated region
        $region21: #{tpu_custom_call.1} parent=11 // pred_check
          %p410 = pneg %p97
        $region22: #{tpu_custom_call.1} parent=11 // pred_check_branch
          %412 = sbr.rel (%p410) target = $region24
        $region23: #{tpu_custom_call.1} parent=11 // pred_region
          _
        $region24: #{tpu_custom_call.1} parent=11 // pred_fallthru
          _
        // Predicated region
        $region25: #{tpu_custom_call.1} parent=11 // pred_check
          %p413 = pneg %p248
        $region26: #{tpu_custom_call.1} parent=11 // pred_check_branch
          %415 = sbr.rel (%p413) target = $region28
        $region27: #{tpu_custom_call.1} parent=11 // pred_region
          _
        $region28: #{tpu_custom_call.1} parent=11 // pred_fallthru
          _
        // Predicated region
        $region29: #{tpu_custom_call.1} parent=11 // pred_check
          %p416 = pneg %p269
        $region30: #{tpu_custom_call.1} parent=11 // pred_check_branch
          %418 = sbr.rel (%p416) target = $region32
        $region31: #{tpu_custom_call.1} parent=11 // pred_region
          _
        $region32: #{tpu_custom_call.1} parent=11 // pred_fallthru
          _
      $region12: #{tpu_custom_call.1} parent=5 // pred_fallthru
        _
      %p419 = scmp.lt.s32.totalorder %s22, 12
      // Predicated region
      $region33: #{tpu_custom_call.1} parent=5 // pred_check
        %p420 = pneg %p419
      $region34: #{tpu_custom_call.1} parent=5 // pred_check_branch
        %422 = sbr.rel (%p420) target = $region36
      $region35: #{tpu_custom_call.1} parent=5 // pred_region
        // Predicated region
        $region37: #{tpu_custom_call.1} parent=35 // pred_check
          %p423 = pneg %p117
        $region38: #{tpu_custom_call.1} parent=35 // pred_check_branch
          %425 = sbr.rel (%p423) target = $region40
        $region39: #{tpu_custom_call.1} parent=35 // pred_region
          %s426 = smul.u32 16, %s30
          %p427 = scmp.lt.s32.totalorder %s426, 47
          %s428 = scalar_select %p427, %s426, 47
          %s429 = smul.addr %s428, 8
          %s430 = scalar_lea.vmem %s3, %s429
          %s431 = smul.u32 16, %s30
        $region40: #{tpu_custom_call.1} parent=35 // pred_fallthru
          _
        // Predicated region
        $region41: #{tpu_custom_call.1} parent=35 // pred_check
          %p432 = pneg %p143
        $region42: #{tpu_custom_call.1} parent=35 // pred_check_branch
          %434 = sbr.rel (%p432) target = $region44
        $region43: #{tpu_custom_call.1} parent=35 // pred_region
          %s435 = smul.u32 16, %s30
          %p436 = scmp.lt.s32.totalorder %s435, 47
          %s437 = scalar_select %p436, %s435, 47
          %s438 = smul.addr %s437, 8
          %s439 = scalar_lea.vmem %s4, %s438
          %s440 = smul.u32 16, %s30
        $region44: #{tpu_custom_call.1} parent=35 // pred_fallthru
          _
        // Predicated region
        $region45: #{tpu_custom_call.1} parent=35 // pred_check
          %p441 = pneg %p169
        $region46: #{tpu_custom_call.1} parent=35 // pred_check_branch
          %443 = sbr.rel (%p441) target = $region48
        $region47: #{tpu_custom_call.1} parent=35 // pred_region
          %p444 = scmp.lt.s32.totalorder %s30, 2
          %s445 = scalar_select %p444, %s30, 2
          %s446 = scalar_lea.vmem %s5, %s445
        $region48: #{tpu_custom_call.1} parent=35 // pred_fallthru
          _
        // Predicated region
        $region49: #{tpu_custom_call.1} parent=35 // pred_check
          %p447 = pneg %p195
        $region50: #{tpu_custom_call.1} parent=35 // pred_check_branch
          %449 = sbr.rel (%p447) target = $region52
        $region51: #{tpu_custom_call.1} parent=35 // pred_region
          %s450 = smul.u32 16, %s30
          %p451 = scmp.lt.s32.totalorder %s450, 47
          %s452 = scalar_select %p451, %s450, 47
          %s453 = smul.addr %s452, 8
          %s454 = scalar_lea.vmem %s6, %s453
          %s455 = smul.u32 16, %s30
        $region52: #{tpu_custom_call.1} parent=35 // pred_fallthru
          _
        // Predicated region
        $region53: #{tpu_custom_call.1} parent=35 // pred_check
          %p456 = pneg %p221
        $region54: #{tpu_custom_call.1} parent=35 // pred_check_branch
          %458 = sbr.rel (%p456) target = $region56
        $region55: #{tpu_custom_call.1} parent=35 // pred_region
          %s459 = smul.u32 16, %s30
          %p460 = scmp.lt.s32.totalorder %s459, 47
          %s461 = scalar_select %p460, %s459, 47
          %s462 = smul.addr %s461, 8
          %s463 = scalar_lea.vmem %s7, %s462
          %s464 = smul.u32 16, %s30
        $region56: #{tpu_custom_call.1} parent=35 // pred_fallthru
          _
        // Predicated region
        $region57: #{tpu_custom_call.1} parent=35 // pred_check
          %p465 = pneg %p289
        $region58: #{tpu_custom_call.1} parent=35 // pred_check_branch
          %467 = sbr.rel (%p465) target = $region60
        $region59: #{tpu_custom_call.1} parent=35 // pred_region
          %p468 = scmp.lt.s32.totalorder %s29, 3
          %s469 = scalar_select %p468, %s29, 3
          %s470 = smul.addr %s469, 28
          %s471 = smul.addr %s470, 4
          %s472 = scalar_lea.vmem %s10, %s471
        $region60: #{tpu_custom_call.1} parent=35 // pred_fallthru
          _
        // Predicated region
        $region61: #{tpu_custom_call.1} parent=35 // pred_check
          %p473 = pneg %p315
        $region62: #{tpu_custom_call.1} parent=35 // pred_check_branch
          %475 = sbr.rel (%p473) target = $region64
        $region63: #{tpu_custom_call.1} parent=35 // pred_region
          %p476 = scmp.lt.s32.totalorder %s29, 3
          %s477 = scalar_select %p476, %s29, 3
          %s478 = smul.addr %s477, 8
          %s479 = scalar_lea.vmem %s11, %s478
        $region64: #{tpu_custom_call.1} parent=35 // pred_fallthru
          _
        // Predicated region
        $region65: #{tpu_custom_call.1} parent=35 // pred_check
          %p480 = pneg %p341
        $region66: #{tpu_custom_call.1} parent=35 // pred_check_branch
          %482 = sbr.rel (%p480) target = $region68
        $region67: #{tpu_custom_call.1} parent=35 // pred_region
          %p483 = scmp.lt.s32.totalorder %s29, 3
          %s484 = scalar_select %p483, %s29, 3
          %s485 = smul.addr %s484, 4
          %s486 = smul.addr %s485, 4
          %s487 = scalar_lea.vmem %s12, %s486
        $region68: #{tpu_custom_call.1} parent=35 // pred_fallthru
          _
      $region36: #{tpu_custom_call.1} parent=5 // pred_fallthru
        _
      %p488 = scmp.le.s32.totalorder 1, %s22
      %p489 = scmp.lt.s32.totalorder %s22, 13
      %p490 = pnand %p488, %p489
      %p491 = pneg %p490
      // Predicated region
      $region69: #{tpu_custom_call.1} parent=5 // pred_check
        _
      $region70: #{tpu_custom_call.1} parent=5 // pred_check_branch
        %493 = sbr.rel (%p490) target = $region72
      $region71: #{tpu_custom_call.1} parent=5 // pred_region
        %s494 = ssub.s32 %s22, 1
        %p495 = pneg %p55
        %p496 = pneg %p52
        %p497 = pneg %p76
        %p498 = pneg %p73
        %p499 = pneg %p97
        %p500 = pneg %p94
        %s501 = smul.u32 16, %s32
        %p502 = scmp.lt.s32.totalorder %s501, 47
        %s503 = scalar_select %p502, %s501, 47
        %s504 = smul.addr %s503, 8
        %s505 = scalar_lea.vmem %s3, %s504
        %p506 = pneg %p123
        %p507 = pneg %p120
        %s508 = smul.u32 16, %s32
        %p509 = scmp.lt.s32.totalorder %s508, 47
        %s510 = scalar_select %p509, %s508, 47
        %s511 = smul.addr %s510, 8
        %s512 = scalar_lea.vmem %s4, %s511
        %p513 = pneg %p149
        %p514 = pneg %p146
        %p515 = scmp.lt.s32.totalorder %s32, 2
        %s516 = scalar_select %p515, %s32, 2
        %s517 = scalar_lea.vmem %s5, %s516
        %p518 = pneg %p175
        %p519 = pneg %p172
        %s520 = smul.u32 16, %s32
        %p521 = scmp.lt.s32.totalorder %s520, 47
        %s522 = scalar_select %p521, %s520, 47
        %s523 = smul.addr %s522, 8
        %s524 = scalar_lea.vmem %s6, %s523
        %p525 = pneg %p201
        %p526 = pneg %p198
        %s527 = smul.u32 16, %s32
        %p528 = scmp.lt.s32.totalorder %s527, 47
        %s529 = scalar_select %p528, %s527, 47
        %s530 = smul.addr %s529, 8
        %s531 = scalar_lea.vmem %s7, %s530
        %p532 = pneg %p227
        %p533 = pneg %p224
        %p534 = pneg %p248
        %p535 = pneg %p245
        %p536 = pneg %p269
        %p537 = pneg %p266
        %p538 = scmp.lt.s32.totalorder %s31, 3
        %s539 = scalar_select %p538, %s31, 3
        %s540 = smul.addr %s539, 28
        %s541 = smul.addr %s540, 4
        %s542 = scalar_lea.vmem %s10, %s541
        %p543 = pneg %p295
        %p544 = pneg %p292
        %p545 = scmp.lt.s32.totalorder %s31, 3
        %s546 = scalar_select %p545, %s31, 3
        %s547 = smul.addr %s546, 8
        %s548 = scalar_lea.vmem %s11, %s547
        %p549 = pneg %p321
        %p550 = pneg %p318
        %p551 = scmp.lt.s32.totalorder %s31, 3
        %s552 = scalar_select %p551, %s31, 3
        %s553 = smul.addr %s552, 4
        %s554 = smul.addr %s553, 4
        %s555 = scalar_lea.vmem %s12, %s554
        %p556 = pneg %p347
        %p557 = pneg %p344
        %p558 = pneg %p368
        %p559 = pneg %p365
        %p560 = pneg %p389
        %p561 = pneg %p386
        %s562 = smul.u32 16, %s32
        %p563 = scmp.lt.s32.totalorder %s562, 47
        %s564 = scalar_select %p563, %s562, 47
        %s565 = smul.addr %s564, 8
        %s566 = scalar_lea.vmem %s3, %s565
        %s567 = smul.u32 16, %s32
        %s568 = smul.u32 16, %s32
        %p569 = scmp.lt.s32.totalorder %s568, 47
        %s570 = scalar_select %p569, %s568, 47
        %s571 = smul.addr %s570, 8
        %s572 = scalar_lea.vmem %s4, %s571
        %s573 = smul.u32 16, %s32
        %p574 = scmp.lt.s32.totalorder %s32, 2
        %s575 = scalar_select %p574, %s32, 2
        %s576 = scalar_lea.vmem %s5, %s575
        %s577 = smul.u32 16, %s32
        %p578 = scmp.lt.s32.totalorder %s577, 47
        %s579 = scalar_select %p578, %s577, 47
        %s580 = smul.addr %s579, 8
        %s581 = scalar_lea.vmem %s6, %s580
        %s582 = smul.u32 16, %s32
        %s583 = smul.u32 16, %s32
        %p584 = scmp.lt.s32.totalorder %s583, 47
        %s585 = scalar_select %p584, %s583, 47
        %s586 = smul.addr %s585, 8
        %s587 = scalar_lea.vmem %s7, %s586
        %s588 = smul.u32 16, %s32
        %p589 = scmp.lt.s32.totalorder %s31, 3
        %s590 = scalar_select %p589, %s31, 3
        %s591 = smul.addr %s590, 28
        %s592 = smul.addr %s591, 4
        %s593 = scalar_lea.vmem %s10, %s592
        %p594 = scmp.lt.s32.totalorder %s31, 3
        %s595 = scalar_select %p594, %s31, 3
        %s596 = smul.addr %s595, 8
        %s597 = scalar_lea.vmem %s11, %s596
        %p598 = scmp.lt.s32.totalorder %s31, 3
        %s599 = scalar_select %p598, %s31, 3
        %s600 = smul.addr %s599, 4
        %s601 = smul.addr %s600, 4
        %s602 = scalar_lea.vmem %s12, %s601
        %v604 = vld [vmem:[%s593] sm:$0xf]
        %v605 = vld [vmem:[%s593 + $0x4] sm:$0xf]
        %v606 = vld [vmem:[%s593 + $0x8] sm:$0xf]
        %v607 = vld [vmem:[%s593 + $0xc] sm:$0xf]
        %s608 = scalar_lea.vmem %s593, 16
        %v609 = vld [vmem:[%s608] sm:$0xf]
        %v610 = vld [vmem:[%s608 + $0x4] sm:$0xf]
        %v611 = vld [vmem:[%s608 + $0x8] sm:$0xf]
        %v612 = vld [vmem:[%s608 + $0xc] sm:$0xf]
        %s613 = scalar_lea.vmem %s593, 32
        %v614 = vld [vmem:[%s613] sm:$0xf]
        %v615 = vld [vmem:[%s613 + $0x4] sm:$0xf]
        %v616 = vld [vmem:[%s613 + $0x8] sm:$0xf]
        %v617 = vld [vmem:[%s613 + $0xc] sm:$0xf]
        %s618 = scalar_lea.vmem %s593, 48
        %v619 = vld [vmem:[%s618] sm:$0xf]
        %v620 = vld [vmem:[%s618 + $0x4] sm:$0xf]
        %v621 = vld [vmem:[%s618 + $0x8] sm:$0xf]
        %v622 = vld [vmem:[%s618 + $0xc] sm:$0xf]
        %s623 = scalar_lea.vmem %s593, 64
        %v624 = vld [vmem:[%s623] sm:$0xf]
        %v625 = vld [vmem:[%s623 + $0x4] sm:$0xf]
        %v626 = vld [vmem:[%s623 + $0x8] sm:$0xf]
        %v627 = vld [vmem:[%s623 + $0xc] sm:$0xf]
        %s628 = scalar_lea.vmem %s593, 80
        %v629 = vld [vmem:[%s628] sm:$0xf]
        %v630 = vld [vmem:[%s628 + $0x4] sm:$0xf]
        %v631 = vld [vmem:[%s628 + $0x8] sm:$0xf]
        %v632 = vld [vmem:[%s628 + $0xc] sm:$0xf]
        %s633 = scalar_lea.vmem %s593, 96
        %v634 = vld [vmem:[%s633] sm:$0xf]
        %v635 = vld [vmem:[%s633 + $0x4] sm:$0xf]
        %v636 = vld [vmem:[%s633 + $0x8] sm:$0xf]
        %v637 = vld [vmem:[%s633 + $0xc] sm:$0xf]
        %v638 = vld [vmem:[%s597] sm:$0x3f]
        %v639 = vld [vmem:[%s602] sm:$0xf]
        %v640 = vld [vmem:[%s602 + $0x4] sm:$0xf]
        %v641 = vld [vmem:[%s602 + $0x8] sm:$0xf]
        %v642 = vld [vmem:[%s602 + $0xc] sm:$0xf]
        %p643 = scmp.eq.s32.totalorder %s31, 0
        %p644 = scmp.eq.s32.totalorder %s32, 0
        %p645 = pnand %p643, %p644
        %p646 = pneg %p645
        // Predicated region
        $region73: #{tpu_custom_call.1} parent=71 // pred_check
          _
        $region74: #{tpu_custom_call.1} parent=71 // pred_check_branch
          %648 = sbr.rel (%p645) target = $region76
        $region75: #{tpu_custom_call.1} parent=71 // pred_region
          %v649 = vld [vmem:[%s0] sm:$0xff]
          %v650 = vld [vmem:[%s0 + $0x8] sm:$0xff]
          %v651 = vld [vmem:[%s0 + $0x10] sm:$0xff]
          %v652 = vpack.c.bf16 %v650, %v649
          %v653 = vpack.c.bf16 %v651, %v651
          %v654 = vld [vmem:[%s8] sm:$0x3]
          %v655 = vld [vmem:[%s9] sm:$0x1]
          %v657 = vlaneseq
          %v658 = vshrl.u32 %v657, 7
          %v659 = vsub.s32 0, %v658
          %v660 = vrot.slane %v655, %v659
          %vm662 = vcmask 31744
          %v664 = vsel %vm662, %v652, 0
          %v667 = vsel %vm662, %v653, 0
          %vm669 = vcmask 1041408
          %v671 = vsel %vm669, %v654, 0
          %673 = vmatprep.subr.bf16.mxu0 0
          %674 = vmatpush1.bf16.msra.mxu0 %v671
          %675 = vmatprep.subr.bf16.mxu0 0
          %676 = vmatpush1.bf16.msra.mxu0 0
          %677 = vmatprep.subr.bf16.mxu0 0
          %678 = vmatpush1.bf16.msra.mxu0 0
          %679 = vmatprep.subr.bf16.mxu0 0
          %680 = vmatpush1.bf16.msra.mxu0 0
          %681 = vmatprep.subr.bf16.mxu0 0
          %682 = vmatpush1.bf16.msra.mxu0 0
          %683 = vmatprep.subr.bf16.mxu0 0
          %684 = vmatpush1.bf16.msra.mxu0 0
          %685 = vmatprep.subr.bf16.mxu0 0
          %686 = vmatpush1.bf16.msra.mxu0 0
          %687 = vmatprep.subr.bf16.mxu0 0
          %688 = vmatpush1.bf16.msra.mxu0 0
          %689 = vmatprep.subr.bf16.mxu0 0
          %690 = vmatpush1.bf16.msra.mxu0 0
          %691 = vmatprep.subr.bf16.mxu0 0
          %692 = vmatpush1.bf16.msra.mxu0 0
          %693 = vmatprep.subr.bf16.mxu0 0
          %694 = vmatpush1.bf16.msra.mxu0 0
          %695 = vmatprep.subr.bf16.mxu0 0
          %696 = vmatpush1.bf16.msra.mxu0 0
          %697 = vmatprep.subr.bf16.mxu0 0
          %698 = vmatpush1.bf16.msra.mxu0 0
          %699 = vmatprep.subr.bf16.mxu0 0
          %700 = vmatpush1.bf16.msra.mxu0 0
          %701 = vmatprep.subr.bf16.mxu0 0
          %702 = vmatpush1.bf16.msra.mxu0 0
          %703 = vmatprep.subr.bf16.mxu0 0
          %704 = vmatpush1.bf16.msra.mxu0 0
          %705 = vmatprep.mubr.bf16.mxu0 0
          %706 = vmatmul.mubr.bf16.gmra.mrb[0].mxu0 %v664
          %v707 = vpop.f32.mrb[0].mxu0
          %v708 = vadd.f32 %v660, %v707
          %v709 = vpop.f32.mrb[0].mxu0
          %v710 = vpop.f32.mrb[0].mxu0
          %v711 = vadd.f32 %v660, %v710
          %v712 = vpop.f32.mrb[0].mxu0
          %713 = vmatprep.mubr.bf16.mxu0 0
          %714 = vmatmul.mubr.bf16.gmra.mrb[0].mxu0 %v667
          %v715 = vpop.f32.mrb[0].mxu0
          %v716 = vadd.f32 %v660, %v715
          %v717 = vpop.f32.mrb[0].mxu0
          %v718 = vpop.f32.mrb[0].mxu0
          %v719 = vpop.f32.mrb[0].mxu0
          %720 = vdwg.mxu0
          %vm721 = vcmask 261120
          %722 = vst.msk [vmem:[#allocation2] sm:$0xff] %vm721, %v708
          %723 = vst.msk [vmem:[#allocation2 + $0x8] sm:$0xff] %vm721, %v711
          %724 = vst.msk [vmem:[#allocation2 + $0x10] sm:$0xff] %vm721, %v716
        $region76: #{tpu_custom_call.1} parent=71 // pred_fallthru
          _
        // Predicated region
        $region77: #{tpu_custom_call.1} parent=71 // pred_check
          %p725 = pneg %p644
        $region78: #{tpu_custom_call.1} parent=71 // pred_check_branch
          %727 = sbr.rel (%p725) target = $region80
        $region79: #{tpu_custom_call.1} parent=71 // pred_region
          %v728 = vld [vmem:[#allocation2] sm:$0xff]
          %v729 = vld [vmem:[#allocation2 + $0x8] sm:$0xff]
          %v730 = vld [vmem:[#allocation2 + $0x10] sm:$0xff]
          %v731 = vpack.c.bf16 %v729, %v728
          %v732 = vpack.c.bf16 %v730, %v730
          %v737 = vunpack.c.l.b16 %v604
          %v738 = vunpack.c.l.b16 %v605
          %v739 = vunpack.c.l.b16 %v606
          %v740 = vunpack.c.l.b16 %v607
          %v741 = vpack.c.b16 %v738, %v737
          %v742 = vpack.c.b16 %v740, %v739
          %vm745 = vcmask 261120
          %v747 = vsel %vm745, %v731, 0
          %v750 = vsel %vm745, %v732, 0
          %752 = vmatprep.subr.bf16.mxu0 0
          %753 = vmatpush1.bf16.msra.mxu0 %v741
          %754 = vmatprep.subr.bf16.mxu0 0
          %755 = vmatpush1.bf16.msra.mxu0 %v742
          %756 = vmatprep.subr.bf16.mxu0 0
          %757 = vmatpush1.bf16.msra.mxu0 0
          %758 = vmatprep.subr.bf16.mxu0 0
          %759 = vmatpush1.bf16.msra.mxu0 0
          %760 = vmatprep.subr.bf16.mxu0 0
          %761 = vmatpush1.bf16.msra.mxu0 0
          %762 = vmatprep.subr.bf16.mxu0 0
          %763 = vmatpush1.bf16.msra.mxu0 0
          %764 = vmatprep.subr.bf16.mxu0 0
          %765 = vmatpush1.bf16.msra.mxu0 0
          %766 = vmatprep.subr.bf16.mxu0 0
          %767 = vmatpush1.bf16.msra.mxu0 0
          %768 = vmatprep.subr.bf16.mxu0 0
          %769 = vmatpush1.bf16.msra.mxu0 0
          %770 = vmatprep.subr.bf16.mxu0 0
          %771 = vmatpush1.bf16.msra.mxu0 0
          %772 = vmatprep.subr.bf16.mxu0 0
          %773 = vmatpush1.bf16.msra.mxu0 0
          %774 = vmatprep.subr.bf16.mxu0 0
          %775 = vmatpush1.bf16.msra.mxu0 0
          %776 = vmatprep.subr.bf16.mxu0 0
          %777 = vmatpush1.bf16.msra.mxu0 0
          %778 = vmatprep.subr.bf16.mxu0 0
          %779 = vmatpush1.bf16.msra.mxu0 0
          %780 = vmatprep.subr.bf16.mxu0 0
          %781 = vmatpush1.bf16.msra.mxu0 0
          %782 = vmatprep.subr.bf16.mxu0 0
          %783 = vmatpush1.bf16.msra.mxu0 0
          %784 = vmatprep.mubr.bf16.mxu0 0
          %785 = vmatmul.mubr.bf16.gmra.mrb[0].mxu0 %v747
          %v786 = vpop.f32.mrb[0].mxu0
          %v787 = vadd.f32 0.0, %v786
          %v788 = vpop.f32.mrb[0].mxu0
          %v789 = vpop.f32.mrb[0].mxu0
          %v790 = vadd.f32 0.0, %v789
          %v791 = vpop.f32.mrb[0].mxu0
          %792 = vmatprep.mubr.bf16.mxu0 0
          %793 = vmatmul.mubr.bf16.gmra.mrb[0].mxu0 %v750
          %v794 = vpop.f32.mrb[0].mxu0
          %v795 = vadd.f32 0.0, %v794
          %v796 = vpop.f32.mrb[0].mxu0
          %v797 = vpop.f32.mrb[0].mxu0
          %v798 = vpop.f32.mrb[0].mxu0
          %799 = vdwg.mxu0
          %v800 = vpack.c.bf16 %v790, %v787
          %v801 = vpack.c.bf16 %v795, %v795
          %v804 = vunpack.c.l.b16 %v800
          %v805 = vunpack.c.h.b16 %v800
          %v806 = vunpack.c.l.b16 %v801
          %v807 = vpack.c.b16 %v804, %v804
          %v808 = vpack.c.b16 %v805, %v805
          %v809 = vpack.c.b16 %v806, %v806
          %vm813 = vcmask 257024
          %814 = vst.msk [vmem:[#allocation3] sm:$0xf] %vm813, %v807
          %815 = vst.msk [vmem:[#allocation3 + $0x4] sm:$0xf] %vm813, %v808
          %816 = vst.msk [vmem:[#allocation3 + $0x8] sm:$0xf] %vm813, %v809
          %v821 = vunpack.c.l.b16 %v609
          %v822 = vunpack.c.l.b16 %v610
          %v823 = vunpack.c.l.b16 %v611
          %v824 = vunpack.c.l.b16 %v612
          %v825 = vpack.c.b16 %v822, %v821
          %v826 = vpack.c.b16 %v824, %v823
          %829 = vmatprep.subr.bf16.mxu0 0
          %830 = vmatpush1.bf16.msra.mxu0 %v825
          %831 = vmatprep.subr.bf16.mxu0 0
          %832 = vmatpush1.bf16.msra.mxu0 %v826
          %833 = vmatprep.subr.bf16.mxu0 0
          %834 = vmatpush1.bf16.msra.mxu0 0
          %835 = vmatprep.subr.bf16.mxu0 0
          %836 = vmatpush1.bf16.msra.mxu0 0
          %837 = vmatprep.subr.bf16.mxu0 0
          %838 = vmatpush1.bf16.msra.mxu0 0
          %839 = vmatprep.subr.bf16.mxu0 0
          %840 = vmatpush1.bf16.msra.mxu0 0
          %841 = vmatprep.subr.bf16.mxu0 0
          %842 = vmatpush1.bf16.msra.mxu0 0
          %843 = vmatprep.subr.bf16.mxu0 0
          %844 = vmatpush1.bf16.msra.mxu0 0
          %845 = vmatprep.subr.bf16.mxu0 0
          %846 = vmatpush1.bf16.msra.mxu0 0
          %847 = vmatprep.subr.bf16.mxu0 0
          %848 = vmatpush1.bf16.msra.mxu0 0
          %849 = vmatprep.subr.bf16.mxu0 0
          %850 = vmatpush1.bf16.msra.mxu0 0
          %851 = vmatprep.subr.bf16.mxu0 0
          %852 = vmatpush1.bf16.msra.mxu0 0
          %853 = vmatprep.subr.bf16.mxu0 0
          %854 = vmatpush1.bf16.msra.mxu0 0
          %855 = vmatprep.subr.bf16.mxu0 0
          %856 = vmatpush1.bf16.msra.mxu0 0
          %857 = vmatprep.subr.bf16.mxu0 0
          %858 = vmatpush1.bf16.msra.mxu0 0
          %859 = vmatprep.subr.bf16.mxu0 0
          %860 = vmatpush1.bf16.msra.mxu0 0
          %861 = vmatprep.mubr.bf16.mxu0 0
          %862 = vmatmul.mubr.bf16.gmra.mrb[0].mxu0 %v747
          %v863 = vpop.f32.mrb[0].mxu0
          %v864 = vadd.f32 0.0, %v863
          %v865 = vpop.f32.mrb[0].mxu0
          %v866 = vpop.f32.mrb[0].mxu0
          %v867 = vadd.f32 0.0, %v866
          %v868 = vpop.f32.mrb[0].mxu0
          %869 = vmatprep.mubr.bf16.mxu0 0
          %870 = vmatmul.mubr.bf16.gmra.mrb[0].mxu0 %v750
          %v871 = vpop.f32.mrb[0].mxu0
          %v872 = vadd.f32 0.0, %v871
          %v873 = vpop.f32.mrb[0].mxu0
          %v874 = vpop.f32.mrb[0].mxu0
          %v875 = vpop.f32.mrb[0].mxu0
          %876 = vdwg.mxu0
          %v877 = vpack.c.bf16 %v867, %v864
          %v878 = vpack.c.bf16 %v872, %v872
          %v881 = vunpack.c.l.b16 %v877
          %v882 = vunpack.c.h.b16 %v877
          %v883 = vunpack.c.l.b16 %v878
          %v884 = vpack.c.b16 %v881, %v881
          %v885 = vpack.c.b16 %v882, %v882
          %v886 = vpack.c.b16 %v883, %v883
          %890 = vst.msk [vmem:[#allocation4] sm:$0xf] %vm813, %v884
          %891 = vst.msk [vmem:[#allocation4 + $0x4] sm:$0xf] %vm813, %v885
          %892 = vst.msk [vmem:[#allocation4 + $0x8] sm:$0xf] %vm813, %v886
          %893 = vst.msk [vmem:[#allocation5] sm:$0xff] %vm745, 0.0
          %894 = vst.msk [vmem:[#allocation5 + $0x8] sm:$0xff] %vm745, 0.0
          %895 = vst.msk [vmem:[#allocation5 + $0x10] sm:$0xff] %vm745, 0.0
          %vm896 = vcmask 23552
          %897 = vst.msk [vmem:[#allocation6] sm:$0xff] %vm896, 0.0
          %898 = vst.msk [vmem:[#allocation6 + $0x8] sm:$0xff] %vm896, 0.0
          %899 = vst.msk [vmem:[#allocation6 + $0x10] sm:$0xff] %vm896, 0.0
        $region80: #{tpu_custom_call.1} parent=71 // pred_fallthru
          _
        %v900 = vlaneseq
        %v901 = vand.u32 %v900, 127
        %v902 = vlaneseq
        %v903 = vshrl.u32 %v902, 7
        %v904 = vadd.s32 %v903, 8
        %v905 = vadd.s32 %v903, 16
        %v906 = vld [vmem:[%s566] sm:$0xff]
        %v907 = vld [vmem:[%s566 + $0x8] sm:$0xff]
        %v908 = vld [vmem:[%s566 + $0x10] sm:$0xff]
        %v909 = vld [vmem:[%s566 + $0x18] sm:$0xff]
        %v910 = vld [vmem:[%s566 + $0x20] sm:$0xff]
        %v911 = vld [vmem:[%s566 + $0x28] sm:$0xff]
        %v912 = vld [vmem:[%s566 + $0x30] sm:$0xff]
        %v913 = vld [vmem:[%s566 + $0x38] sm:$0xff]
        %v914 = vld [vmem:[%s566 + $0x40] sm:$0xff]
        %v915 = vld [vmem:[%s566 + $0x48] sm:$0xff]
        %v916 = vld [vmem:[%s566 + $0x50] sm:$0xff]
        %v917 = vld [vmem:[%s566 + $0x58] sm:$0xff]
        %v918 = vld [vmem:[%s566 + $0x60] sm:$0xff]
        %v919 = vld [vmem:[%s566 + $0x68] sm:$0xff]
        %v920 = vld [vmem:[%s566 + $0x70] sm:$0xff]
        %v921 = vld [vmem:[%s566 + $0x78] sm:$0xff]
        %922 = vset.pattern.permute.xlu0 0
        %923 = vperm.xlu0 %922, %v906
        %v924 = vpop.permute.xlu0 %923
        %925 = vset.pattern.permute.xlu0 0
        %926 = vperm.xlu0 %925, %v907
        %v927 = vpop.permute.xlu0 %926
        %928 = vset.pattern.permute.xlu0 0
        %929 = vperm.xlu0 %928, %v908
        %v930 = vpop.permute.xlu0 %929
        %931 = vset.pattern.permute.xlu0 0
        %932 = vperm.xlu0 %931, %v909
        %v933 = vpop.permute.xlu0 %932
        %934 = vset.pattern.permute.xlu0 0
        %935 = vperm.xlu0 %934, %v910
        %v936 = vpop.permute.xlu0 %935
        %937 = vset.pattern.permute.xlu0 0
        %938 = vperm.xlu0 %937, %v911
        %v939 = vpop.permute.xlu0 %938
        %940 = vset.pattern.permute.xlu0 0
        %941 = vperm.xlu0 %940, %v912
        %v942 = vpop.permute.xlu0 %941
        %943 = vset.pattern.permute.xlu0 0
        %944 = vperm.xlu0 %943, %v913
        %v945 = vpop.permute.xlu0 %944
        %946 = vset.pattern.permute.xlu0 0
        %947 = vperm.xlu0 %946, %v914
        %v948 = vpop.permute.xlu0 %947
        %949 = vset.pattern.permute.xlu0 0
        %950 = vperm.xlu0 %949, %v915
        %v951 = vpop.permute.xlu0 %950
        %952 = vset.pattern.permute.xlu0 0
        %953 = vperm.xlu0 %952, %v916
        %v954 = vpop.permute.xlu0 %953
        %955 = vset.pattern.permute.xlu0 0
        %956 = vperm.xlu0 %955, %v917
        %v957 = vpop.permute.xlu0 %956
        %958 = vset.pattern.permute.xlu0 0
        %959 = vperm.xlu0 %958, %v918
        %v960 = vpop.permute.xlu0 %959
        %961 = vset.pattern.permute.xlu0 0
        %962 = vperm.xlu0 %961, %v919
        %v963 = vpop.permute.xlu0 %962
        %964 = vset.pattern.permute.xlu0 0
        %965 = vperm.xlu0 %964, %v920
        %v966 = vpop.permute.xlu0 %965
        %967 = vset.pattern.permute.xlu0 0
        %968 = vperm.xlu0 %967, %v921
        %v969 = vpop.permute.xlu0 %968
        %vm970 = vcmp.eq.s32.totalorder %v924, %v901
        %vm971 = vcmp.eq.s32.totalorder %v927, %v901
        %vm972 = vcmp.eq.s32.totalorder %v930, %v901
        %vm973 = vcmp.eq.s32.totalorder %v933, %v901
        %vm974 = vcmp.eq.s32.totalorder %v936, %v901
        %vm975 = vcmp.eq.s32.totalorder %v939, %v901
        %vm976 = vcmp.eq.s32.totalorder %v942, %v901
        %vm977 = vcmp.eq.s32.totalorder %v945, %v901
        %vm978 = vcmp.eq.s32.totalorder %v948, %v901
        %vm979 = vcmp.eq.s32.totalorder %v951, %v901
        %vm980 = vcmp.eq.s32.totalorder %v954, %v901
        %vm981 = vcmp.eq.s32.totalorder %v957, %v901
        %vm982 = vcmp.eq.s32.totalorder %v960, %v901
        %vm983 = vcmp.eq.s32.totalorder %v963, %v901
        %vm984 = vcmp.eq.s32.totalorder %v966, %v901
        %vm985 = vcmp.eq.s32.totalorder %v969, %v901
        %v986 = vsel %vm970, 1.0, 0.0
        %v987 = vsel %vm971, 1.0, 0.0
        %v988 = vsel %vm972, 1.0, 0.0
        %v989 = vsel %vm973, 1.0, 0.0
        %v990 = vsel %vm974, 1.0, 0.0
        %v991 = vsel %vm975, 1.0, 0.0
        %v992 = vsel %vm976, 1.0, 0.0
        %v993 = vsel %vm977, 1.0, 0.0
        %v994 = vsel %vm978, 1.0, 0.0
        %v995 = vsel %vm979, 1.0, 0.0
        %v996 = vsel %vm980, 1.0, 0.0
        %v997 = vsel %vm981, 1.0, 0.0
        %v998 = vsel %vm982, 1.0, 0.0
        %v999 = vsel %vm983, 1.0, 0.0
        %v1000 = vsel %vm984, 1.0, 0.0
        %v1001 = vsel %vm985, 1.0, 0.0
        %v1002 = vpack.c.bf16 %v987, %v986
        %v1003 = vpack.c.bf16 %v989, %v988
        %v1004 = vpack.c.bf16 %v991, %v990
        %v1005 = vpack.c.bf16 %v993, %v992
        %v1006 = vpack.c.bf16 %v995, %v994
        %v1007 = vpack.c.bf16 %v997, %v996
        %v1008 = vpack.c.bf16 %v999, %v998
        %v1009 = vpack.c.bf16 %v1001, %v1000
        %v1010 = vld [vmem:[%s572] sm:$0xff]
        %v1011 = vld [vmem:[%s572 + $0x8] sm:$0xff]
        %v1012 = vld [vmem:[%s572 + $0x10] sm:$0xff]
        %v1013 = vld [vmem:[%s572 + $0x18] sm:$0xff]
        %v1014 = vld [vmem:[%s572 + $0x20] sm:$0xff]
        %v1015 = vld [vmem:[%s572 + $0x28] sm:$0xff]
        %v1016 = vld [vmem:[%s572 + $0x30] sm:$0xff]
        %v1017 = vld [vmem:[%s572 + $0x38] sm:$0xff]
        %v1018 = vld [vmem:[%s572 + $0x40] sm:$0xff]
        %v1019 = vld [vmem:[%s572 + $0x48] sm:$0xff]
        %v1020 = vld [vmem:[%s572 + $0x50] sm:$0xff]
        %v1021 = vld [vmem:[%s572 + $0x58] sm:$0xff]
        %v1022 = vld [vmem:[%s572 + $0x60] sm:$0xff]
        %v1023 = vld [vmem:[%s572 + $0x68] sm:$0xff]
        %v1024 = vld [vmem:[%s572 + $0x70] sm:$0xff]
        %v1025 = vld [vmem:[%s572 + $0x78] sm:$0xff]
        %1026 = vset.pattern.permute.xlu0 0
        %1027 = vperm.xlu0 %1026, %v1010
        %v1028 = vpop.permute.xlu0 %1027
        %1029 = vset.pattern.permute.xlu0 0
        %1030 = vperm.xlu0 %1029, %v1011
        %v1031 = vpop.permute.xlu0 %1030
        %1032 = vset.pattern.permute.xlu0 0
        %1033 = vperm.xlu0 %1032, %v1012
        %v1034 = vpop.permute.xlu0 %1033
        %1035 = vset.pattern.permute.xlu0 0
        %1036 = vperm.xlu0 %1035, %v1013
        %v1037 = vpop.permute.xlu0 %1036
        %1038 = vset.pattern.permute.xlu0 0
        %1039 = vperm.xlu0 %1038, %v1014
        %v1040 = vpop.permute.xlu0 %1039
        %1041 = vset.pattern.permute.xlu0 0
        %1042 = vperm.xlu0 %1041, %v1015
        %v1043 = vpop.permute.xlu0 %1042
        %1044 = vset.pattern.permute.xlu0 0
        %1045 = vperm.xlu0 %1044, %v1016
        %v1046 = vpop.permute.xlu0 %1045
        %1047 = vset.pattern.permute.xlu0 0
        %1048 = vperm.xlu0 %1047, %v1017
        %v1049 = vpop.permute.xlu0 %1048
        %1050 = vset.pattern.permute.xlu0 0
        %1051 = vperm.xlu0 %1050, %v1018
        %v1052 = vpop.permute.xlu0 %1051
        %1053 = vset.pattern.permute.xlu0 0
        %1054 = vperm.xlu0 %1053, %v1019
        %v1055 = vpop.permute.xlu0 %1054
        %1056 = vset.pattern.permute.xlu0 0
        %1057 = vperm.xlu0 %1056, %v1020
        %v1058 = vpop.permute.xlu0 %1057
        %1059 = vset.pattern.permute.xlu0 0
        %1060 = vperm.xlu0 %1059, %v1021
        %v1061 = vpop.permute.xlu0 %1060
        %1062 = vset.pattern.permute.xlu0 0
        %1063 = vperm.xlu0 %1062, %v1022
        %v1064 = vpop.permute.xlu0 %1063
        %1065 = vset.pattern.permute.xlu0 0
        %1066 = vperm.xlu0 %1065, %v1023
        %v1067 = vpop.permute.xlu0 %1066
        %1068 = vset.pattern.permute.xlu0 0
        %1069 = vperm.xlu0 %1068, %v1024
        %v1070 = vpop.permute.xlu0 %1069
        %1071 = vset.pattern.permute.xlu0 0
        %1072 = vperm.xlu0 %1071, %v1025
        %v1073 = vpop.permute.xlu0 %1072
        %vm1074 = vcmp.eq.s32.totalorder %v1028, %v901
        %vm1075 = vcmp.eq.s32.totalorder %v1031, %v901
        %vm1076 = vcmp.eq.s32.totalorder %v1034, %v901
        %vm1077 = vcmp.eq.s32.totalorder %v1037, %v901
        %vm1078 = vcmp.eq.s32.totalorder %v1040, %v901
        %vm1079 = vcmp.eq.s32.totalorder %v1043, %v901
        %vm1080 = vcmp.eq.s32.totalorder %v1046, %v901
        %vm1081 = vcmp.eq.s32.totalorder %v1049, %v901
        %vm1082 = vcmp.eq.s32.totalorder %v1052, %v901
        %vm1083 = vcmp.eq.s32.totalorder %v1055, %v901
        %vm1084 = vcmp.eq.s32.totalorder %v1058, %v901
        %vm1085 = vcmp.eq.s32.totalorder %v1061, %v901
        %vm1086 = vcmp.eq.s32.totalorder %v1064, %v901
        %vm1087 = vcmp.eq.s32.totalorder %v1067, %v901
        %vm1088 = vcmp.eq.s32.totalorder %v1070, %v901
        %vm1089 = vcmp.eq.s32.totalorder %v1073, %v901
        %v1090 = vsel %vm1074, 1.0, 0.0
        %v1091 = vsel %vm1075, 1.0, 0.0
        %v1092 = vsel %vm1076, 1.0, 0.0
        %v1093 = vsel %vm1077, 1.0, 0.0
        %v1094 = vsel %vm1078, 1.0, 0.0
        %v1095 = vsel %vm1079, 1.0, 0.0
        %v1096 = vsel %vm1080, 1.0, 0.0
        %v1097 = vsel %vm1081, 1.0, 0.0
        %v1098 = vsel %vm1082, 1.0, 0.0
        %v1099 = vsel %vm1083, 1.0, 0.0
        %v1100 = vsel %vm1084, 1.0, 0.0
        %v1101 = vsel %vm1085, 1.0, 0.0
        %v1102 = vsel %vm1086, 1.0, 0.0
        %v1103 = vsel %vm1087, 1.0, 0.0
        %v1104 = vsel %vm1088, 1.0, 0.0
        %v1105 = vsel %vm1089, 1.0, 0.0
        %v1106 = vpack.c.bf16 %v1091, %v1090
        %v1107 = vpack.c.bf16 %v1093, %v1092
        %v1108 = vpack.c.bf16 %v1095, %v1094
        %v1109 = vpack.c.bf16 %v1097, %v1096
        %v1110 = vpack.c.bf16 %v1099, %v1098
        %v1111 = vpack.c.bf16 %v1101, %v1100
        %v1112 = vpack.c.bf16 %v1103, %v1102
        %v1113 = vpack.c.bf16 %v1105, %v1104
        %v1114 = vld [vmem:[%s576] sm:$0x1]
        %v1115 = vlaneseq
        %v1116 = vshrl.u32 %v1115, 7
        %v1117 = vsub.s32 0, %v1116
        %v1118 = vrot.slane %v1114, %v1117
        %vm1119 = vcmp.eq.s32.totalorder %v1118, %v903
        %vm1120 = vcmp.eq.s32.totalorder %v1118, %v904
        %vm1121 = vcmp.eq.s32.totalorder %v1118, %v905
        %v1122 = vsel %vm1119, 1.0, 0.0
        %v1123 = vsel %vm1120, 1.0, 0.0
        %v1124 = vsel %vm1121, 1.0, 0.0
        %v1125 = vpack.c.bf16 %v1123, %v1122
        %v1126 = vpack.c.bf16 %v1124, %v1124
        %v1127 = vld [vmem:[%s581] sm:$0xff]
        %v1128 = vld [vmem:[%s581 + $0x8] sm:$0xff]
        %v1129 = vld [vmem:[%s581 + $0x10] sm:$0xff]
        %v1130 = vld [vmem:[%s581 + $0x18] sm:$0xff]
        %v1131 = vld [vmem:[%s581 + $0x20] sm:$0xff]
        %v1132 = vld [vmem:[%s581 + $0x28] sm:$0xff]
        %v1133 = vld [vmem:[%s581 + $0x30] sm:$0xff]
        %v1134 = vld [vmem:[%s581 + $0x38] sm:$0xff]
        %v1135 = vld [vmem:[%s581 + $0x40] sm:$0xff]
        %v1136 = vld [vmem:[%s581 + $0x48] sm:$0xff]
        %v1137 = vld [vmem:[%s581 + $0x50] sm:$0xff]
        %v1138 = vld [vmem:[%s581 + $0x58] sm:$0xff]
        %v1139 = vld [vmem:[%s581 + $0x60] sm:$0xff]
        %v1140 = vld [vmem:[%s581 + $0x68] sm:$0xff]
        %v1141 = vld [vmem:[%s581 + $0x70] sm:$0xff]
        %v1142 = vld [vmem:[%s581 + $0x78] sm:$0xff]
        %v1143 = vld [vmem:[%s587] sm:$0xff]
        %v1144 = vld [vmem:[%s587 + $0x8] sm:$0xff]
        %v1145 = vld [vmem:[%s587 + $0x10] sm:$0xff]
        %v1146 = vld [vmem:[%s587 + $0x18] sm:$0xff]
        %v1147 = vld [vmem:[%s587 + $0x20] sm:$0xff]
        %v1148 = vld [vmem:[%s587 + $0x28] sm:$0xff]
        %v1149 = vld [vmem:[%s587 + $0x30] sm:$0xff]
        %v1150 = vld [vmem:[%s587 + $0x38] sm:$0xff]
        %v1151 = vld [vmem:[%s587 + $0x40] sm:$0xff]
        %v1152 = vld [vmem:[%s587 + $0x48] sm:$0xff]
        %v1153 = vld [vmem:[%s587 + $0x50] sm:$0xff]
        %v1154 = vld [vmem:[%s587 + $0x58] sm:$0xff]
        %v1155 = vld [vmem:[%s587 + $0x60] sm:$0xff]
        %v1156 = vld [vmem:[%s587 + $0x68] sm:$0xff]
        %v1157 = vld [vmem:[%s587 + $0x70] sm:$0xff]
        %v1158 = vld [vmem:[%s587 + $0x78] sm:$0xff]
        %v1159 = vld [vmem:[#allocation3] sm:$0xf]
        %v1160 = vld [vmem:[#allocation3 + $0x4] sm:$0xf]
        %v1161 = vld [vmem:[#allocation3 + $0x8] sm:$0xf]
        %v1162 = vld [vmem:[#allocation4] sm:$0xf]
        %v1163 = vld [vmem:[#allocation4 + $0x4] sm:$0xf]
        %v1164 = vld [vmem:[#allocation4 + $0x8] sm:$0xf]
        %v1168 = vunpack.c.l.b16 %v1162
        %v1169 = vunpack.c.l.b16 %v1163
        %v1170 = vunpack.c.l.b16 %v1164
        %v1171 = vpack.c.b16 %v1169, %v1168
        %v1172 = vpack.c.b16 %v1170, %v1170
        %vm1174 = vcmask 195584
        %v1176 = vsel %vm1174, %v1106, 0
        %v1179 = vsel %vm1174, %v1107, 0
        %v1182 = vsel %vm1174, %v1108, 0
        %v1185 = vsel %vm1174, %v1109, 0
        %v1188 = vsel %vm1174, %v1110, 0
        %v1191 = vsel %vm1174, %v1111, 0
        %v1194 = vsel %vm1174, %v1112, 0
        %v1197 = vsel %vm1174, %v1113, 0
        %vm1199 = vcmask 1043456
        %v1201 = vsel %vm1199, %v1172, 0
        %1203 = vmatprep.subr.bf16.mxu0 0
        %1204 = vmatpush1.bf16.msra.mxu0 %v1171
        %1205 = vmatprep.subr.bf16.mxu0 0
        %1206 = vmatpush1.bf16.msra.mxu0 %v1201
        %1207 = vmatprep.subr.bf16.mxu0 0
        %1208 = vmatpush1.bf16.msra.mxu0 0
        %1209 = vmatprep.subr.bf16.mxu0 0
        %1210 = vmatpush1.bf16.msra.mxu0 0
        %1211 = vmatprep.subr.bf16.mxu0 0
        %1212 = vmatpush1.bf16.msra.mxu0 0
        %1213 = vmatprep.subr.bf16.mxu0 0
        %1214 = vmatpush1.bf16.msra.mxu0 0
        %1215 = vmatprep.subr.bf16.mxu0 0
        %1216 = vmatpush1.bf16.msra.mxu0 0
        %1217 = vmatprep.subr.bf16.mxu0 0
        %1218 = vmatpush1.bf16.msra.mxu0 0
        %1219 = vmatprep.subr.bf16.mxu0 0
        %1220 = vmatpush1.bf16.msra.mxu0 0
        %1221 = vmatprep.subr.bf16.mxu0 0
        %1222 = vmatpush1.bf16.msra.mxu0 0
        %1223 = vmatprep.subr.bf16.mxu0 0
        %1224 = vmatpush1.bf16.msra.mxu0 0
        %1225 = vmatprep.subr.bf16.mxu0 0
        %1226 = vmatpush1.bf16.msra.mxu0 0
        %1227 = vmatprep.subr.bf16.mxu0 0
        %1228 = vmatpush1.bf16.msra.mxu0 0
        %1229 = vmatprep.subr.bf16.mxu0 0
        %1230 = vmatpush1.bf16.msra.mxu0 0
        %1231 = vmatprep.subr.bf16.mxu0 0
        %1232 = vmatpush1.bf16.msra.mxu0 0
        %1233 = vmatprep.subr.bf16.mxu0 0
        %1234 = vmatpush1.bf16.msra.mxu0 0
        %1235 = vmatprep.mubr.bf16.mxu0 0
        %1236 = vmatmul.mubr.bf16.gmra.mrb[0].mxu0 %v1176
        %v1237 = vpop.f32.mrb[0].mxu0
        %v1238 = vadd.f32 0.0, %v1237
        %v1239 = vpop.f32.mrb[0].mxu0
        %v1240 = vpop.f32.mrb[0].mxu0
        %v1241 = vadd.f32 0.0, %v1240
        %v1242 = vpop.f32.mrb[0].mxu0
        %1243 = vmatprep.mubr.bf16.mxu0 0
        %1244 = vmatmul.mubr.bf16.gmra.mrb[0].mxu0 %v1179
        %v1245 = vpop.f32.mrb[0].mxu0
        %v1246 = vadd.f32 0.0, %v1245
        %v1247 = vpop.f32.mrb[0].mxu0
        %v1248 = vpop.f32.mrb[0].mxu0
        %v1249 = vadd.f32 0.0, %v1248
        %v1250 = vpop.f32.mrb[0].mxu0
        %1251 = vmatprep.mubr.bf16.mxu0 0
        %1252 = vmatmul.mubr.bf16.gmra.mrb[0].mxu0 %v1182
        %v1253 = vpop.f32.mrb[0].mxu0
        %v1254 = vadd.f32 0.0, %v1253
        %v1255 = vpop.f32.mrb[0].mxu0
        %v1256 = vpop.f32.mrb[0].mxu0
        %v1257 = vadd.f32 0.0, %v1256
        %v1258 = vpop.f32.mrb[0].mxu0
        %1259 = vmatprep.mubr.bf16.mxu0 0
        %1260 = vmatmul.mubr.bf16.gmra.mrb[0].mxu0 %v1185
        %v1261 = vpop.f32.mrb[0].mxu0
        %v1262 = vadd.f32 0.0, %v1261
        %v1263 = vpop.f32.mrb[0].mxu0
        %v1264 = vpop.f32.mrb[0].mxu0
        %v1265 = vadd.f32 0.0, %v1264
        %v1266 = vpop.f32.mrb[0].mxu0
        %1267 = vmatprep.mubr.bf16.mxu0 0
        %1268 = vmatmul.mubr.bf16.gmra.mrb[0].mxu0 %v1188
        %v1269 = vpop.f32.mrb[0].mxu0
        %v1270 = vadd.f32 0.0, %v1269
        %v1271 = vpop.f32.mrb[0].mxu0
        %v1272 = vpop.f32.mrb[0].mxu0
        %v1273 = vadd.f32 0.0, %v1272
        %v1274 = vpop.f32.mrb[0].mxu0
        %1275 = vmatprep.mubr.bf16.mxu0 0
        %1276 = vmatmul.mubr.bf16.gmra.mrb[0].mxu0 %v1191
        %v1277 = vpop.f32.mrb[0].mxu0
        %v1278 = vadd.f32 0.0, %v1277
        %v1279 = vpop.f32.mrb[0].mxu0
        %v1280 = vpop.f32.mrb[0].mxu0
        %v1281 = vadd.f32 0.0, %v1280
        %v1282 = vpop.f32.mrb[0].mxu0
        %1283 = vmatprep.mubr.bf16.mxu0 0
        %1284 = vmatmul.mubr.bf16.gmra.mrb[0].mxu0 %v1194
        %v1285 = vpop.f32.mrb[0].mxu0
        %v1286 = vadd.f32 0.0, %v1285
        %v1287 = vpop.f32.mrb[0].mxu0
        %v1288 = vpop.f32.mrb[0].mxu0
        %v1289 = vadd.f32 0.0, %v1288
        %v1290 = vpop.f32.mrb[0].mxu0
        %1291 = vmatprep.mubr.bf16.mxu0 0
        %1292 = vmatmul.mubr.bf16.gmra.mrb[0].mxu0 %v1197
        %v1293 = vpop.f32.mrb[0].mxu0
        %v1294 = vadd.f32 0.0, %v1293
        %v1295 = vpop.f32.mrb[0].mxu0
        %v1296 = vpop.f32.mrb[0].mxu0
        %v1297 = vadd.f32 0.0, %v1296
        %v1298 = vpop.f32.mrb[0].mxu0
        %1299 = vdwg.mxu0
        %v1303 = vunpack.c.l.b16 %v1159
        %v1304 = vunpack.c.l.b16 %v1160
        %v1305 = vunpack.c.l.b16 %v1161
        %v1306 = vpack.c.b16 %v1304, %v1303
        %v1307 = vpack.c.b16 %v1305, %v1305
        %v1310 = vsel %vm1174, %v1002, 0
        %v1313 = vsel %vm1174, %v1003, 0
        %v1316 = vsel %vm1174, %v1004, 0
        %v1319 = vsel %vm1174, %v1005, 0
        %v1322 = vsel %vm1174, %v1006, 0
        %v1325 = vsel %vm1174, %v1007, 0
        %v1328 = vsel %vm1174, %v1008, 0
        %v1331 = vsel %vm1174, %v1009, 0
        %v1334 = vsel %vm1199, %v1307, 0
        %1336 = vmatprep.subr.bf16.mxu0 0
        %1337 = vmatpush1.bf16.msra.mxu0 %v1306
        %1338 = vmatprep.subr.bf16.mxu0 0
        %1339 = vmatpush1.bf16.msra.mxu0 %v1334
        %1340 = vmatprep.subr.bf16.mxu0 0
        %1341 = vmatpush1.bf16.msra.mxu0 0
        %1342 = vmatprep.subr.bf16.mxu0 0
        %1343 = vmatpush1.bf16.msra.mxu0 0
        %1344 = vmatprep.subr.bf16.mxu0 0
        %1345 = vmatpush1.bf16.msra.mxu0 0
        %1346 = vmatprep.subr.bf16.mxu0 0
        %1347 = vmatpush1.bf16.msra.mxu0 0
        %1348 = vmatprep.subr.bf16.mxu0 0
        %1349 = vmatpush1.bf16.msra.mxu0 0
        %1350 = vmatprep.subr.bf16.mxu0 0
        %1351 = vmatpush1.bf16.msra.mxu0 0
        %1352 = vmatprep.subr.bf16.mxu0 0
        %1353 = vmatpush1.bf16.msra.mxu0 0
        %1354 = vmatprep.subr.bf16.mxu0 0
        %1355 = vmatpush1.bf16.msra.mxu0 0
        %1356 = vmatprep.subr.bf16.mxu0 0
        %1357 = vmatpush1.bf16.msra.mxu0 0
        %1358 = vmatprep.subr.bf16.mxu0 0
        %1359 = vmatpush1.bf16.msra.mxu0 0
        %1360 = vmatprep.subr.bf16.mxu0 0
        %1361 = vmatpush1.bf16.msra.mxu0 0
        %1362 = vmatprep.subr.bf16.mxu0 0
        %1363 = vmatpush1.bf16.msra.mxu0 0
        %1364 = vmatprep.subr.bf16.mxu0 0
        %1365 = vmatpush1.bf16.msra.mxu0 0
        %1366 = vmatprep.subr.bf16.mxu0 0
        %1367 = vmatpush1.bf16.msra.mxu0 0
        %1368 = vmatprep.mubr.bf16.mxu0 0
        %1369 = vmatmul.mubr.bf16.gmra.mrb[0].mxu0 %v1310
        %v1370 = vpop.f32.mrb[0].mxu0
        %v1371 = vadd.f32 %v1238, %v1370
        %v1372 = vpop.f32.mrb[0].mxu0
        %v1373 = vpop.f32.mrb[0].mxu0
        %v1374 = vadd.f32 %v1241, %v1373
        %v1375 = vpop.f32.mrb[0].mxu0
        %1376 = vmatprep.mubr.bf16.mxu0 0
        %1377 = vmatmul.mubr.bf16.gmra.mrb[0].mxu0 %v1313
        %v1378 = vpop.f32.mrb[0].mxu0
        %v1379 = vadd.f32 %v1246, %v1378
        %v1380 = vpop.f32.mrb[0].mxu0
        %v1381 = vpop.f32.mrb[0].mxu0
        %v1382 = vadd.f32 %v1249, %v1381
        %v1383 = vpop.f32.mrb[0].mxu0
        %1384 = vmatprep.mubr.bf16.mxu0 0
        %1385 = vmatmul.mubr.bf16.gmra.mrb[0].mxu0 %v1316
        %v1386 = vpop.f32.mrb[0].mxu0
        %v1387 = vadd.f32 %v1254, %v1386
        %v1388 = vpop.f32.mrb[0].mxu0
        %v1389 = vpop.f32.mrb[0].mxu0
        %v1390 = vadd.f32 %v1257, %v1389
        %v1391 = vpop.f32.mrb[0].mxu0
        %1392 = vmatprep.mubr.bf16.mxu0 0
        %1393 = vmatmul.mubr.bf16.gmra.mrb[0].mxu0 %v1319
        %v1394 = vpop.f32.mrb[0].mxu0
        %v1395 = vadd.f32 %v1262, %v1394
        %v1396 = vpop.f32.mrb[0].mxu0
        %v1397 = vpop.f32.mrb[0].mxu0
        %v1398 = vadd.f32 %v1265, %v1397
        %v1399 = vpop.f32.mrb[0].mxu0
        %1400 = vmatprep.mubr.bf16.mxu0 0
        %1401 = vmatmul.mubr.bf16.gmra.mrb[0].mxu0 %v1322
        %v1402 = vpop.f32.mrb[0].mxu0
        %v1403 = vadd.f32 %v1270, %v1402
        %v1404 = vpop.f32.mrb[0].mxu0
        %v1405 = vpop.f32.mrb[0].mxu0
        %v1406 = vadd.f32 %v1273, %v1405
        %v1407 = vpop.f32.mrb[0].mxu0
        %1408 = vmatprep.mubr.bf16.mxu0 0
        %1409 = vmatmul.mubr.bf16.gmra.mrb[0].mxu0 %v1325
        %v1410 = vpop.f32.mrb[0].mxu0
        %v1411 = vadd.f32 %v1278, %v1410
        %v1412 = vpop.f32.mrb[0].mxu0
        %v1413 = vpop.f32.mrb[0].mxu0
        %v1414 = vadd.f32 %v1281, %v1413
        %v1415 = vpop.f32.mrb[0].mxu0
        %1416 = vmatprep.mubr.bf16.mxu0 0
        %1417 = vmatmul.mubr.bf16.gmra.mrb[0].mxu0 %v1328
        %v1418 = vpop.f32.mrb[0].mxu0
        %v1419 = vadd.f32 %v1286, %v1418
        %v1420 = vpop.f32.mrb[0].mxu0
        %v1421 = vpop.f32.mrb[0].mxu0
        %v1422 = vadd.f32 %v1289, %v1421
        %v1423 = vpop.f32.mrb[0].mxu0
        %1424 = vmatprep.mubr.bf16.mxu0 0
        %1425 = vmatmul.mubr.bf16.gmra.mrb[0].mxu0 %v1331
        %v1426 = vpop.f32.mrb[0].mxu0
        %v1427 = vadd.f32 %v1294, %v1426
        %v1428 = vpop.f32.mrb[0].mxu0
        %v1429 = vpop.f32.mrb[0].mxu0
        %v1430 = vadd.f32 %v1297, %v1429
        %v1431 = vpop.f32.mrb[0].mxu0
        %1432 = vdwg.mxu0
        %1434 = vset.pattern.permute.xlu0 0
        %1435 = vperm.xlu0 %1434, %v1143
        %v1436 = vpop.permute.xlu0 %1435
        %1439 = vset.pattern.permute.xlu0 0
        %1440 = vperm.xlu0 %1439, %v1144
        %v1441 = vpop.permute.xlu0 %1440
        %1444 = vset.pattern.permute.xlu0 0
        %1445 = vperm.xlu0 %1444, %v1145
        %v1446 = vpop.permute.xlu0 %1445
        %1449 = vset.pattern.permute.xlu0 0
        %1450 = vperm.xlu0 %1449, %v1146
        %v1451 = vpop.permute.xlu0 %1450
        %1454 = vset.pattern.permute.xlu0 0
        %1455 = vperm.xlu0 %1454, %v1147
        %v1456 = vpop.permute.xlu0 %1455
        %1459 = vset.pattern.permute.xlu0 0
        %1460 = vperm.xlu0 %1459, %v1148
        %v1461 = vpop.permute.xlu0 %1460
        %1464 = vset.pattern.permute.xlu0 0
        %1465 = vperm.xlu0 %1464, %v1149
        %v1466 = vpop.permute.xlu0 %1465
        %1469 = vset.pattern.permute.xlu0 0
        %1470 = vperm.xlu0 %1469, %v1150
        %v1471 = vpop.permute.xlu0 %1470
        %1474 = vset.pattern.permute.xlu0 0
        %1475 = vperm.xlu0 %1474, %v1151
        %v1476 = vpop.permute.xlu0 %1475
        %1479 = vset.pattern.permute.xlu0 0
        %1480 = vperm.xlu0 %1479, %v1152
        %v1481 = vpop.permute.xlu0 %1480
        %1484 = vset.pattern.permute.xlu0 0
        %1485 = vperm.xlu0 %1484, %v1153
        %v1486 = vpop.permute.xlu0 %1485
        %1489 = vset.pattern.permute.xlu0 0
        %1490 = vperm.xlu0 %1489, %v1154
        %v1491 = vpop.permute.xlu0 %1490
        %1494 = vset.pattern.permute.xlu0 0
        %1495 = vperm.xlu0 %1494, %v1155
        %v1496 = vpop.permute.xlu0 %1495
        %1499 = vset.pattern.permute.xlu0 0
        %1500 = vperm.xlu0 %1499, %v1156
        %v1501 = vpop.permute.xlu0 %1500
        %1504 = vset.pattern.permute.xlu0 0
        %1505 = vperm.xlu0 %1504, %v1157
        %v1506 = vpop.permute.xlu0 %1505
        %1509 = vset.pattern.permute.xlu0 0
        %1510 = vperm.xlu0 %1509, %v1158
        %v1511 = vpop.permute.xlu0 %1510
        %v1513 = vlaneseq
        %v1514 = vshrl.u32 %v1513, 7
        %v1515 = vsub.s32 1, %v1514
        %v1516 = vrot.slane %v638, %v1515
        %v1517 = vmul.f32 %v1436, %v1516
        %v1518 = vmul.f32 %v1441, %v1516
        %v1519 = vmul.f32 %v1446, %v1516
        %v1520 = vmul.f32 %v1451, %v1516
        %v1521 = vmul.f32 %v1456, %v1516
        %v1522 = vmul.f32 %v1461, %v1516
        %v1523 = vmul.f32 %v1466, %v1516
        %v1524 = vmul.f32 %v1471, %v1516
        %v1525 = vmul.f32 %v1476, %v1516
        %v1526 = vmul.f32 %v1481, %v1516
        %v1527 = vmul.f32 %v1486, %v1516
        %v1528 = vmul.f32 %v1491, %v1516
        %v1529 = vmul.f32 %v1496, %v1516
        %v1530 = vmul.f32 %v1501, %v1516
        %v1531 = vmul.f32 %v1506, %v1516
        %v1532 = vmul.f32 %v1511, %v1516
        %v1533 = vadd.f32 %v1371, %v1517
        %v1534 = vadd.f32 %v1374, %v1518
        %v1535 = vadd.f32 %v1379, %v1519
        %v1536 = vadd.f32 %v1382, %v1520
        %v1537 = vadd.f32 %v1387, %v1521
        %v1538 = vadd.f32 %v1390, %v1522
        %v1539 = vadd.f32 %v1395, %v1523
        %v1540 = vadd.f32 %v1398, %v1524
        %v1541 = vadd.f32 %v1403, %v1525
        %v1542 = vadd.f32 %v1406, %v1526
        %v1543 = vadd.f32 %v1411, %v1527
        %v1544 = vadd.f32 %v1414, %v1528
        %v1545 = vadd.f32 %v1419, %v1529
        %v1546 = vadd.f32 %v1422, %v1530
        %v1547 = vadd.f32 %v1427, %v1531
        %v1548 = vadd.f32 %v1430, %v1532
        %v1549 = vlaneseq
        %v1550 = vshrl.u32 %v1549, 7
        %v1551 = vsub.s32 0, %v1550
        %v1552 = vrot.slane %v638, %v1551
        %v1553 = vadd.f32 %v1533, %v1552
        %v1554 = vadd.f32 %v1534, %v1552
        %v1555 = vadd.f32 %v1535, %v1552
        %v1556 = vadd.f32 %v1536, %v1552
        %v1557 = vadd.f32 %v1537, %v1552
        %v1558 = vadd.f32 %v1538, %v1552
        %v1559 = vadd.f32 %v1539, %v1552
        %v1560 = vadd.f32 %v1540, %v1552
        %v1561 = vadd.f32 %v1541, %v1552
        %v1562 = vadd.f32 %v1542, %v1552
        %v1563 = vadd.f32 %v1543, %v1552
        %v1564 = vadd.f32 %v1544, %v1552
        %v1565 = vadd.f32 %v1545, %v1552
        %v1566 = vadd.f32 %v1546, %v1552
        %v1567 = vadd.f32 %v1547, %v1552
        %v1568 = vadd.f32 %v1548, %v1552
        %v1569 = vxor.u32 %v1553, 2147483648
        %v1570 = vxor.u32 %v1554, 2147483648
        %v1571 = vxor.u32 %v1555, 2147483648
        %v1572 = vxor.u32 %v1556, 2147483648
        %v1573 = vxor.u32 %v1557, 2147483648
        %v1574 = vxor.u32 %v1558, 2147483648
        %v1575 = vxor.u32 %v1559, 2147483648
        %v1576 = vxor.u32 %v1560, 2147483648
        %v1577 = vxor.u32 %v1561, 2147483648
        %v1578 = vxor.u32 %v1562, 2147483648
        %v1579 = vxor.u32 %v1563, 2147483648
        %v1580 = vxor.u32 %v1564, 2147483648
        %v1581 = vxor.u32 %v1565, 2147483648
        %v1582 = vxor.u32 %v1566, 2147483648
        %v1583 = vxor.u32 %v1567, 2147483648
        %v1584 = vxor.u32 %v1568, 2147483648
        %v1585 = vmul.f32 %v1569, 1.442695
        %v1586 = vpow.pop %v1585
        %v1587 = vmul.f32 %v1570, 1.442695
        %v1588 = vpow.pop %v1587
        %v1589 = vmul.f32 %v1571, 1.442695
        %v1590 = vpow.pop %v1589
        %v1591 = vmul.f32 %v1572, 1.442695
        %v1592 = vpow.pop %v1591
        %v1593 = vmul.f32 %v1573, 1.442695
        %v1594 = vpow.pop %v1593
        %v1595 = vmul.f32 %v1574, 1.442695
        %v1596 = vpow.pop %v1595
        %v1597 = vmul.f32 %v1575, 1.442695
        %v1598 = vpow.pop %v1597
        %v1599 = vmul.f32 %v1576, 1.442695
        %v1600 = vpow.pop %v1599
        %v1601 = vmul.f32 %v1577, 1.442695
        %v1602 = vpow.pop %v1601
        %v1603 = vmul.f32 %v1578, 1.442695
        %v1604 = vpow.pop %v1603
        %v1605 = vmul.f32 %v1579, 1.442695
        %v1606 = vpow.pop %v1605
        %v1607 = vmul.f32 %v1580, 1.442695
        %v1608 = vpow.pop %v1607
        %v1609 = vmul.f32 %v1581, 1.442695
        %v1610 = vpow.pop %v1609
        %v1611 = vmul.f32 %v1582, 1.442695
        %v1612 = vpow.pop %v1611
        %v1613 = vmul.f32 %v1583, 1.442695
        %v1614 = vpow.pop %v1613
        %v1615 = vmul.f32 %v1584, 1.442695
        %v1616 = vpow.pop %v1615
        %v1617 = vadd.f32 %v1586, 1.0
        %v1618 = vadd.f32 %v1588, 1.0
        %v1619 = vadd.f32 %v1590, 1.0
        %v1620 = vadd.f32 %v1592, 1.0
        %v1621 = vadd.f32 %v1594, 1.0
        %v1622 = vadd.f32 %v1596, 1.0
        %v1623 = vadd.f32 %v1598, 1.0
        %v1624 = vadd.f32 %v1600, 1.0
        %v1625 = vadd.f32 %v1602, 1.0
        %v1626 = vadd.f32 %v1604, 1.0
        %v1627 = vadd.f32 %v1606, 1.0
        %v1628 = vadd.f32 %v1608, 1.0
        %v1629 = vadd.f32 %v1610, 1.0
        %v1630 = vadd.f32 %v1612, 1.0
        %v1631 = vadd.f32 %v1614, 1.0
        %v1632 = vadd.f32 %v1616, 1.0
        %v1633 = vrcp.pop %v1617
        %v1634 = vmul.f32 1.0, %v1633
        %v1635 = vrcp.pop %v1618
        %v1636 = vmul.f32 1.0, %v1635
        %v1637 = vrcp.pop %v1619
        %v1638 = vmul.f32 1.0, %v1637
        %v1639 = vrcp.pop %v1620
        %v1640 = vmul.f32 1.0, %v1639
        %v1641 = vrcp.pop %v1621
        %v1642 = vmul.f32 1.0, %v1641
        %v1643 = vrcp.pop %v1622
        %v1644 = vmul.f32 1.0, %v1643
        %v1645 = vrcp.pop %v1623
        %v1646 = vmul.f32 1.0, %v1645
        %v1647 = vrcp.pop %v1624
        %v1648 = vmul.f32 1.0, %v1647
        %v1649 = vrcp.pop %v1625
        %v1650 = vmul.f32 1.0, %v1649
        %v1651 = vrcp.pop %v1626
        %v1652 = vmul.f32 1.0, %v1651
        %v1653 = vrcp.pop %v1627
        %v1654 = vmul.f32 1.0, %v1653
        %v1655 = vrcp.pop %v1628
        %v1656 = vmul.f32 1.0, %v1655
        %v1657 = vrcp.pop %v1629
        %v1658 = vmul.f32 1.0, %v1657
        %v1659 = vrcp.pop %v1630
        %v1660 = vmul.f32 1.0, %v1659
        %v1661 = vrcp.pop %v1631
        %v1662 = vmul.f32 1.0, %v1661
        %v1663 = vrcp.pop %v1632
        %v1664 = vmul.f32 1.0, %v1663
        %v1665 = vmul.f32 %v1553, %v1634
        %v1666 = vmul.f32 %v1554, %v1636
        %v1667 = vmul.f32 %v1555, %v1638
        %v1668 = vmul.f32 %v1556, %v1640
        %v1669 = vmul.f32 %v1557, %v1642
        %v1670 = vmul.f32 %v1558, %v1644
        %v1671 = vmul.f32 %v1559, %v1646
        %v1672 = vmul.f32 %v1560, %v1648
        %v1673 = vmul.f32 %v1561, %v1650
        %v1674 = vmul.f32 %v1562, %v1652
        %v1675 = vmul.f32 %v1563, %v1654
        %v1676 = vmul.f32 %v1564, %v1656
        %v1677 = vmul.f32 %v1565, %v1658
        %v1678 = vmul.f32 %v1566, %v1660
        %v1679 = vmul.f32 %v1567, %v1662
        %v1680 = vmul.f32 %v1568, %v1664
        %v1681 = vpack.c.bf16 %v1666, %v1665
        %v1682 = vpack.c.bf16 %v1668, %v1667
        %v1683 = vpack.c.bf16 %v1670, %v1669
        %v1684 = vpack.c.bf16 %v1672, %v1671
        %v1685 = vpack.c.bf16 %v1674, %v1673
        %v1686 = vpack.c.bf16 %v1676, %v1675
        %v1687 = vpack.c.bf16 %v1678, %v1677
        %v1688 = vpack.c.bf16 %v1680, %v1679
        %v1689 = vlaneseq
        %v1690 = vshrl.u32 %v1689, 7
        %v1691 = vsub.s32 2, %v1690
        %v1692 = vrot.slane %v638, %v1691
        %v1697 = vunpack.c.l.b16 %v614
        %v1698 = vunpack.c.l.b16 %v615
        %v1699 = vunpack.c.l.b16 %v616
        %v1700 = vunpack.c.l.b16 %v617
        %v1701 = vpack.c.b16 %v1698, %v1697
        %v1702 = vpack.c.b16 %v1700, %v1699
        %vm1705 = vcmask 261120
        %v1707 = vsel %vm1705, %v1681, 0
        %v1710 = vsel %vm1705, %v1682, 0
        %v1713 = vsel %vm1705, %v1683, 0
        %v1716 = vsel %vm1705, %v1684, 0
        %v1719 = vsel %vm1705, %v1685, 0
        %v1722 = vsel %vm1705, %v1686, 0
        %v1725 = vsel %vm1705, %v1687, 0
        %v1728 = vsel %vm1705, %v1688, 0
        %1730 = vmatprep.subr.bf16.mxu0 0
        %1731 = vmatpush1.bf16.msra.mxu0 %v1701
        %1732 = vmatprep.subr.bf16.mxu0 0
        %1733 = vmatpush1.bf16.msra.mxu0 %v1702
        %1734 = vmatprep.subr.bf16.mxu0 0
        %1735 = vmatpush1.bf16.msra.mxu0 0
        %1736 = vmatprep.subr.bf16.mxu0 0
        %1737 = vmatpush1.bf16.msra.mxu0 0
        %1738 = vmatprep.subr.bf16.mxu0 0
        %1739 = vmatpush1.bf16.msra.mxu0 0
        %1740 = vmatprep.subr.bf16.mxu0 0
        %1741 = vmatpush1.bf16.msra.mxu0 0
        %1742 = vmatprep.subr.bf16.mxu0 0
        %1743 = vmatpush1.bf16.msra.mxu0 0
        %1744 = vmatprep.subr.bf16.mxu0 0
        %1745 = vmatpush1.bf16.msra.mxu0 0
        %1746 = vmatprep.subr.bf16.mxu0 0
        %1747 = vmatpush1.bf16.msra.mxu0 0
        %1748 = vmatprep.subr.bf16.mxu0 0
        %1749 = vmatpush1.bf16.msra.mxu0 0
        %1750 = vmatprep.subr.bf16.mxu0 0
        %1751 = vmatpush1.bf16.msra.mxu0 0
        %1752 = vmatprep.subr.bf16.mxu0 0
        %1753 = vmatpush1.bf16.msra.mxu0 0
        %1754 = vmatprep.subr.bf16.mxu0 0
        %1755 = vmatpush1.bf16.msra.mxu0 0
        %1756 = vmatprep.subr.bf16.mxu0 0
        %1757 = vmatpush1.bf16.msra.mxu0 0
        %1758 = vmatprep.subr.bf16.mxu0 0
        %1759 = vmatpush1.bf16.msra.mxu0 0
        %1760 = vmatprep.subr.bf16.mxu0 0
        %1761 = vmatpush1.bf16.msra.mxu0 0
        %1762 = vmatprep.mubr.bf16.mxu0 0
        %1763 = vmatmul.mubr.bf16.gmra.mrb[0].mxu0 %v1707
        %v1764 = vpop.f32.mrb[0].mxu0
        %v1765 = vadd.f32 %v1692, %v1764
        %v1766 = vpop.f32.mrb[0].mxu0
        %v1767 = vpop.f32.mrb[0].mxu0
        %v1768 = vadd.f32 %v1692, %v1767
        %v1769 = vpop.f32.mrb[0].mxu0
        %1770 = vmatprep.mubr.bf16.mxu0 0
        %1771 = vmatmul.mubr.bf16.gmra.mrb[0].mxu0 %v1710
        %v1772 = vpop.f32.mrb[0].mxu0
        %v1773 = vadd.f32 %v1692, %v1772
        %v1774 = vpop.f32.mrb[0].mxu0
        %v1775 = vpop.f32.mrb[0].mxu0
        %v1776 = vadd.f32 %v1692, %v1775
        %v1777 = vpop.f32.mrb[0].mxu0
        %1778 = vmatprep.mubr.bf16.mxu0 0
        %1779 = vmatmul.mubr.bf16.gmra.mrb[0].mxu0 %v1713
        %v1780 = vpop.f32.mrb[0].mxu0
        %v1781 = vadd.f32 %v1692, %v1780
        %v1782 = vpop.f32.mrb[0].mxu0
        %v1783 = vpop.f32.mrb[0].mxu0
        %v1784 = vadd.f32 %v1692, %v1783
        %v1785 = vpop.f32.mrb[0].mxu0
        %1786 = vmatprep.mubr.bf16.mxu0 0
        %1787 = vmatmul.mubr.bf16.gmra.mrb[0].mxu0 %v1716
        %v1788 = vpop.f32.mrb[0].mxu0
        %v1789 = vadd.f32 %v1692, %v1788
        %v1790 = vpop.f32.mrb[0].mxu0
        %v1791 = vpop.f32.mrb[0].mxu0
        %v1792 = vadd.f32 %v1692, %v1791
        %v1793 = vpop.f32.mrb[0].mxu0
        %1794 = vmatprep.mubr.bf16.mxu0 0
        %1795 = vmatmul.mubr.bf16.gmra.mrb[0].mxu0 %v1719
        %v1796 = vpop.f32.mrb[0].mxu0
        %v1797 = vadd.f32 %v1692, %v1796
        %v1798 = vpop.f32.mrb[0].mxu0
        %v1799 = vpop.f32.mrb[0].mxu0
        %v1800 = vadd.f32 %v1692, %v1799
        %v1801 = vpop.f32.mrb[0].mxu0
        %1802 = vmatprep.mubr.bf16.mxu0 0
        %1803 = vmatmul.mubr.bf16.gmra.mrb[0].mxu0 %v1722
        %v1804 = vpop.f32.mrb[0].mxu0
        %v1805 = vadd.f32 %v1692, %v1804
        %v1806 = vpop.f32.mrb[0].mxu0
        %v1807 = vpop.f32.mrb[0].mxu0
        %v1808 = vadd.f32 %v1692, %v1807
        %v1809 = vpop.f32.mrb[0].mxu0
        %1810 = vmatprep.mubr.bf16.mxu0 0
        %1811 = vmatmul.mubr.bf16.gmra.mrb[0].mxu0 %v1725
        %v1812 = vpop.f32.mrb[0].mxu0
        %v1813 = vadd.f32 %v1692, %v1812
        %v1814 = vpop.f32.mrb[0].mxu0
        %v1815 = vpop.f32.mrb[0].mxu0
        %v1816 = vadd.f32 %v1692, %v1815
        %v1817 = vpop.f32.mrb[0].mxu0
        %1818 = vmatprep.mubr.bf16.mxu0 0
        %1819 = vmatmul.mubr.bf16.gmra.mrb[0].mxu0 %v1728
        %v1820 = vpop.f32.mrb[0].mxu0
        %v1821 = vadd.f32 %v1692, %v1820
        %v1822 = vpop.f32.mrb[0].mxu0
        %v1823 = vpop.f32.mrb[0].mxu0
        %v1824 = vadd.f32 %v1692, %v1823
        %v1825 = vpop.f32.mrb[0].mxu0
        %1826 = vdwg.mxu0
        %v1827 = vxor.u32 %v1765, 2147483648
        %v1828 = vxor.u32 %v1768, 2147483648
        %v1829 = vxor.u32 %v1773, 2147483648
        %v1830 = vxor.u32 %v1776, 2147483648
        %v1831 = vxor.u32 %v1781, 2147483648
        %v1832 = vxor.u32 %v1784, 2147483648
        %v1833 = vxor.u32 %v1789, 2147483648
        %v1834 = vxor.u32 %v1792, 2147483648
        %v1835 = vxor.u32 %v1797, 2147483648
        %v1836 = vxor.u32 %v1800, 2147483648
        %v1837 = vxor.u32 %v1805, 2147483648
        %v1838 = vxor.u32 %v1808, 2147483648
        %v1839 = vxor.u32 %v1813, 2147483648
        %v1840 = vxor.u32 %v1816, 2147483648
        %v1841 = vxor.u32 %v1821, 2147483648
        %v1842 = vxor.u32 %v1824, 2147483648
        %v1843 = vmul.f32 %v1827, 1.442695
        %v1844 = vpow.pop %v1843
        %v1845 = vmul.f32 %v1828, 1.442695
        %v1846 = vpow.pop %v1845
        %v1847 = vmul.f32 %v1829, 1.442695
        %v1848 = vpow.pop %v1847
        %v1849 = vmul.f32 %v1830, 1.442695
        %v1850 = vpow.pop %v1849
        %v1851 = vmul.f32 %v1831, 1.442695
        %v1852 = vpow.pop %v1851
        %v1853 = vmul.f32 %v1832, 1.442695
        %v1854 = vpow.pop %v1853
        %v1855 = vmul.f32 %v1833, 1.442695
        %v1856 = vpow.pop %v1855
        %v1857 = vmul.f32 %v1834, 1.442695
        %v1858 = vpow.pop %v1857
        %v1859 = vmul.f32 %v1835, 1.442695
        %v1860 = vpow.pop %v1859
        %v1861 = vmul.f32 %v1836, 1.442695
        %v1862 = vpow.pop %v1861
        %v1863 = vmul.f32 %v1837, 1.442695
        %v1864 = vpow.pop %v1863
        %v1865 = vmul.f32 %v1838, 1.442695
        %v1866 = vpow.pop %v1865
        %v1867 = vmul.f32 %v1839, 1.442695
        %v1868 = vpow.pop %v1867
        %v1869 = vmul.f32 %v1840, 1.442695
        %v1870 = vpow.pop %v1869
        %v1871 = vmul.f32 %v1841, 1.442695
        %v1872 = vpow.pop %v1871
        %v1873 = vmul.f32 %v1842, 1.442695
        %v1874 = vpow.pop %v1873
        %v1875 = vadd.f32 %v1844, 1.0
        %v1876 = vadd.f32 %v1846, 1.0
        %v1877 = vadd.f32 %v1848, 1.0
        %v1878 = vadd.f32 %v1850, 1.0
        %v1879 = vadd.f32 %v1852, 1.0
        %v1880 = vadd.f32 %v1854, 1.0
        %v1881 = vadd.f32 %v1856, 1.0
        %v1882 = vadd.f32 %v1858, 1.0
        %v1883 = vadd.f32 %v1860, 1.0
        %v1884 = vadd.f32 %v1862, 1.0
        %v1885 = vadd.f32 %v1864, 1.0
        %v1886 = vadd.f32 %v1866, 1.0
        %v1887 = vadd.f32 %v1868, 1.0
        %v1888 = vadd.f32 %v1870, 1.0
        %v1889 = vadd.f32 %v1872, 1.0
        %v1890 = vadd.f32 %v1874, 1.0
        %v1891 = vrcp.pop %v1875
        %v1892 = vmul.f32 1.0, %v1891
        %v1893 = vrcp.pop %v1876
        %v1894 = vmul.f32 1.0, %v1893
        %v1895 = vrcp.pop %v1877
        %v1896 = vmul.f32 1.0, %v1895
        %v1897 = vrcp.pop %v1878
        %v1898 = vmul.f32 1.0, %v1897
        %v1899 = vrcp.pop %v1879
        %v1900 = vmul.f32 1.0, %v1899
        %v1901 = vrcp.pop %v1880
        %v1902 = vmul.f32 1.0, %v1901
        %v1903 = vrcp.pop %v1881
        %v1904 = vmul.f32 1.0, %v1903
        %v1905 = vrcp.pop %v1882
        %v1906 = vmul.f32 1.0, %v1905
        %v1907 = vrcp.pop %v1883
        %v1908 = vmul.f32 1.0, %v1907
        %v1909 = vrcp.pop %v1884
        %v1910 = vmul.f32 1.0, %v1909
        %v1911 = vrcp.pop %v1885
        %v1912 = vmul.f32 1.0, %v1911
        %v1913 = vrcp.pop %v1886
        %v1914 = vmul.f32 1.0, %v1913
        %v1915 = vrcp.pop %v1887
        %v1916 = vmul.f32 1.0, %v1915
        %v1917 = vrcp.pop %v1888
        %v1918 = vmul.f32 1.0, %v1917
        %v1919 = vrcp.pop %v1889
        %v1920 = vmul.f32 1.0, %v1919
        %v1921 = vrcp.pop %v1890
        %v1922 = vmul.f32 1.0, %v1921
        %v1923 = vmul.f32 %v1765, %v1892
        %v1924 = vmul.f32 %v1768, %v1894
        %v1925 = vmul.f32 %v1773, %v1896
        %v1926 = vmul.f32 %v1776, %v1898
        %v1927 = vmul.f32 %v1781, %v1900
        %v1928 = vmul.f32 %v1784, %v1902
        %v1929 = vmul.f32 %v1789, %v1904
        %v1930 = vmul.f32 %v1792, %v1906
        %v1931 = vmul.f32 %v1797, %v1908
        %v1932 = vmul.f32 %v1800, %v1910
        %v1933 = vmul.f32 %v1805, %v1912
        %v1934 = vmul.f32 %v1808, %v1914
        %v1935 = vmul.f32 %v1813, %v1916
        %v1936 = vmul.f32 %v1816, %v1918
        %v1937 = vmul.f32 %v1821, %v1920
        %v1938 = vmul.f32 %v1824, %v1922
        %v1939 = vpack.c.bf16 %v1924, %v1923
        %v1940 = vpack.c.bf16 %v1926, %v1925
        %v1941 = vpack.c.bf16 %v1928, %v1927
        %v1942 = vpack.c.bf16 %v1930, %v1929
        %v1943 = vpack.c.bf16 %v1932, %v1931
        %v1944 = vpack.c.bf16 %v1934, %v1933
        %v1945 = vpack.c.bf16 %v1936, %v1935
        %v1946 = vpack.c.bf16 %v1938, %v1937
        %v1947 = vld [vmem:[#allocation5] sm:$0xff]
        %v1948 = vld [vmem:[#allocation5 + $0x8] sm:$0xff]
        %v1949 = vld [vmem:[#allocation5 + $0x10] sm:$0xff]
        %1950 = vmatprep.subr.bf16.mxu0 0
        %1951 = vmatpush1.bf16.msra.mxu0 %v1939
        %1952 = vmatprep.subr.bf16.mxu0 0
        %1953 = vmatpush1.bf16.msra.mxu0 %v1940
        %1954 = vmatprep.subr.bf16.mxu0 0
        %1955 = vmatpush1.bf16.msra.mxu0 %v1941
        %1956 = vmatprep.subr.bf16.mxu0 0
        %1957 = vmatpush1.bf16.msra.mxu0 %v1942
        %1958 = vmatprep.subr.bf16.mxu0 0
        %1959 = vmatpush1.bf16.msra.mxu0 %v1943
        %1960 = vmatprep.subr.bf16.mxu0 0
        %1961 = vmatpush1.bf16.msra.mxu0 %v1944
        %1962 = vmatprep.subr.bf16.mxu0 0
        %1963 = vmatpush1.bf16.msra.mxu0 %v1945
        %1964 = vmatprep.subr.bf16.mxu0 0
        %1965 = vmatpush1.bf16.msra.mxu0 %v1946
        %1966 = vmatprep.subr.bf16.mxu0 0
        %1967 = vmatpush1.bf16.msra.mxu0 0
        %1968 = vmatprep.subr.bf16.mxu0 0
        %1969 = vmatpush1.bf16.msra.mxu0 0
        %1970 = vmatprep.subr.bf16.mxu0 0
        %1971 = vmatpush1.bf16.msra.mxu0 0
        %1972 = vmatprep.subr.bf16.mxu0 0
        %1973 = vmatpush1.bf16.msra.mxu0 0
        %1974 = vmatprep.subr.bf16.mxu0 0
        %1975 = vmatpush1.bf16.msra.mxu0 0
        %1976 = vmatprep.subr.bf16.mxu0 0
        %1977 = vmatpush1.bf16.msra.mxu0 0
        %1978 = vmatprep.subr.bf16.mxu0 0
        %1979 = vmatpush1.bf16.msra.mxu0 0
        %1980 = vmatprep.subr.bf16.mxu0 0
        %1981 = vmatpush1.bf16.msra.mxu0 0
        %1982 = vmatprep.mubr.bf16.mxu0 0
        %1983 = vmatmul.mubr.bf16.gmra.mrb[0].mxu0 %v1125
        %v1984 = vpop.f32.mrb[0].mxu0
        %v1985 = vadd.f32 0.0, %v1984
        %v1986 = vpop.f32.mrb[0].mxu0
        %v1987 = vpop.f32.mrb[0].mxu0
        %v1988 = vadd.f32 0.0, %v1987
        %v1989 = vpop.f32.mrb[0].mxu0
        %1990 = vmatprep.mubr.bf16.mxu0 0
        %1991 = vmatmul.mubr.bf16.gmra.mrb[0].mxu0 %v1126
        %v1992 = vpop.f32.mrb[0].mxu0
        %v1993 = vadd.f32 0.0, %v1992
        %v1994 = vpop.f32.mrb[0].mxu0
        %v1995 = vpop.f32.mrb[0].mxu0
        %v1996 = vpop.f32.mrb[0].mxu0
        %1997 = vdwg.mxu0
        %v1998 = vadd.f32 %v1947, %v1985
        %v1999 = vadd.f32 %v1948, %v1988
        %v2000 = vadd.f32 %v1949, %v1993
        %2001 = vst.msk [vmem:[#allocation5] sm:$0xff] %vm1705, %v1998
        %2002 = vst.msk [vmem:[#allocation5 + $0x8] sm:$0xff] %vm1705, %v1999
        %2003 = vst.msk [vmem:[#allocation5 + $0x10] sm:$0xff] %vm1705, %v2000
        %p2004 = scmp.eq.s32.totalorder %s31, 3
        // Predicated region
        $region81: #{tpu_custom_call.1} parent=71 // pred_check
          %p2005 = pneg %p2004
        $region82: #{tpu_custom_call.1} parent=71 // pred_check_branch
          %2007 = sbr.rel (%p2005) target = $region84
        $region83: #{tpu_custom_call.1} parent=71 // pred_region
          %v2008 = vlaneseq
          %v2009 = vshrl.u32 %v2008, 7
          %v2010 = vsub.s32 5, %v2009
          %v2011 = vrot.slane %v638, %v2010
          %v2016 = vunpack.c.l.b16 %v634
          %v2017 = vunpack.c.l.b16 %v635
          %v2018 = vunpack.c.l.b16 %v636
          %v2019 = vunpack.c.l.b16 %v637
          %v2020 = vpack.c.b16 %v2017, %v2016
          %v2021 = vpack.c.b16 %v2019, %v2018
          %v2025 = vsel %vm1705, %v1939, 0
          %v2028 = vsel %vm1705, %v1940, 0
          %v2031 = vsel %vm1705, %v1941, 0
          %v2034 = vsel %vm1705, %v1942, 0
          %v2037 = vsel %vm1705, %v1943, 0
          %v2040 = vsel %vm1705, %v1944, 0
          %v2043 = vsel %vm1705, %v1945, 0
          %v2046 = vsel %vm1705, %v1946, 0
          %2048 = vmatprep.subr.bf16.mxu0 0
          %2049 = vmatpush1.bf16.msra.mxu0 %v2020
          %2050 = vmatprep.subr.bf16.mxu0 0
          %2051 = vmatpush1.bf16.msra.mxu0 %v2021
          %2052 = vmatprep.subr.bf16.mxu0 0
          %2053 = vmatpush1.bf16.msra.mxu0 0
          %2054 = vmatprep.subr.bf16.mxu0 0
          %2055 = vmatpush1.bf16.msra.mxu0 0
          %2056 = vmatprep.subr.bf16.mxu0 0
          %2057 = vmatpush1.bf16.msra.mxu0 0
          %2058 = vmatprep.subr.bf16.mxu0 0
          %2059 = vmatpush1.bf16.msra.mxu0 0
          %2060 = vmatprep.subr.bf16.mxu0 0
          %2061 = vmatpush1.bf16.msra.mxu0 0
          %2062 = vmatprep.subr.bf16.mxu0 0
          %2063 = vmatpush1.bf16.msra.mxu0 0
          %2064 = vmatprep.subr.bf16.mxu0 0
          %2065 = vmatpush1.bf16.msra.mxu0 0
          %2066 = vmatprep.subr.bf16.mxu0 0
          %2067 = vmatpush1.bf16.msra.mxu0 0
          %2068 = vmatprep.subr.bf16.mxu0 0
          %2069 = vmatpush1.bf16.msra.mxu0 0
          %2070 = vmatprep.subr.bf16.mxu0 0
          %2071 = vmatpush1.bf16.msra.mxu0 0
          %2072 = vmatprep.subr.bf16.mxu0 0
          %2073 = vmatpush1.bf16.msra.mxu0 0
          %2074 = vmatprep.subr.bf16.mxu0 0
          %2075 = vmatpush1.bf16.msra.mxu0 0
          %2076 = vmatprep.subr.bf16.mxu0 0
          %2077 = vmatpush1.bf16.msra.mxu0 0
          %2078 = vmatprep.subr.bf16.mxu0 0
          %2079 = vmatpush1.bf16.msra.mxu0 0
          %2080 = vmatprep.mubr.bf16.mxu0 0
          %2081 = vmatmul.mubr.bf16.gmra.mrb[0].mxu0 %v2025
          %v2082 = vpop.f32.mrb[0].mxu0
          %v2083 = vadd.f32 %v2011, %v2082
          %v2084 = vpop.f32.mrb[0].mxu0
          %v2085 = vpop.f32.mrb[0].mxu0
          %v2086 = vadd.f32 %v2011, %v2085
          %v2087 = vpop.f32.mrb[0].mxu0
          %2088 = vmatprep.mubr.bf16.mxu0 0
          %2089 = vmatmul.mubr.bf16.gmra.mrb[0].mxu0 %v2028
          %v2090 = vpop.f32.mrb[0].mxu0
          %v2091 = vadd.f32 %v2011, %v2090
          %v2092 = vpop.f32.mrb[0].mxu0
          %v2093 = vpop.f32.mrb[0].mxu0
          %v2094 = vadd.f32 %v2011, %v2093
          %v2095 = vpop.f32.mrb[0].mxu0
          %2096 = vmatprep.mubr.bf16.mxu0 0
          %2097 = vmatmul.mubr.bf16.gmra.mrb[0].mxu0 %v2031
          %v2098 = vpop.f32.mrb[0].mxu0
          %v2099 = vadd.f32 %v2011, %v2098
          %v2100 = vpop.f32.mrb[0].mxu0
          %v2101 = vpop.f32.mrb[0].mxu0
          %v2102 = vadd.f32 %v2011, %v2101
          %v2103 = vpop.f32.mrb[0].mxu0
          %2104 = vmatprep.mubr.bf16.mxu0 0
          %2105 = vmatmul.mubr.bf16.gmra.mrb[0].mxu0 %v2034
          %v2106 = vpop.f32.mrb[0].mxu0
          %v2107 = vadd.f32 %v2011, %v2106
          %v2108 = vpop.f32.mrb[0].mxu0
          %v2109 = vpop.f32.mrb[0].mxu0
          %v2110 = vadd.f32 %v2011, %v2109
          %v2111 = vpop.f32.mrb[0].mxu0
          %2112 = vmatprep.mubr.bf16.mxu0 0
          %2113 = vmatmul.mubr.bf16.gmra.mrb[0].mxu0 %v2037
          %v2114 = vpop.f32.mrb[0].mxu0
          %v2115 = vadd.f32 %v2011, %v2114
          %v2116 = vpop.f32.mrb[0].mxu0
          %v2117 = vpop.f32.mrb[0].mxu0
          %v2118 = vadd.f32 %v2011, %v2117
          %v2119 = vpop.f32.mrb[0].mxu0
          %2120 = vmatprep.mubr.bf16.mxu0 0
          %2121 = vmatmul.mubr.bf16.gmra.mrb[0].mxu0 %v2040
          %v2122 = vpop.f32.mrb[0].mxu0
          %v2123 = vadd.f32 %v2011, %v2122
          %v2124 = vpop.f32.mrb[0].mxu0
          %v2125 = vpop.f32.mrb[0].mxu0
          %v2126 = vadd.f32 %v2011, %v2125
          %v2127 = vpop.f32.mrb[0].mxu0
          %2128 = vmatprep.mubr.bf16.mxu0 0
          %2129 = vmatmul.mubr.bf16.gmra.mrb[0].mxu0 %v2043
          %v2130 = vpop.f32.mrb[0].mxu0
          %v2131 = vadd.f32 %v2011, %v2130
          %v2132 = vpop.f32.mrb[0].mxu0
          %v2133 = vpop.f32.mrb[0].mxu0
          %v2134 = vadd.f32 %v2011, %v2133
          %v2135 = vpop.f32.mrb[0].mxu0
          %2136 = vmatprep.mubr.bf16.mxu0 0
          %2137 = vmatmul.mubr.bf16.gmra.mrb[0].mxu0 %v2046
          %v2138 = vpop.f32.mrb[0].mxu0
          %v2139 = vadd.f32 %v2011, %v2138
          %v2140 = vpop.f32.mrb[0].mxu0
          %v2141 = vpop.f32.mrb[0].mxu0
          %v2142 = vadd.f32 %v2011, %v2141
          %v2143 = vpop.f32.mrb[0].mxu0
          %2144 = vdwg.mxu0
          %v2145 = vxor.u32 %v2083, 2147483648
          %v2146 = vxor.u32 %v2086, 2147483648
          %v2147 = vxor.u32 %v2091, 2147483648
          %v2148 = vxor.u32 %v2094, 2147483648
          %v2149 = vxor.u32 %v2099, 2147483648
          %v2150 = vxor.u32 %v2102, 2147483648
          %v2151 = vxor.u32 %v2107, 2147483648
          %v2152 = vxor.u32 %v2110, 2147483648
          %v2153 = vxor.u32 %v2115, 2147483648
          %v2154 = vxor.u32 %v2118, 2147483648
          %v2155 = vxor.u32 %v2123, 2147483648
          %v2156 = vxor.u32 %v2126, 2147483648
          %v2157 = vxor.u32 %v2131, 2147483648
          %v2158 = vxor.u32 %v2134, 2147483648
          %v2159 = vxor.u32 %v2139, 2147483648
          %v2160 = vxor.u32 %v2142, 2147483648
          %v2161 = vmul.f32 %v2145, 1.442695
          %v2162 = vpow.pop %v2161
          %v2163 = vmul.f32 %v2146, 1.442695
          %v2164 = vpow.pop %v2163
          %v2165 = vmul.f32 %v2147, 1.442695
          %v2166 = vpow.pop %v2165
          %v2167 = vmul.f32 %v2148, 1.442695
          %v2168 = vpow.pop %v2167
          %v2169 = vmul.f32 %v2149, 1.442695
          %v2170 = vpow.pop %v2169
          %v2171 = vmul.f32 %v2150, 1.442695
          %v2172 = vpow.pop %v2171
          %v2173 = vmul.f32 %v2151, 1.442695
          %v2174 = vpow.pop %v2173
          %v2175 = vmul.f32 %v2152, 1.442695
          %v2176 = vpow.pop %v2175
          %v2177 = vmul.f32 %v2153, 1.442695
          %v2178 = vpow.pop %v2177
          %v2179 = vmul.f32 %v2154, 1.442695
          %v2180 = vpow.pop %v2179
          %v2181 = vmul.f32 %v2155, 1.442695
          %v2182 = vpow.pop %v2181
          %v2183 = vmul.f32 %v2156, 1.442695
          %v2184 = vpow.pop %v2183
          %v2185 = vmul.f32 %v2157, 1.442695
          %v2186 = vpow.pop %v2185
          %v2187 = vmul.f32 %v2158, 1.442695
          %v2188 = vpow.pop %v2187
          %v2189 = vmul.f32 %v2159, 1.442695
          %v2190 = vpow.pop %v2189
          %v2191 = vmul.f32 %v2160, 1.442695
          %v2192 = vpow.pop %v2191
          %v2193 = vadd.f32 %v2162, 1.0
          %v2194 = vadd.f32 %v2164, 1.0
          %v2195 = vadd.f32 %v2166, 1.0
          %v2196 = vadd.f32 %v2168, 1.0
          %v2197 = vadd.f32 %v2170, 1.0
          %v2198 = vadd.f32 %v2172, 1.0
          %v2199 = vadd.f32 %v2174, 1.0
          %v2200 = vadd.f32 %v2176, 1.0
          %v2201 = vadd.f32 %v2178, 1.0
          %v2202 = vadd.f32 %v2180, 1.0
          %v2203 = vadd.f32 %v2182, 1.0
          %v2204 = vadd.f32 %v2184, 1.0
          %v2205 = vadd.f32 %v2186, 1.0
          %v2206 = vadd.f32 %v2188, 1.0
          %v2207 = vadd.f32 %v2190, 1.0
          %v2208 = vadd.f32 %v2192, 1.0
          %v2209 = vrcp.pop %v2193
          %v2210 = vmul.f32 1.0, %v2209
          %v2211 = vrcp.pop %v2194
          %v2212 = vmul.f32 1.0, %v2211
          %v2213 = vrcp.pop %v2195
          %v2214 = vmul.f32 1.0, %v2213
          %v2215 = vrcp.pop %v2196
          %v2216 = vmul.f32 1.0, %v2215
          %v2217 = vrcp.pop %v2197
          %v2218 = vmul.f32 1.0, %v2217
          %v2219 = vrcp.pop %v2198
          %v2220 = vmul.f32 1.0, %v2219
          %v2221 = vrcp.pop %v2199
          %v2222 = vmul.f32 1.0, %v2221
          %v2223 = vrcp.pop %v2200
          %v2224 = vmul.f32 1.0, %v2223
          %v2225 = vrcp.pop %v2201
          %v2226 = vmul.f32 1.0, %v2225
          %v2227 = vrcp.pop %v2202
          %v2228 = vmul.f32 1.0, %v2227
          %v2229 = vrcp.pop %v2203
          %v2230 = vmul.f32 1.0, %v2229
          %v2231 = vrcp.pop %v2204
          %v2232 = vmul.f32 1.0, %v2231
          %v2233 = vrcp.pop %v2205
          %v2234 = vmul.f32 1.0, %v2233
          %v2235 = vrcp.pop %v2206
          %v2236 = vmul.f32 1.0, %v2235
          %v2237 = vrcp.pop %v2207
          %v2238 = vmul.f32 1.0, %v2237
          %v2239 = vrcp.pop %v2208
          %v2240 = vmul.f32 1.0, %v2239
          %v2241 = vmul.f32 %v2083, %v2210
          %v2242 = vmul.f32 %v2086, %v2212
          %v2243 = vmul.f32 %v2091, %v2214
          %v2244 = vmul.f32 %v2094, %v2216
          %v2245 = vmul.f32 %v2099, %v2218
          %v2246 = vmul.f32 %v2102, %v2220
          %v2247 = vmul.f32 %v2107, %v2222
          %v2248 = vmul.f32 %v2110, %v2224
          %v2249 = vmul.f32 %v2115, %v2226
          %v2250 = vmul.f32 %v2118, %v2228
          %v2251 = vmul.f32 %v2123, %v2230
          %v2252 = vmul.f32 %v2126, %v2232
          %v2253 = vmul.f32 %v2131, %v2234
          %v2254 = vmul.f32 %v2134, %v2236
          %v2255 = vmul.f32 %v2139, %v2238
          %v2256 = vmul.f32 %v2142, %v2240
          %v2257 = vpack.c.bf16 %v2242, %v2241
          %v2258 = vpack.c.bf16 %v2244, %v2243
          %v2259 = vpack.c.bf16 %v2246, %v2245
          %v2260 = vpack.c.bf16 %v2248, %v2247
          %v2261 = vpack.c.bf16 %v2250, %v2249
          %v2262 = vpack.c.bf16 %v2252, %v2251
          %v2263 = vpack.c.bf16 %v2254, %v2253
          %v2264 = vpack.c.bf16 %v2256, %v2255
          %v2269 = vunpack.c.l.b16 %v639
          %v2270 = vunpack.c.l.b16 %v640
          %v2271 = vunpack.c.l.b16 %v641
          %v2272 = vunpack.c.l.b16 %v642
          %v2273 = vpack.c.b16 %v2270, %v2269
          %v2274 = vpack.c.b16 %v2272, %v2271
          %v2278 = vsel %vm1705, %v2257, 0
          %v2281 = vsel %vm1705, %v2258, 0
          %v2284 = vsel %vm1705, %v2259, 0
          %v2287 = vsel %vm1705, %v2260, 0
          %v2290 = vsel %vm1705, %v2261, 0
          %v2293 = vsel %vm1705, %v2262, 0
          %v2296 = vsel %vm1705, %v2263, 0
          %v2299 = vsel %vm1705, %v2264, 0
          %2301 = vmatprep.subr.bf16.mxu0 0
          %2302 = vmatpush1.bf16.msra.mxu0 %v2273
          %2303 = vmatprep.subr.bf16.mxu0 0
          %2304 = vmatpush1.bf16.msra.mxu0 %v2274
          %2305 = vmatprep.subr.bf16.mxu0 0
          %2306 = vmatpush1.bf16.msra.mxu0 0
          %2307 = vmatprep.subr.bf16.mxu0 0
          %2308 = vmatpush1.bf16.msra.mxu0 0
          %2309 = vmatprep.subr.bf16.mxu0 0
          %2310 = vmatpush1.bf16.msra.mxu0 0
          %2311 = vmatprep.subr.bf16.mxu0 0
          %2312 = vmatpush1.bf16.msra.mxu0 0
          %2313 = vmatprep.subr.bf16.mxu0 0
          %2314 = vmatpush1.bf16.msra.mxu0 0
          %2315 = vmatprep.subr.bf16.mxu0 0
          %2316 = vmatpush1.bf16.msra.mxu0 0
          %2317 = vmatprep.subr.bf16.mxu0 0
          %2318 = vmatpush1.bf16.msra.mxu0 0
          %2319 = vmatprep.subr.bf16.mxu0 0
          %2320 = vmatpush1.bf16.msra.mxu0 0
          %2321 = vmatprep.subr.bf16.mxu0 0
          %2322 = vmatpush1.bf16.msra.mxu0 0
          %2323 = vmatprep.subr.bf16.mxu0 0
          %2324 = vmatpush1.bf16.msra.mxu0 0
          %2325 = vmatprep.subr.bf16.mxu0 0
          %2326 = vmatpush1.bf16.msra.mxu0 0
          %2327 = vmatprep.subr.bf16.mxu0 0
          %2328 = vmatpush1.bf16.msra.mxu0 0
          %2329 = vmatprep.subr.bf16.mxu0 0
          %2330 = vmatpush1.bf16.msra.mxu0 0
          %2331 = vmatprep.subr.bf16.mxu0 0
          %2332 = vmatpush1.bf16.msra.mxu0 0
          %2333 = vmatprep.mubr.bf16.mxu0 0
          %2334 = vmatmul.mubr.bf16.gmra.mrb[0].mxu0 %v2278
          %v2335 = vpop.f32.mrb[0].mxu0
          %v2336 = vadd.f32 0.0, %v2335
          %v2337 = vpop.f32.mrb[0].mxu0
          %v2338 = vpop.f32.mrb[0].mxu0
          %v2339 = vadd.f32 0.0, %v2338
          %v2340 = vpop.f32.mrb[0].mxu0
          %2341 = vmatprep.mubr.bf16.mxu0 0
          %2342 = vmatmul.mubr.bf16.gmra.mrb[0].mxu0 %v2281
          %v2343 = vpop.f32.mrb[0].mxu0
          %v2344 = vadd.f32 0.0, %v2343
          %v2345 = vpop.f32.mrb[0].mxu0
          %v2346 = vpop.f32.mrb[0].mxu0
          %v2347 = vadd.f32 0.0, %v2346
          %v2348 = vpop.f32.mrb[0].mxu0
          %2349 = vmatprep.mubr.bf16.mxu0 0
          %2350 = vmatmul.mubr.bf16.gmra.mrb[0].mxu0 %v2284
          %v2351 = vpop.f32.mrb[0].mxu0
          %v2352 = vadd.f32 0.0, %v2351
          %v2353 = vpop.f32.mrb[0].mxu0
          %v2354 = vpop.f32.mrb[0].mxu0
          %v2355 = vadd.f32 0.0, %v2354
          %v2356 = vpop.f32.mrb[0].mxu0
          %2357 = vmatprep.mubr.bf16.mxu0 0
          %2358 = vmatmul.mubr.bf16.gmra.mrb[0].mxu0 %v2287
          %v2359 = vpop.f32.mrb[0].mxu0
          %v2360 = vadd.f32 0.0, %v2359
          %v2361 = vpop.f32.mrb[0].mxu0
          %v2362 = vpop.f32.mrb[0].mxu0
          %v2363 = vadd.f32 0.0, %v2362
          %v2364 = vpop.f32.mrb[0].mxu0
          %2365 = vmatprep.mubr.bf16.mxu0 0
          %2366 = vmatmul.mubr.bf16.gmra.mrb[0].mxu0 %v2290
          %v2367 = vpop.f32.mrb[0].mxu0
          %v2368 = vadd.f32 0.0, %v2367
          %v2369 = vpop.f32.mrb[0].mxu0
          %v2370 = vpop.f32.mrb[0].mxu0
          %v2371 = vadd.f32 0.0, %v2370
          %v2372 = vpop.f32.mrb[0].mxu0
          %2373 = vmatprep.mubr.bf16.mxu0 0
          %2374 = vmatmul.mubr.bf16.gmra.mrb[0].mxu0 %v2293
          %v2375 = vpop.f32.mrb[0].mxu0
          %v2376 = vadd.f32 0.0, %v2375
          %v2377 = vpop.f32.mrb[0].mxu0
          %v2378 = vpop.f32.mrb[0].mxu0
          %v2379 = vadd.f32 0.0, %v2378
          %v2380 = vpop.f32.mrb[0].mxu0
          %2381 = vmatprep.mubr.bf16.mxu0 0
          %2382 = vmatmul.mubr.bf16.gmra.mrb[0].mxu0 %v2296
          %v2383 = vpop.f32.mrb[0].mxu0
          %v2384 = vadd.f32 0.0, %v2383
          %v2385 = vpop.f32.mrb[0].mxu0
          %v2386 = vpop.f32.mrb[0].mxu0
          %v2387 = vadd.f32 0.0, %v2386
          %v2388 = vpop.f32.mrb[0].mxu0
          %2389 = vmatprep.mubr.bf16.mxu0 0
          %2390 = vmatmul.mubr.bf16.gmra.mrb[0].mxu0 %v2299
          %v2391 = vpop.f32.mrb[0].mxu0
          %v2392 = vadd.f32 0.0, %v2391
          %v2393 = vpop.f32.mrb[0].mxu0
          %v2394 = vpop.f32.mrb[0].mxu0
          %v2395 = vadd.f32 0.0, %v2394
          %v2396 = vpop.f32.mrb[0].mxu0
          %2397 = vdwg.mxu0
          %2399 = vset.pattern.permute.xlu0 0
          %2400 = vperm.xlu0 %2399, %v2336
          %v2401 = vpop.permute.xlu0 %2400
          %2404 = vset.pattern.permute.xlu0 0
          %2405 = vperm.xlu0 %2404, %v2339
          %v2406 = vpop.permute.xlu0 %2405
          %2409 = vset.pattern.permute.xlu0 0
          %2410 = vperm.xlu0 %2409, %v2344
          %v2411 = vpop.permute.xlu0 %2410
          %2414 = vset.pattern.permute.xlu0 0
          %2415 = vperm.xlu0 %2414, %v2347
          %v2416 = vpop.permute.xlu0 %2415
          %2419 = vset.pattern.permute.xlu0 0
          %2420 = vperm.xlu0 %2419, %v2352
          %v2421 = vpop.permute.xlu0 %2420
          %2424 = vset.pattern.permute.xlu0 0
          %2425 = vperm.xlu0 %2424, %v2355
          %v2426 = vpop.permute.xlu0 %2425
          %2429 = vset.pattern.permute.xlu0 0
          %2430 = vperm.xlu0 %2429, %v2360
          %v2431 = vpop.permute.xlu0 %2430
          %2434 = vset.pattern.permute.xlu0 0
          %2435 = vperm.xlu0 %2434, %v2363
          %v2436 = vpop.permute.xlu0 %2435
          %2439 = vset.pattern.permute.xlu0 0
          %2440 = vperm.xlu0 %2439, %v2368
          %v2441 = vpop.permute.xlu0 %2440
          %2444 = vset.pattern.permute.xlu0 0
          %2445 = vperm.xlu0 %2444, %v2371
          %v2446 = vpop.permute.xlu0 %2445
          %2449 = vset.pattern.permute.xlu0 0
          %2450 = vperm.xlu0 %2449, %v2376
          %v2451 = vpop.permute.xlu0 %2450
          %2454 = vset.pattern.permute.xlu0 0
          %2455 = vperm.xlu0 %2454, %v2379
          %v2456 = vpop.permute.xlu0 %2455
          %2459 = vset.pattern.permute.xlu0 0
          %2460 = vperm.xlu0 %2459, %v2384
          %v2461 = vpop.permute.xlu0 %2460
          %2464 = vset.pattern.permute.xlu0 0
          %2465 = vperm.xlu0 %2464, %v2387
          %v2466 = vpop.permute.xlu0 %2465
          %2469 = vset.pattern.permute.xlu0 0
          %2470 = vperm.xlu0 %2469, %v2392
          %v2471 = vpop.permute.xlu0 %2470
          %2474 = vset.pattern.permute.xlu0 0
          %2475 = vperm.xlu0 %2474, %v2395
          %v2476 = vpop.permute.xlu0 %2475
          %v2478 = vmul.f32 %v1127, %v2401
          %v2479 = vmul.f32 %v1128, %v2406
          %v2480 = vmul.f32 %v1129, %v2411
          %v2481 = vmul.f32 %v1130, %v2416
          %v2482 = vmul.f32 %v1131, %v2421
          %v2483 = vmul.f32 %v1132, %v2426
          %v2484 = vmul.f32 %v1133, %v2431
          %v2485 = vmul.f32 %v1134, %v2436
          %v2486 = vmul.f32 %v1135, %v2441
          %v2487 = vmul.f32 %v1136, %v2446
          %v2488 = vmul.f32 %v1137, %v2451
          %v2489 = vmul.f32 %v1138, %v2456
          %v2490 = vmul.f32 %v1139, %v2461
          %v2491 = vmul.f32 %v1140, %v2466
          %v2492 = vmul.f32 %v1141, %v2471
          %v2493 = vmul.f32 %v1142, %v2476
          %v2494 = vld [vmem:[#allocation6] sm:$0xff]
          %v2495 = vld [vmem:[#allocation6 + $0x8] sm:$0xff]
          %v2496 = vld [vmem:[#allocation6 + $0x10] sm:$0xff]
          %v2497 = vpack.c.bf16 %v2479, %v2478
          %v2498 = vpack.c.bf16 %v2481, %v2480
          %v2499 = vpack.c.bf16 %v2483, %v2482
          %v2500 = vpack.c.bf16 %v2485, %v2484
          %v2501 = vpack.c.bf16 %v2487, %v2486
          %v2502 = vpack.c.bf16 %v2489, %v2488
          %v2503 = vpack.c.bf16 %v2491, %v2490
          %v2504 = vpack.c.bf16 %v2493, %v2492
          %2505 = vmatprep.subr.bf16.mxu0 0
          %2506 = vmatpush1.bf16.msra.mxu0 %v2497
          %2507 = vmatprep.subr.bf16.mxu0 0
          %2508 = vmatpush1.bf16.msra.mxu0 %v2498
          %2509 = vmatprep.subr.bf16.mxu0 0
          %2510 = vmatpush1.bf16.msra.mxu0 %v2499
          %2511 = vmatprep.subr.bf16.mxu0 0
          %2512 = vmatpush1.bf16.msra.mxu0 %v2500
          %2513 = vmatprep.subr.bf16.mxu0 0
          %2514 = vmatpush1.bf16.msra.mxu0 %v2501
          %2515 = vmatprep.subr.bf16.mxu0 0
          %2516 = vmatpush1.bf16.msra.mxu0 %v2502
          %2517 = vmatprep.subr.bf16.mxu0 0
          %2518 = vmatpush1.bf16.msra.mxu0 %v2503
          %2519 = vmatprep.subr.bf16.mxu0 0
          %2520 = vmatpush1.bf16.msra.mxu0 %v2504
          %2521 = vmatprep.subr.bf16.mxu0 0
          %2522 = vmatpush1.bf16.msra.mxu0 0
          %2523 = vmatprep.subr.bf16.mxu0 0
          %2524 = vmatpush1.bf16.msra.mxu0 0
          %2525 = vmatprep.subr.bf16.mxu0 0
          %2526 = vmatpush1.bf16.msra.mxu0 0
          %2527 = vmatprep.subr.bf16.mxu0 0
          %2528 = vmatpush1.bf16.msra.mxu0 0
          %2529 = vmatprep.subr.bf16.mxu0 0
          %2530 = vmatpush1.bf16.msra.mxu0 0
          %2531 = vmatprep.subr.bf16.mxu0 0
          %2532 = vmatpush1.bf16.msra.mxu0 0
          %2533 = vmatprep.subr.bf16.mxu0 0
          %2534 = vmatpush1.bf16.msra.mxu0 0
          %2535 = vmatprep.subr.bf16.mxu0 0
          %2536 = vmatpush1.bf16.msra.mxu0 0
          %2537 = vmatprep.mubr.bf16.mxu0 0
          %2538 = vmatmul.mubr.bf16.gmra.mrb[0].mxu0 %v1125
          %v2539 = vpop.f32.mrb[0].mxu0
          %v2540 = vadd.f32 0.0, %v2539
          %v2541 = vpop.f32.mrb[0].mxu0
          %v2542 = vpop.f32.mrb[0].mxu0
          %v2543 = vadd.f32 0.0, %v2542
          %v2544 = vpop.f32.mrb[0].mxu0
          %2545 = vmatprep.mubr.bf16.mxu0 0
          %2546 = vmatmul.mubr.bf16.gmra.mrb[0].mxu0 %v1126
          %v2547 = vpop.f32.mrb[0].mxu0
          %v2548 = vadd.f32 0.0, %v2547
          %v2549 = vpop.f32.mrb[0].mxu0
          %v2550 = vpop.f32.mrb[0].mxu0
          %v2551 = vpop.f32.mrb[0].mxu0
          %2552 = vdwg.mxu0
          %v2553 = vadd.f32 %v2494, %v2540
          %v2554 = vadd.f32 %v2495, %v2543
          %v2555 = vadd.f32 %v2496, %v2548
          %vm2556 = vcmask 23552
          %2557 = vst.msk [vmem:[#allocation6] sm:$0xff] %vm2556, %v2553
          %2558 = vst.msk [vmem:[#allocation6 + $0x8] sm:$0xff] %vm2556, %v2554
          %2559 = vst.msk [vmem:[#allocation6 + $0x10] sm:$0xff] %vm2556, %v2555
        $region84: #{tpu_custom_call.1} parent=71 // pred_fallthru
          _
        %p2560 = scmp.eq.s32.totalorder %s32, 2
        // Predicated region
        $region85: #{tpu_custom_call.1} parent=71 // pred_check
          %p2561 = pneg %p2560
        $region86: #{tpu_custom_call.1} parent=71 // pred_check_branch
          %2563 = sbr.rel (%p2561) target = $region88
        $region87: #{tpu_custom_call.1} parent=71 // pred_region
          %v2564 = vld [vmem:[#allocation2] sm:$0xff]
          %v2565 = vld [vmem:[#allocation2 + $0x8] sm:$0xff]
          %v2566 = vld [vmem:[#allocation2 + $0x10] sm:$0xff]
          %v2567 = vpack.c.bf16 %v2565, %v2564
          %v2568 = vpack.c.bf16 %v2566, %v2566
          %v2569 = vld [vmem:[#allocation5] sm:$0xff]
          %v2570 = vld [vmem:[#allocation5 + $0x8] sm:$0xff]
          %v2571 = vld [vmem:[#allocation5 + $0x10] sm:$0xff]
          %v2572 = vpack.c.bf16 %v2570, %v2569
          %v2573 = vpack.c.bf16 %v2571, %v2571
          %v2578 = vunpack.c.l.b16 %v624
          %v2579 = vunpack.c.l.b16 %v625
          %v2580 = vunpack.c.l.b16 %v626
          %v2581 = vunpack.c.l.b16 %v627
          %v2582 = vpack.c.b16 %v2579, %v2578
          %v2583 = vpack.c.b16 %v2581, %v2580
          %v2587 = vsel %vm1705, %v2572, 0
          %v2590 = vsel %vm1705, %v2573, 0
          %2592 = vmatprep.subr.bf16.mxu0 0
          %2593 = vmatpush1.bf16.msra.mxu0 %v2582
          %2594 = vmatprep.subr.bf16.mxu0 0
          %2595 = vmatpush1.bf16.msra.mxu0 %v2583
          %2596 = vmatprep.subr.bf16.mxu0 0
          %2597 = vmatpush1.bf16.msra.mxu0 0
          %2598 = vmatprep.subr.bf16.mxu0 0
          %2599 = vmatpush1.bf16.msra.mxu0 0
          %2600 = vmatprep.subr.bf16.mxu0 0
          %2601 = vmatpush1.bf16.msra.mxu0 0
          %2602 = vmatprep.subr.bf16.mxu0 0
          %2603 = vmatpush1.bf16.msra.mxu0 0
          %2604 = vmatprep.subr.bf16.mxu0 0
          %2605 = vmatpush1.bf16.msra.mxu0 0
          %2606 = vmatprep.subr.bf16.mxu0 0
          %2607 = vmatpush1.bf16.msra.mxu0 0
          %2608 = vmatprep.subr.bf16.mxu0 0
          %2609 = vmatpush1.bf16.msra.mxu0 0
          %2610 = vmatprep.subr.bf16.mxu0 0
          %2611 = vmatpush1.bf16.msra.mxu0 0
          %2612 = vmatprep.subr.bf16.mxu0 0
          %2613 = vmatpush1.bf16.msra.mxu0 0
          %2614 = vmatprep.subr.bf16.mxu0 0
          %2615 = vmatpush1.bf16.msra.mxu0 0
          %2616 = vmatprep.subr.bf16.mxu0 0
          %2617 = vmatpush1.bf16.msra.mxu0 0
          %2618 = vmatprep.subr.bf16.mxu0 0
          %2619 = vmatpush1.bf16.msra.mxu0 0
          %2620 = vmatprep.subr.bf16.mxu0 0
          %2621 = vmatpush1.bf16.msra.mxu0 0
          %2622 = vmatprep.subr.bf16.mxu0 0
          %2623 = vmatpush1.bf16.msra.mxu0 0
          %2624 = vmatprep.mubr.bf16.mxu0 0
          %2625 = vmatmul.mubr.bf16.gmra.mrb[0].mxu0 %v2587
          %v2626 = vpop.f32.mrb[0].mxu0
          %v2627 = vadd.f32 0.0, %v2626
          %v2628 = vpop.f32.mrb[0].mxu0
          %v2629 = vpop.f32.mrb[0].mxu0
          %v2630 = vadd.f32 0.0, %v2629
          %v2631 = vpop.f32.mrb[0].mxu0
          %2632 = vmatprep.mubr.bf16.mxu0 0
          %2633 = vmatmul.mubr.bf16.gmra.mrb[0].mxu0 %v2590
          %v2634 = vpop.f32.mrb[0].mxu0
          %v2635 = vadd.f32 0.0, %v2634
          %v2636 = vpop.f32.mrb[0].mxu0
          %v2637 = vpop.f32.mrb[0].mxu0
          %v2638 = vpop.f32.mrb[0].mxu0
          %2639 = vdwg.mxu0
          %v2644 = vunpack.c.l.b16 %v619
          %v2645 = vunpack.c.l.b16 %v620
          %v2646 = vunpack.c.l.b16 %v621
          %v2647 = vunpack.c.l.b16 %v622
          %v2648 = vpack.c.b16 %v2645, %v2644
          %v2649 = vpack.c.b16 %v2647, %v2646
          %v2653 = vsel %vm1705, %v2567, 0
          %v2656 = vsel %vm1705, %v2568, 0
          %2658 = vmatprep.subr.bf16.mxu0 0
          %2659 = vmatpush1.bf16.msra.mxu0 %v2648
          %2660 = vmatprep.subr.bf16.mxu0 0
          %2661 = vmatpush1.bf16.msra.mxu0 %v2649
          %2662 = vmatprep.subr.bf16.mxu0 0
          %2663 = vmatpush1.bf16.msra.mxu0 0
          %2664 = vmatprep.subr.bf16.mxu0 0
          %2665 = vmatpush1.bf16.msra.mxu0 0
          %2666 = vmatprep.subr.bf16.mxu0 0
          %2667 = vmatpush1.bf16.msra.mxu0 0
          %2668 = vmatprep.subr.bf16.mxu0 0
          %2669 = vmatpush1.bf16.msra.mxu0 0
          %2670 = vmatprep.subr.bf16.mxu0 0
          %2671 = vmatpush1.bf16.msra.mxu0 0
          %2672 = vmatprep.subr.bf16.mxu0 0
          %2673 = vmatpush1.bf16.msra.mxu0 0
          %2674 = vmatprep.subr.bf16.mxu0 0
          %2675 = vmatpush1.bf16.msra.mxu0 0
          %2676 = vmatprep.subr.bf16.mxu0 0
          %2677 = vmatpush1.bf16.msra.mxu0 0
          %2678 = vmatprep.subr.bf16.mxu0 0
          %2679 = vmatpush1.bf16.msra.mxu0 0
          %2680 = vmatprep.subr.bf16.mxu0 0
          %2681 = vmatpush1.bf16.msra.mxu0 0
          %2682 = vmatprep.subr.bf16.mxu0 0
          %2683 = vmatpush1.bf16.msra.mxu0 0
          %2684 = vmatprep.subr.bf16.mxu0 0
          %2685 = vmatpush1.bf16.msra.mxu0 0
          %2686 = vmatprep.subr.bf16.mxu0 0
          %2687 = vmatpush1.bf16.msra.mxu0 0
          %2688 = vmatprep.subr.bf16.mxu0 0
          %2689 = vmatpush1.bf16.msra.mxu0 0
          %2690 = vmatprep.mubr.bf16.mxu0 0
          %2691 = vmatmul.mubr.bf16.gmra.mrb[0].mxu0 %v2653
          %v2692 = vpop.f32.mrb[0].mxu0
          %v2693 = vadd.f32 %v2627, %v2692
          %v2694 = vpop.f32.mrb[0].mxu0
          %v2695 = vpop.f32.mrb[0].mxu0
          %v2696 = vadd.f32 %v2630, %v2695
          %v2697 = vpop.f32.mrb[0].mxu0
          %2698 = vmatprep.mubr.bf16.mxu0 0
          %2699 = vmatmul.mubr.bf16.gmra.mrb[0].mxu0 %v2656
          %v2700 = vpop.f32.mrb[0].mxu0
          %v2701 = vadd.f32 %v2635, %v2700
          %v2702 = vpop.f32.mrb[0].mxu0
          %v2703 = vpop.f32.mrb[0].mxu0
          %v2704 = vpop.f32.mrb[0].mxu0
          %2705 = vdwg.mxu0
          %v2706 = vlaneseq
          %v2707 = vshrl.u32 %v2706, 7
          %v2708 = vsub.s32 3, %v2707
          %v2709 = vrot.slane %v638, %v2708
          %v2710 = vadd.f32 %v2693, %v2709
          %v2711 = vadd.f32 %v2696, %v2709
          %v2712 = vadd.f32 %v2701, %v2709
          %v2713 = vxor.u32 %v2710, 2147483648
          %v2714 = vxor.u32 %v2711, 2147483648
          %v2715 = vxor.u32 %v2712, 2147483648
          %v2716 = vmul.f32 %v2713, 1.442695
          %v2717 = vpow.pop %v2716
          %v2718 = vmul.f32 %v2714, 1.442695
          %v2719 = vpow.pop %v2718
          %v2720 = vmul.f32 %v2715, 1.442695
          %v2721 = vpow.pop %v2720
          %v2722 = vadd.f32 %v2717, 1.0
          %v2723 = vadd.f32 %v2719, 1.0
          %v2724 = vadd.f32 %v2721, 1.0
          %v2725 = vrcp.pop %v2722
          %v2726 = vmul.f32 1.0, %v2725
          %v2727 = vrcp.pop %v2723
          %v2728 = vmul.f32 1.0, %v2727
          %v2729 = vrcp.pop %v2724
          %v2730 = vmul.f32 1.0, %v2729
          %v2731 = vmul.f32 %v2710, %v2726
          %v2732 = vmul.f32 %v2711, %v2728
          %v2733 = vmul.f32 %v2712, %v2730
          %v2734 = vpack.c.bf16 %v2732, %v2731
          %v2735 = vpack.c.bf16 %v2733, %v2733
          %v2740 = vunpack.c.l.b16 %v629
          %v2741 = vunpack.c.l.b16 %v630
          %v2742 = vunpack.c.l.b16 %v631
          %v2743 = vunpack.c.l.b16 %v632
          %v2744 = vpack.c.b16 %v2741, %v2740
          %v2745 = vpack.c.b16 %v2743, %v2742
          %v2749 = vsel %vm1705, %v2734, 0
          %v2752 = vsel %vm1705, %v2735, 0
          %2754 = vmatprep.subr.bf16.mxu0 0
          %2755 = vmatpush1.bf16.msra.mxu0 %v2744
          %2756 = vmatprep.subr.bf16.mxu0 0
          %2757 = vmatpush1.bf16.msra.mxu0 %v2745
          %2758 = vmatprep.subr.bf16.mxu0 0
          %2759 = vmatpush1.bf16.msra.mxu0 0
          %2760 = vmatprep.subr.bf16.mxu0 0
          %2761 = vmatpush1.bf16.msra.mxu0 0
          %2762 = vmatprep.subr.bf16.mxu0 0
          %2763 = vmatpush1.bf16.msra.mxu0 0
          %2764 = vmatprep.subr.bf16.mxu0 0
          %2765 = vmatpush1.bf16.msra.mxu0 0
          %2766 = vmatprep.subr.bf16.mxu0 0
          %2767 = vmatpush1.bf16.msra.mxu0 0
          %2768 = vmatprep.subr.bf16.mxu0 0
          %2769 = vmatpush1.bf16.msra.mxu0 0
          %2770 = vmatprep.subr.bf16.mxu0 0
          %2771 = vmatpush1.bf16.msra.mxu0 0
          %2772 = vmatprep.subr.bf16.mxu0 0
          %2773 = vmatpush1.bf16.msra.mxu0 0
          %2774 = vmatprep.subr.bf16.mxu0 0
          %2775 = vmatpush1.bf16.msra.mxu0 0
          %2776 = vmatprep.subr.bf16.mxu0 0
          %2777 = vmatpush1.bf16.msra.mxu0 0
          %2778 = vmatprep.subr.bf16.mxu0 0
          %2779 = vmatpush1.bf16.msra.mxu0 0
          %2780 = vmatprep.subr.bf16.mxu0 0
          %2781 = vmatpush1.bf16.msra.mxu0 0
          %2782 = vmatprep.subr.bf16.mxu0 0
          %2783 = vmatpush1.bf16.msra.mxu0 0
          %2784 = vmatprep.subr.bf16.mxu0 0
          %2785 = vmatpush1.bf16.msra.mxu0 0
          %2786 = vmatprep.mubr.bf16.mxu0 0
          %2787 = vmatmul.mubr.bf16.gmra.mrb[0].mxu0 %v2749
          %v2788 = vpop.f32.mrb[0].mxu0
          %v2789 = vadd.f32 0.0, %v2788
          %v2790 = vpop.f32.mrb[0].mxu0
          %v2791 = vpop.f32.mrb[0].mxu0
          %v2792 = vadd.f32 0.0, %v2791
          %v2793 = vpop.f32.mrb[0].mxu0
          %2794 = vmatprep.mubr.bf16.mxu0 0
          %2795 = vmatmul.mubr.bf16.gmra.mrb[0].mxu0 %v2752
          %v2796 = vpop.f32.mrb[0].mxu0
          %v2797 = vadd.f32 0.0, %v2796
          %v2798 = vpop.f32.mrb[0].mxu0
          %v2799 = vpop.f32.mrb[0].mxu0
          %v2800 = vpop.f32.mrb[0].mxu0
          %2801 = vdwg.mxu0
          %v2802 = vadd.f32 %v2564, %v2789
          %v2803 = vadd.f32 %v2565, %v2792
          %v2804 = vadd.f32 %v2566, %v2797
          %v2805 = vlaneseq
          %v2806 = vshrl.u32 %v2805, 7
          %v2807 = vsub.s32 4, %v2806
          %v2808 = vrot.slane %v638, %v2807
          %v2809 = vadd.f32 %v2802, %v2808
          %v2810 = vadd.f32 %v2803, %v2808
          %v2811 = vadd.f32 %v2804, %v2808
          %2812 = vst.msk [vmem:[#allocation2] sm:$0xff] %vm1705, %v2809
          %2813 = vst.msk [vmem:[#allocation2 + $0x8] sm:$0xff] %vm1705, %v2810
          %2814 = vst.msk [vmem:[#allocation2 + $0x10] sm:$0xff] %vm1705, %v2811
          // Predicated region
          $region89: #{tpu_custom_call.1} parent=87 // pred_check
            %p2815 = pneg %p2004
          $region90: #{tpu_custom_call.1} parent=87 // pred_check_branch
            %2817 = sbr.rel (%p2815) target = $region92
          $region91: #{tpu_custom_call.1} parent=87 // pred_region
            %2818 = vst.msk [vmem:[#allocation7] sm:$0xff] %vm1705, %v2809
            %2819 = vst.msk [vmem:[#allocation7 + $0x8] sm:$0xff] %vm1705, %v2810
            %2820 = vst.msk [vmem:[#allocation7 + $0x10] sm:$0xff] %vm1705, %v2811
            %v2821 = vld [vmem:[%s1] sm:$0xff]
            %v2822 = vld [vmem:[%s1 + $0x8] sm:$0xff]
            %v2823 = vld [vmem:[%s1 + $0x10] sm:$0xff]
            %v2824 = vld [vmem:[#allocation6] sm:$0xff]
            %v2825 = vld [vmem:[#allocation6 + $0x8] sm:$0xff]
            %v2826 = vld [vmem:[#allocation6 + $0x10] sm:$0xff]
            %v2827 = vld [vmem:[%s2] sm:$0xff]
            %v2828 = vld [vmem:[%s2 + $0x8] sm:$0xff]
            %v2829 = vld [vmem:[%s2 + $0x10] sm:$0xff]
            %2831 = vset.pattern.permute.xlu0 0
            %2832 = vperm.xlu0 %2831, %v2827
            %v2833 = vpop.permute.xlu0 %2832
            %2836 = vset.pattern.permute.xlu0 0
            %2837 = vperm.xlu0 %2836, %v2828
            %v2838 = vpop.permute.xlu0 %2837
            %2841 = vset.pattern.permute.xlu0 0
            %2842 = vperm.xlu0 %2841, %v2829
            %v2843 = vpop.permute.xlu0 %2842
            %v2845 = vmul.f32 %v2824, %v2833
            %v2846 = vmul.f32 %v2825, %v2838
            %v2847 = vmul.f32 %v2826, %v2843
            %v2848 = vadd.f32 %v2821, %v2845
            %v2849 = vadd.f32 %v2822, %v2846
            %v2850 = vadd.f32 %v2823, %v2847
            %vm2851 = vcmask 23552
            %2852 = vst.msk [vmem:[%s14] sm:$0xff] %vm2851, %v2848
            %2853 = vst.msk [vmem:[%s14 + $0x8] sm:$0xff] %vm2851, %v2849
            %2854 = vst.msk [vmem:[%s14 + $0x10] sm:$0xff] %vm2851, %v2850
          $region92: #{tpu_custom_call.1} parent=87 // pred_fallthru
            _
        $region88: #{tpu_custom_call.1} parent=71 // pred_fallthru
          _
        // Predicated region
        $region93: #{tpu_custom_call.1} parent=71 // pred_check
          %p2855 = pneg %p365
        $region94: #{tpu_custom_call.1} parent=71 // pred_check_branch
          %2857 = sbr.rel (%p2855) target = $region96
        $region95: #{tpu_custom_call.1} parent=71 // pred_region
          %s2859 = ssub.s32 384, 384
          %2860 = vsyncadd [#allocation8], %s2859
          %s2861 = sshll.u32 [#allocation7], 4
          %s2862 = int_to_ptr.vmem [resolvable:$true] %s2861
          %2867 = dma.vmem_to_hbm [thread:$0]  %s2862, 384, %s13, [#allocation8], 128, 128, 8
        $region96: #{tpu_custom_call.1} parent=71 // pred_fallthru
          _
        // Predicated region
        $region97: #{tpu_custom_call.1} parent=71 // pred_check
          %p2868 = pneg %p386
        $region98: #{tpu_custom_call.1} parent=71 // pred_check_branch
          %2870 = sbr.rel (%p2868) target = $region100
        $region99: #{tpu_custom_call.1} parent=71 // pred_region
          _
        $region100: #{tpu_custom_call.1} parent=71 // pred_fallthru
          _
        // Predicated region
        $region101: #{tpu_custom_call.1} parent=71 // pred_check
          %p2871 = pneg %p365
        $region102: #{tpu_custom_call.1} parent=71 // pred_check_branch
          %2873 = sbr.rel (%p2871) target = $region104
        $region103: #{tpu_custom_call.1} parent=71 // pred_region
          %2874 = dma.done [#allocation8], 384
        $region104: #{tpu_custom_call.1} parent=71 // pred_fallthru
          _
        // Predicated region
        $region105: #{tpu_custom_call.1} parent=71 // pred_check
          %p2875 = pneg %p386
        $region106: #{tpu_custom_call.1} parent=71 // pred_check_branch
          %2877 = sbr.rel (%p2875) target = $region108
        $region107: #{tpu_custom_call.1} parent=71 // pred_region
          _
        $region108: #{tpu_custom_call.1} parent=71 // pred_fallthru
          _
      $region72: #{tpu_custom_call.1} parent=5 // pred_fallthru
        _
      %p2878 = scmp.le.s32.totalorder 2, %s22
      // Predicated region
      $region109: #{tpu_custom_call.1} parent=5 // pred_check
        %p2879 = pneg %p2878
      $region110: #{tpu_custom_call.1} parent=5 // pred_check_branch
        %2881 = sbr.rel (%p2879) target = $region112
      $region111: #{tpu_custom_call.1} parent=5 // pred_region
        %s2882 = ssub.s32 %s22, 2
      $region112: #{tpu_custom_call.1} parent=5 // pred_fallthru
        _
    $region6: #{tpu_custom_call.1} parent=1 // loop_footer
      %s26 = sadd.s32 1, %s22
    $region7: #{tpu_custom_call.1} parent=1 // loop_footer_branch
      %21 = sbr.rel target = $region3
    $region8: #{tpu_custom_call.1} parent=1 // loop_exit
      _
    %2883 = vsyncpa [#allocation8], 1
    %s2884 = scalar_lea.sflag [#allocation8], 1
    %2885 = vsyncpa %s2884, 1

</llo_original>
